<compile_context>
chip_gen: v7x
topology: tpu7x:2x2x1
jax: 0.10.0
libtpu: 0.0.40
codegen_flags: <defaults>
</compile_context>

<pallas_src>
import functools

import jax
import jax.numpy as jnp
from jax import lax
from jax.experimental import pallas as pl
from jax.experimental.pallas import tpu as pltpu

# Padded GEMM dimensions (lane-dense outputs / MXU-friendly contractions).
K1P = 128     # conv1 im2col K: 25   -> 128
K2P = 128     # conv2 im2col K: 90   -> 128
CPAD = 128    # conv1/conv2/fc2 output channels: 10/20/10 -> 128
K3P = 2048    # fc1 K: 2000 -> 2048
H1P = 512     # fc1 hidden: 500 -> 512
_NEG = -1e30  # bias for padded logit lanes so log_softmax ignores them

_MAX_TILE_M = 512
_PARALLEL = pltpu.CompilerParams(dimension_semantics=("parallel",))


# ------------------------------- Pallas kernels ------------------------------

def _conv1_relu_pool_kernel(p_ref, w_ref, b_ref, o_ref):
    """p: (4, TM, K) im2col patches, one slab per 2x2-pool offset.
    o = max_q relu(p[q] @ w + b)  (ReLU-then-pool == pool-then-ReLU for max)."""
    w = w_ref[...]
    b = b_ref[...]
    acc = None
    for q in range(4):
        z = jnp.dot(p_ref[q], w, preferred_element_type=jnp.float32) + b
        z = jnp.maximum(z, 0.0)
        acc = z if acc is None else jnp.maximum(acc, z)
    o_ref[...] = acc.astype(o_ref.dtype)


def _gemm_relu_kernel(x_ref, w_ref, b_ref, o_ref):
    z = jnp.dot(x_ref[...], w_ref[...], preferred_element_type=jnp.float32)
    o_ref[...] = jnp.maximum(z + b_ref[...], 0.0).astype(o_ref.dtype)


def _mlp_head_kernel(x_ref, w1_ref, b1_ref, w2_ref, b2_ref, o_ref):
    """log_softmax(relu(x @ w1 + b1) @ w2 + b2).  Padded logit lanes carry a
    -1e30 bias so exp() underflows to 0 and they drop out of the softmax."""
    h = jnp.dot(x_ref[...], w1_ref[...], preferred_element_type=jnp.float32)
    h = jnp.maximum(h + b1_ref[...], 0.0)
    z = jnp.dot(h.astype(w2_ref.dtype), w2_ref[...],
                preferred_element_type=jnp.float32) + b2_ref[...]
    z = z - jnp.max(z, axis=-1, keepdims=True)
    o_ref[...] = z - jnp.log(jnp.sum(jnp.exp(z), axis=-1, keepdims=True))


# ------------------------------- small helpers -------------------------------

def _round_up(x, m):
    return (x + m - 1) // m * m


def _pad_to(x, shape):
    return jnp.pad(x, [(0, s - d) for d, s in zip(x.shape, shape)])


def _m_tiling(m):
    """(padded_m, tile_m): rows padded to a bf16-sublane-friendly multiple."""
    mp = _round_up(m, 16)
    if mp <= _MAX_TILE_M:
        return mp, mp
    return _round_up(m, _MAX_TILE_M), _MAX_TILE_M


# ------------------------------ kernel wrappers -------------------------------

def conv1_relu_pool_pallas(p, w, b):
    """p: (4, M, K0) patches; w: (K1P, CPAD); b: (1, CPAD) -> (M, CPAD)."""
    _, M, _ = p.shape
    K, C = w.shape
    Mp, TM = _m_tiling(M)
    p = _pad_to(p, (4, Mp, K)).astype(w.dtype)
    out = pl.pallas_call(
        _conv1_relu_pool_kernel,
        grid=(Mp // TM,),
        in_specs=[pl.BlockSpec((4, TM, K), lambda i: (0, i, 0)),
                  pl.BlockSpec((K, C), lambda i: (0, 0)),
                  pl.BlockSpec((1, C), lambda i: (0, 0))],
        out_specs=pl.BlockSpec((TM, C), lambda i: (i, 0)),
        out_shape=jax.ShapeDtypeStruct((Mp, C), w.dtype),
        compiler_params=_PARALLEL,
    )(p, w, b)
    return out[:M]


def gemm_relu_pallas(x, w, b):
    """relu(x @ w + b); x's K is zero-padded up to the (padded) weight K."""
    M, _ = x.shape
    K, C = w.shape
    Mp, TM = _m_tiling(M)
    x = _pad_to(x, (Mp, K)).astype(w.dtype)
    out = pl.pallas_call(
        _gemm_relu_kernel,
        grid=(Mp // TM,),
        in_specs=[pl.BlockSpec((TM, K), lambda i: (i, 0)),
                  pl.BlockSpec((K, C), lambda i: (0, 0)),
                  pl.BlockSpec((1, C), lambda i: (0, 0))],
        out_specs=pl.BlockSpec((TM, C), lambda i: (i, 0)),
        out_shape=jax.ShapeDtypeStruct((Mp, C), w.dtype),
        compiler_params=_PARALLEL,
    )(x, w, b)
    return out[:M]


def mlp_head_pallas(x, w1, b1, w2, b2):
    """log_softmax(relu(x @ w1 + b1) @ w2 + b2), row-tiled, f32 output."""
    M, _ = x.shape
    K, H = w1.shape
    _, C = w2.shape
    Mp, TM = _m_tiling(M)
    x = _pad_to(x, (Mp, K)).astype(w1.dtype)
    out = pl.pallas_call(
        _mlp_head_kernel,
        grid=(Mp // TM,),
        in_specs=[pl.BlockSpec((TM, K), lambda i: (i, 0)),
                  pl.BlockSpec((K, H), lambda i: (0, 0)),
                  pl.BlockSpec((1, H), lambda i: (0, 0)),
                  pl.BlockSpec((H, C), lambda i: (0, 0)),
                  pl.BlockSpec((1, C), lambda i: (0, 0))],
        out_specs=pl.BlockSpec((TM, C), lambda i: (i, 0)),
        out_shape=jax.ShapeDtypeStruct((Mp, C), jnp.float32),
        compiler_params=_PARALLEL,
    )(x, w1, b1, w2, b2)
    return out[:M]


# --------------------------- JAX glue (im2col etc.) ---------------------------

def _conv1_pool_patches(x_nhwc, kh, kw):
    """4 im2col patch slabs, one per 2x2-pool offset.  Rows ordered
    (n, pooled_h, pooled_w); columns ordered (kh, kw, c_in)."""
    N, H, W, C = x_nhwc.shape
    oh, ow = H - kh + 1, W - kw + 1
    ph, pw = oh // 2, ow // 2
    slabs = []
    for dy in range(2):
        for dx in range(2):
            cols = []
            for i in range(kh):
                for j in range(kw):
                    r0, c0 = dy + i, dx + j
                    sl = x_nhwc[:, r0:r0 + 2 * ph - 1:2, c0:c0 + 2 * pw - 1:2, :]
                    cols.append(sl.reshape(N * ph * pw, C))
            slabs.append(jnp.concatenate(cols, axis=1))
    return jnp.stack(slabs, axis=0), ph, pw        # (4, N*ph*pw, kh*kw*C)


def _im2col_nhwc(x_nhwc, kh, kw):
    """Rows ordered (n, oh, ow); columns ordered (kh, kw, c_in)."""
    N, H, W, C = x_nhwc.shape
    oh, ow = H - kh + 1, W - kw + 1
    cols = [x_nhwc[:, i:i + oh, j:j + ow, :].reshape(N * oh * ow, C)
            for i in range(kh) for j in range(kw)]
    return jnp.concatenate(cols, axis=1), oh, ow


# ---------------------------- parameter preparation --------------------------

def prepare_params(params, compute_dtype=jnp.bfloat16):
    """One-time re-layout of PyTorch-layout params into kernel-friendly,
    zero-padded GEMM operands.  Weights cast to the MXU compute dtype,
    biases stay f32 (epilogue math is f32 on all chip generations)."""
    w1, b1, w2, b2, fw1, fb1, fw2, fb2 = params
    cdt = jnp.dtype(compute_dtype)
    # conv1: OIHW (10,1,5,5) -> (kh*kw*ci, co) = (25, 10) -> (128, 128)
    w1m = jnp.transpose(w1, (2, 3, 1, 0)).reshape(25, 10)
    w1p = _pad_to(w1m, (K1P, CPAD)).astype(cdt)
    b1p = _pad_to(b1.reshape(1, -1), (1, CPAD)).astype(jnp.float32)
    # conv2: OIHW (20,10,3,3) -> (kh*kw*ci, co) = (90, 20) -> (128, 128)
    w2m = jnp.transpose(w2, (2, 3, 1, 0)).reshape(90, 20)
    w2p = _pad_to(w2m, (K2P, CPAD)).astype(cdt)
    b2p = _pad_to(b2.reshape(1, -1), (1, CPAD)).astype(jnp.float32)
    # fc1 (500, 2000): permute columns from PyTorch (C,H,W) flatten order to the
    # (H,W,C) order our NHWC pipeline produces, transpose to (K, H), pad.
    fw1m = fw1.reshape(500, 20, 10, 10).transpose(2, 3, 1, 0).reshape(2000, 500)
    fw1p = _pad_to(fw1m, (K3P, H1P)).astype(cdt)
    fb1p = _pad_to(fb1.reshape(1, -1), (1, H1P)).astype(jnp.float32)
    # fc2 (10, 500) -> (500, 10) -> (512, 128); padded logit lanes get -1e30 bias.
    fw2p = _pad_to(fw2.T, (H1P, CPAD)).astype(cdt)
    fb2p = jnp.full((1, CPAD), _NEG, jnp.float32).at[0, :10].set(
        fb2.astype(jnp.float32))
    return (w1p, b1p, w2p, b2p, fw1p, fb1p, fw2p, fb2p)


# ------------------------------ full forward pass -----------------------------

@jax.jit
def forward_pallas(x, prepped):
    """x: (N, 1, 28, 28) NCHW input; prepped: output of prepare_params."""
    w1p, b1p, w2p, b2p, fw1p, fb1p, fw2p, fb2p = prepped
    N = x.shape[0]
    x_nhwc = jnp.transpose(x, (0, 2, 3, 1))                  # (N, 28, 28, 1)

    # conv1 + relu + 2x2 max-pool (one kernel): 28x28 -> 12x12, NHWC.
    p1, ph, pw = _conv1_pool_patches(x_nhwc, 5, 5)           # (4, N*144, 25)
    pooled = conv1_relu_pool_pallas(p1, w1p, b1p)            # (N*144, 128)
    pooled = pooled[:, :10].reshape(N, ph, pw, 10)

    # conv2 + relu (one kernel): 12x12 -> 10x10, NHWC.
    p2, oh2, ow2 = _im2col_nhwc(pooled, 3, 3)                # (N*100, 90)
    y2 = gemm_relu_pallas(p2, w2p, b2p)                      # (N*100, 128)
    # Flatten in (H, W, C) order -- fc1 columns were permuted to match.
    y2 = y2[:, :20].reshape(N, oh2 * ow2 * 20)               # (N, 2000)

    # fc1 + relu + fc2 + log_softmax (one kernel).
    out = mlp_head_pallas(y2, fw1p, fb1p, fw2p, fb2p)        # (N, 128) f32
    return out[:, :10]


# ------------------------------ pure-JAX reference ----------------------------

def forward_reference(x, params):
    w1, b1, w2, b2, fw1, fb1, fw2, fb2 = params
    dn = ("NCHW", "OIHW", "NCHW")
    y = lax.conv_general_dilated(x, w1, (1, 1), "VALID", dimension_numbers=dn)
    y = jnp.maximum(y + b1[None, :, None, None], 0.0)
    y = lax.reduce_window(y, -jnp.inf, lax.max, (1, 1, 2, 2), (1, 1, 2, 2), "VALID")
    y = lax.conv_general_dilated(y, w2, (1, 1), "VALID", dimension_numbers=dn)
    y = jnp.maximum(y + b2[None, :, None, None], 0.0)
    y = y.reshape(x.shape[0], -1)
    y = jnp.maximum(y @ fw1.T + fb1, 0.0)
    y = y @ fw2.T + fb2
    return jax.nn.log_softmax(y, axis=1)


# ---------------------------------- main --------------------------------------

if __name__ == "__main__":
    key = jax.random.PRNGKey(0)
    ks = jax.random.split(key, 9)

    # Deterministic synthetic params (PyTorch layouts: OIHW convs, (out,in) FCs).
    w1 = jax.random.normal(ks[0], (10, 1, 5, 5), jnp.float32) * 0.1
    b1 = jax.random.normal(ks[1], (10,), jnp.float32) * 0.1
    w2 = jax.random.normal(ks[2], (20, 10, 3, 3), jnp.float32) * 0.1
    b2 = jax.random.normal(ks[3], (20,), jnp.float32) * 0.1
    fw1 = jax.random.normal(ks[4], (500, 2000), jnp.float32) * 0.02
    fb1 = jax.random.normal(ks[5], (500,), jnp.float32) * 0.02
    fw2 = jax.random.normal(ks[6], (10, 500), jnp.float32) * 0.05
    fb2 = jax.random.normal(ks[7], (10,), jnp.float32) * 0.05
    params = (w1, b1, w2, b2, fw1, fb1, fw2, fb2)

    # Input: batch=2, 1x28x28 (fc1 dim 20*10*10 implies a 28x28 input).
    x = jax.random.normal(ks[8], (2, 1, 28, 28), jnp.float32)

    ref = jax.block_until_ready(forward_reference(x, params))

    # Tight correctness check with f32 MXU operands.
    out_f32 = jax.block_until_ready(forward_pallas(x, prepare_params(params, jnp.float32)))
    assert out_f32.shape == (2, 10)
    assert jnp.allclose(out_f32, ref, rtol=1e-4, atol=1e-4), (
        f"f32 max abs diff {float(jnp.max(jnp.abs(out_f32 - ref)))}")

    # Default perf path: bf16 MXU operands, f32 accumulation (looser tolerance).
    out_bf16 = jax.block_until_ready(forward_pallas(x, prepare_params(params, jnp.bfloat16)))
    assert out_bf16.shape == (2, 10)
    assert jnp.allclose(out_bf16, ref, rtol=1e-1, atol=1e-1), (
        f"bf16 max abs diff {float(jnp.max(jnp.abs(out_bf16 - ref)))}")

    print("KERNEL_OK")
</pallas_src>

<mosaic_0001>
module attributes {stable_mosaic.version = 11 : i64} {
  func.func @_conv1_relu_pool_kernel(%arg0: i32, %arg1: memref<4x288x128xf32, #tpu.memory_space<vmem>>, %arg2: memref<128x128xf32, #tpu.memory_space<vmem>>, %arg3: memref<1x128xf32, #tpu.memory_space<vmem>>, %arg4: memref<288x128xf32, #tpu.memory_space<vmem>>) attributes {dimension_semantics = [#tpu.dimension_semantics<parallel>], iteration_bounds = array<i64: 1>, scalar_prefetch = 0 : i64, scratch_operands = 0 : i64, tpu.core_type = #tpu.core_type<tc>, window_params = [{transform_indices = @transform_0, window_bounds = array<i64: 4, 288, 128>}, {pipeline_mode = #tpu.pipeline_mode<synchronous>, transform_indices = @transform_1, window_bounds = array<i64: 128, 128>}, {pipeline_mode = #tpu.pipeline_mode<synchronous>, transform_indices = @transform_2, window_bounds = array<i64: 1, 128>}, {transform_indices = @transform_3, window_bounds = array<i64: 288, 128>}]} {
    %c0 = arith.constant 0 : index
    %c0_0 = arith.constant 0 : index
    %0 = vector.load %arg2[%c0, %c0_0] : memref<128x128xf32, #tpu.memory_space<vmem>>, vector<128x128xf32>
    %c0_1 = arith.constant 0 : index
    %c0_2 = arith.constant 0 : index
    %1 = vector.load %arg3[%c0_1, %c0_2] : memref<1x128xf32, #tpu.memory_space<vmem>>, vector<1x128xf32>
    %c0_3 = arith.constant 0 : index
    %c0_4 = arith.constant 0 : index
    %c0_5 = arith.constant 0 : index
    %2 = vector.load %arg1[%c0_3, %c0_4, %c0_5] : memref<4x288x128xf32, #tpu.memory_space<vmem>>, vector<1x288x128xf32>
    %3 = vector.shape_cast %2 : vector<1x288x128xf32> to vector<288x128xf32>
    %cst = arith.constant dense<0.000000e+00> : vector<288x128xf32>
    %4 = tpu.matmul %3, %0, %cst {dimension_numbers = #tpu.dot_dimension_numbers<[1], [0], [0], [1], [0, 0, 1, 1], [], []>} : vector<288x128xf32>, vector<128x128xf32>, vector<288x128xf32> -> vector<288x128xf32>
    %5 = vector.broadcast %1 : vector<1x128xf32> to vector<288x128xf32>
    %6 = arith.addf %4, %5 : vector<288x128xf32>
    %cst_6 = arith.constant 0.000000e+00 : f32
    %7 = vector.broadcast %cst_6 : f32 to vector<288x128xf32>
    %8 = arith.maximumf %6, %7 : vector<288x128xf32>
    %c1 = arith.constant 1 : index
    %c0_7 = arith.constant 0 : index
    %c0_8 = arith.constant 0 : index
    %9 = vector.load %arg1[%c1, %c0_7, %c0_8] : memref<4x288x128xf32, #tpu.memory_space<vmem>>, vector<1x288x128xf32>
    %10 = vector.shape_cast %9 : vector<1x288x128xf32> to vector<288x128xf32>
    %cst_9 = arith.constant dense<0.000000e+00> : vector<288x128xf32>
    %11 = tpu.matmul %10, %0, %cst_9 {dimension_numbers = #tpu.dot_dimension_numbers<[1], [0], [0], [1], [0, 0, 1, 1], [], []>} : vector<288x128xf32>, vector<128x128xf32>, vector<288x128xf32> -> vector<288x128xf32>
    %12 = vector.broadcast %1 : vector<1x128xf32> to vector<288x128xf32>
    %13 = arith.addf %11, %12 : vector<288x128xf32>
    %cst_10 = arith.constant 0.000000e+00 : f32
    %14 = vector.broadcast %cst_10 : f32 to vector<288x128xf32>
    %15 = arith.maximumf %13, %14 : vector<288x128xf32>
    %16 = arith.maximumf %8, %15 : vector<288x128xf32>
    %c2 = arith.constant 2 : index
    %c0_11 = arith.constant 0 : index
    %c0_12 = arith.constant 0 : index
    %17 = vector.load %arg1[%c2, %c0_11, %c0_12] : memref<4x288x128xf32, #tpu.memory_space<vmem>>, vector<1x288x128xf32>
    %18 = vector.shape_cast %17 : vector<1x288x128xf32> to vector<288x128xf32>
    %cst_13 = arith.constant dense<0.000000e+00> : vector<288x128xf32>
    %19 = tpu.matmul %18, %0, %cst_13 {dimension_numbers = #tpu.dot_dimension_numbers<[1], [0], [0], [1], [0, 0, 1, 1], [], []>} : vector<288x128xf32>, vector<128x128xf32>, vector<288x128xf32> -> vector<288x128xf32>
    %20 = vector.broadcast %1 : vector<1x128xf32> to vector<288x128xf32>
    %21 = arith.addf %19, %20 : vector<288x128xf32>
    %cst_14 = arith.constant 0.000000e+00 : f32
    %22 = vector.broadcast %cst_14 : f32 to vector<288x128xf32>
    %23 = arith.maximumf %21, %22 : vector<288x128xf32>
    %24 = arith.maximumf %16, %23 : vector<288x128xf32>
    %c3 = arith.constant 3 : index
    %c0_15 = arith.constant 0 : index
    %c0_16 = arith.constant 0 : index
    %25 = vector.load %arg1[%c3, %c0_15, %c0_16] : memref<4x288x128xf32, #tpu.memory_space<vmem>>, vector<1x288x128xf32>
    %26 = vector.shape_cast %25 : vector<1x288x128xf32> to vector<288x128xf32>
    %cst_17 = arith.constant dense<0.000000e+00> : vector<288x128xf32>
    %27 = tpu.matmul %26, %0, %cst_17 {dimension_numbers = #tpu.dot_dimension_numbers<[1], [0], [0], [1], [0, 0, 1, 1], [], []>} : vector<288x128xf32>, vector<128x128xf32>, vector<288x128xf32> -> vector<288x128xf32>
    %28 = vector.broadcast %1 : vector<1x128xf32> to vector<288x128xf32>
    %29 = arith.addf %27, %28 : vector<288x128xf32>
    %cst_18 = arith.constant 0.000000e+00 : f32
    %30 = vector.broadcast %cst_18 : f32 to vector<288x128xf32>
    %31 = arith.maximumf %29, %30 : vector<288x128xf32>
    %32 = arith.maximumf %24, %31 : vector<288x128xf32>
    %c0_19 = arith.constant 0 : index
    %c0_20 = arith.constant 0 : index
    %33 = vector.load %arg4[%c0_19, %c0_20] : memref<288x128xf32, #tpu.memory_space<vmem>>, vector<288x128xf32>
    tpu.vector_store %arg4[%c0_19, %c0_20], %32 {strides = array<i32>} : memref<288x128xf32, #tpu.memory_space<vmem>>, vector<288x128xf32>,
    return
  }
  func.func @transform_0(%arg0: i32) -> (i32, i32, i32) {
    %c0_i32 = arith.constant 0 : i32
    %c0_i32_0 = arith.constant 0 : i32
    %c0_i32_1 = arith.constant 0 : i32
    return %c0_i32, %arg0, %c0_i32_0 : i32, i32, i32
  }
  func.func @transform_1(%arg0: i32) -> (i32, i32) {
    %c0_i32 = arith.constant 0 : i32
    %c0_i32_0 = arith.constant 0 : i32
    %c0_i32_1 = arith.constant 0 : i32
    return %c0_i32, %c0_i32_0 : i32, i32
  }
  func.func @transform_2(%arg0: i32) -> (i32, i32) {
    %c0_i32 = arith.constant 0 : i32
    %c0_i32_0 = arith.constant 0 : i32
    %c0_i32_1 = arith.constant 0 : i32
    return %c0_i32, %c0_i32_0 : i32, i32
  }
  func.func @transform_3(%arg0: i32) -> (i32, i32) {
    %c0_i32 = arith.constant 0 : i32
    %c0_i32_0 = arith.constant 0 : i32
    return %arg0, %c0_i32 : i32, i32
  }
}

module attributes {stable_mosaic.version = 11 : i64} {
  func.func @_gemm_relu_kernel(%arg0: i32, %arg1: memref<208x128xf32, #tpu.memory_space<vmem>>, %arg2: memref<128x128xf32, #tpu.memory_space<vmem>>, %arg3: memref<1x128xf32, #tpu.memory_space<vmem>>, %arg4: memref<208x128xf32, #tpu.memory_space<vmem>>) attributes {dimension_semantics = [#tpu.dimension_semantics<parallel>], iteration_bounds = array<i64: 1>, scalar_prefetch = 0 : i64, scratch_operands = 0 : i64, tpu.core_type = #tpu.core_type<tc>, window_params = [{transform_indices = @transform_0, window_bounds = array<i64: 208, 128>}, {pipeline_mode = #tpu.pipeline_mode<synchronous>, transform_indices = @transform_1, window_bounds = array<i64: 128, 128>}, {pipeline_mode = #tpu.pipeline_mode<synchronous>, transform_indices = @transform_2, window_bounds = array<i64: 1, 128>}, {transform_indices = @transform_3, window_bounds = array<i64: 208, 128>}]} {
    %c0 = arith.constant 0 : index
    %c0_0 = arith.constant 0 : index
    %0 = vector.load %arg1[%c0, %c0_0] : memref<208x128xf32, #tpu.memory_space<vmem>>, vector<208x128xf32>
    %c0_1 = arith.constant 0 : index
    %c0_2 = arith.constant 0 : index
    %1 = vector.load %arg2[%c0_1, %c0_2] : memref<128x128xf32, #tpu.memory_space<vmem>>, vector<128x128xf32>
    %cst = arith.constant dense<0.000000e+00> : vector<208x128xf32>
    %2 = tpu.matmul %0, %1, %cst {dimension_numbers = #tpu.dot_dimension_numbers<[1], [0], [0], [1], [0, 0, 1, 1], [], []>} : vector<208x128xf32>, vector<128x128xf32>, vector<208x128xf32> -> vector<208x128xf32>
    %c0_3 = arith.constant 0 : index
    %c0_4 = arith.constant 0 : index
    %3 = vector.load %arg3[%c0_3, %c0_4] : memref<1x128xf32, #tpu.memory_space<vmem>>, vector<1x128xf32>
    %4 = vector.broadcast %3 : vector<1x128xf32> to vector<208x128xf32>
    %5 = arith.addf %2, %4 : vector<208x128xf32>
    %cst_5 = arith.constant 0.000000e+00 : f32
    %6 = vector.broadcast %cst_5 : f32 to vector<208x128xf32>
    %7 = arith.maximumf %5, %6 : vector<208x128xf32>
    %c0_6 = arith.constant 0 : index
    %c0_7 = arith.constant 0 : index
    %8 = vector.load %arg4[%c0_6, %c0_7] : memref<208x128xf32, #tpu.memory_space<vmem>>, vector<208x128xf32>
    tpu.vector_store %arg4[%c0_6, %c0_7], %7 {strides = array<i32>} : memref<208x128xf32, #tpu.memory_space<vmem>>, vector<208x128xf32>,
    return
  }
  func.func @transform_0(%arg0: i32) -> (i32, i32) {
    %c0_i32 = arith.constant 0 : i32
    %c0_i32_0 = arith.constant 0 : i32
    return %arg0, %c0_i32 : i32, i32
  }
  func.func @transform_1(%arg0: i32) -> (i32, i32) {
    %c0_i32 = arith.constant 0 : i32
    %c0_i32_0 = arith.constant 0 : i32
    %c0_i32_1 = arith.constant 0 : i32
    return %c0_i32, %c0_i32_0 : i32, i32
  }
  func.func @transform_2(%arg0: i32) -> (i32, i32) {
    %c0_i32 = arith.constant 0 : i32
    %c0_i32_0 = arith.constant 0 : i32
    %c0_i32_1 = arith.constant 0 : i32
    return %c0_i32, %c0_i32_0 : i32, i32
  }
  func.func @transform_3(%arg0: i32) -> (i32, i32) {
    %c0_i32 = arith.constant 0 : i32
    %c0_i32_0 = arith.constant 0 : i32
    return %arg0, %c0_i32 : i32, i32
  }
}

module attributes {stable_mosaic.version = 11 : i64} {
  func.func @_mlp_head_kernel(%arg0: i32, %arg1: memref<16x2048xf32, #tpu.memory_space<vmem>>, %arg2: memref<2048x512xf32, #tpu.memory_space<vmem>>, %arg3: memref<1x512xf32, #tpu.memory_space<vmem>>, %arg4: memref<512x128xf32, #tpu.memory_space<vmem>>, %arg5: memref<1x128xf32, #tpu.memory_space<vmem>>, %arg6: memref<16x128xf32, #tpu.memory_space<vmem>>) attributes {dimension_semantics = [#tpu.dimension_semantics<parallel>], iteration_bounds = array<i64: 1>, scalar_prefetch = 0 : i64, scratch_operands = 0 : i64, tpu.core_type = #tpu.core_type<tc>, window_params = [{transform_indices = @transform_0, window_bounds = array<i64: 16, 2048>}, {pipeline_mode = #tpu.pipeline_mode<synchronous>, transform_indices = @transform_1, window_bounds = array<i64: 2048, 512>}, {pipeline_mode = #tpu.pipeline_mode<synchronous>, transform_indices = @transform_2, window_bounds = array<i64: 1, 512>}, {pipeline_mode = #tpu.pipeline_mode<synchronous>, transform_indices = @transform_3, window_bounds = array<i64: 512, 128>}, {pipeline_mode = #tpu.pipeline_mode<synchronous>, transform_indices = @transform_4, window_bounds = array<i64: 1, 128>}, {transform_indices = @transform_5, window_bounds = array<i64: 16, 128>}]} {
    %c0 = arith.constant 0 : index
    %c0_0 = arith.constant 0 : index
    %0 = vector.load %arg1[%c0, %c0_0] : memref<16x2048xf32, #tpu.memory_space<vmem>>, vector<16x2048xf32>
    %c0_1 = arith.constant 0 : index
    %c0_2 = arith.constant 0 : index
    %1 = vector.load %arg2[%c0_1, %c0_2] : memref<2048x512xf32, #tpu.memory_space<vmem>>, vector<2048x512xf32>
    %cst = arith.constant dense<0.000000e+00> : vector<16x512xf32>
    %2 = tpu.matmul %0, %1, %cst {dimension_numbers = #tpu.dot_dimension_numbers<[1], [0], [0], [1], [0, 0, 1, 1], [], []>} : vector<16x2048xf32>, vector<2048x512xf32>, vector<16x512xf32> -> vector<16x512xf32>
    %c0_3 = arith.constant 0 : index
    %c0_4 = arith.constant 0 : index
    %3 = vector.load %arg3[%c0_3, %c0_4] : memref<1x512xf32, #tpu.memory_space<vmem>>, vector<1x512xf32>
    %4 = vector.broadcast %3 : vector<1x512xf32> to vector<16x512xf32>
    %5 = arith.addf %2, %4 : vector<16x512xf32>
    %cst_5 = arith.constant 0.000000e+00 : f32
    %6 = vector.broadcast %cst_5 : f32 to vector<16x512xf32>
    %7 = arith.maximumf %5, %6 : vector<16x512xf32>
    %c0_6 = arith.constant 0 : index
    %c0_7 = arith.constant 0 : index
    %8 = vector.load %arg4[%c0_6, %c0_7] : memref<512x128xf32, #tpu.memory_space<vmem>>, vector<512x128xf32>
    %cst_8 = arith.constant dense<0.000000e+00> : vector<16x128xf32>
    %9 = tpu.matmul %7, %8, %cst_8 {dimension_numbers = #tpu.dot_dimension_numbers<[1], [0], [0], [1], [0, 0, 1, 1], [], []>} : vector<16x512xf32>, vector<512x128xf32>, vector<16x128xf32> -> vector<16x128xf32>
    %c0_9 = arith.constant 0 : index
    %c0_10 = arith.constant 0 : index
    %10 = vector.load %arg5[%c0_9, %c0_10] : memref<1x128xf32, #tpu.memory_space<vmem>>, vector<1x128xf32>
    %11 = vector.broadcast %10 : vector<1x128xf32> to vector<16x128xf32>
    %12 = arith.addf %9, %11 : vector<16x128xf32>
    %cst_11 = arith.constant dense<0xFF800000> : vector<16xf32>
    %13 = vector.multi_reduction <maximumf>, %12, %cst_11 [1] : vector<16x128xf32> to vector<16xf32>
    %14 = vector.shape_cast %13 : vector<16xf32> to vector<16x1xf32>
    %15 = vector.broadcast %14 : vector<16x1xf32> to vector<16x128xf32>
    %16 = arith.subf %12, %15 : vector<16x128xf32>
    %17 = math.exp %16 : vector<16x128xf32>
    %cst_12 = arith.constant dense<0.000000e+00> : vector<16xf32>
    %18 = vector.multi_reduction <add>, %17, %cst_12 [1] : vector<16x128xf32> to vector<16xf32>
    %19 = vector.shape_cast %18 : vector<16xf32> to vector<16x1xf32>
    %20 = math.log %19 : vector<16x1xf32>
    %21 = vector.broadcast %20 : vector<16x1xf32> to vector<16x128xf32>
    %22 = arith.subf %16, %21 : vector<16x128xf32>
    %c0_13 = arith.constant 0 : index
    %c0_14 = arith.constant 0 : index
    %23 = vector.load %arg6[%c0_13, %c0_14] : memref<16x128xf32, #tpu.memory_space<vmem>>, vector<16x128xf32>
    tpu.vector_store %arg6[%c0_13, %c0_14], %22 {strides = array<i32>} : memref<16x128xf32, #tpu.memory_space<vmem>>, vector<16x128xf32>,
    return
  }
  func.func @transform_0(%arg0: i32) -> (i32, i32) {
    %c0_i32 = arith.constant 0 : i32
    %c0_i32_0 = arith.constant 0 : i32
    return %arg0, %c0_i32 : i32, i32
  }
  func.func @transform_1(%arg0: i32) -> (i32, i32) {
    %c0_i32 = arith.constant 0 : i32
    %c0_i32_0 = arith.constant 0 : i32
    %c0_i32_1 = arith.constant 0 : i32
    return %c0_i32, %c0_i32_0 : i32, i32
  }
  func.func @transform_2(%arg0: i32) -> (i32, i32) {
    %c0_i32 = arith.constant 0 : i32
    %c0_i32_0 = arith.constant 0 : i32
    %c0_i32_1 = arith.constant 0 : i32
    return %c0_i32, %c0_i32_0 : i32, i32
  }
  func.func @transform_3(%arg0: i32) -> (i32, i32) {
    %c0_i32 = arith.constant 0 : i32
    %c0_i32_0 = arith.constant 0 : i32
    %c0_i32_1 = arith.constant 0 : i32
    return %c0_i32, %c0_i32_0 : i32, i32
  }
  func.func @transform_4(%arg0: i32) -> (i32, i32) {
    %c0_i32 = arith.constant 0 : i32
    %c0_i32_0 = arith.constant 0 : i32
    %c0_i32_1 = arith.constant 0 : i32
    return %c0_i32, %c0_i32_0 : i32, i32
  }
  func.func @transform_5(%arg0: i32) -> (i32, i32) {
    %c0_i32 = arith.constant 0 : i32
    %c0_i32_0 = arith.constant 0 : i32
    return %arg0, %c0_i32 : i32, i32
  }
}

</mosaic_0001>

<llo_original>
// kernel: forward_pallas.3
$region0: #{forward_pallas.3}
  #allocation0 [shape = 'u32[]', space=smem, size = 0x4, offset = 0x4, fixed_abs, tag = 'smem constant byte address 0x4 - core index']
  #allocation1 [shape = 'u32[144,128]{1,0:T(1,128)}', space=vmem, size = 0x12000, scoped, tag = 'internal scratch']
  %s0 = inlined_call_operand.vmem [shape: f32[4,288,128], index: 0, kind: input, shape index: {}]
  %s1 = inlined_call_operand.vmem [shape: f32[128,128], index: 1, kind: input, shape index: {}]
  %s2 = inlined_call_operand.vmem [shape: f32[1,128], index: 2, kind: input, shape index: {}]
  %s3 = inlined_call_operand.vmem [shape: f32[288,128], index: 3, kind: output, shape index: {}]
  %s4 = sld [smem:[#allocation0]]
  $region22: #{forward_pallas.3} parent=0
    _
  %s6 = ssub.s32 1, %s4
  %s7 = scalar_select 0, %s6, %s4
  // Predicated region
  $region2: #{forward_pallas.3} parent=0 // pred_check
    _
  $region3: #{forward_pallas.3} parent=0 // pred_check_branch
    %9 = sbr.rel (0) target = $region5
  $region4: #{forward_pallas.3} parent=0 // pred_region
    _
  $region5: #{forward_pallas.3} parent=0 // pred_fallthru
    _
  // Predicated region
  $region6: #{forward_pallas.3} parent=0 // pred_check
    _
  $region7: #{forward_pallas.3} parent=0 // pred_check_branch
    %11 = sbr.rel (0) target = $region9
  $region8: #{forward_pallas.3} parent=0 // pred_region
    _
  $region9: #{forward_pallas.3} parent=0 // pred_fallthru
    _
  // Predicated region
  $region10: #{forward_pallas.3} parent=0 // pred_check
    _
  $region11: #{forward_pallas.3} parent=0 // pred_check_branch
    %13 = sbr.rel (0) target = $region13
  $region12: #{forward_pallas.3} parent=0 // pred_region
    _
  $region13: #{forward_pallas.3} parent=0 // pred_fallthru
    _
  %v14 = vld [vmem:[%s1] sm:$0xff]
  %v15 = vld [vmem:[%s1 + $0x8] sm:$0xff]
  %v16 = vld [vmem:[%s1 + $0x10] sm:$0xff]
  %v17 = vld [vmem:[%s1 + $0x18] sm:$0xff]
  %v18 = vld [vmem:[%s1 + $0x20] sm:$0xff]
  %v19 = vld [vmem:[%s1 + $0x28] sm:$0xff]
  %v20 = vld [vmem:[%s1 + $0x30] sm:$0xff]
  %v21 = vld [vmem:[%s1 + $0x38] sm:$0xff]
  %v22 = vld [vmem:[%s1 + $0x40] sm:$0xff]
  %v23 = vld [vmem:[%s1 + $0x48] sm:$0xff]
  %v24 = vld [vmem:[%s1 + $0x50] sm:$0xff]
  %v25 = vld [vmem:[%s1 + $0x58] sm:$0xff]
  %v26 = vld [vmem:[%s1 + $0x60] sm:$0xff]
  %v27 = vld [vmem:[%s1 + $0x68] sm:$0xff]
  %v28 = vld [vmem:[%s1 + $0x70] sm:$0xff]
  %v29 = vld [vmem:[%s1 + $0x78] sm:$0xff]
  %v30 = vld [vmem:[%s2] sm:$0x1]
  %v31 = vld [vmem:[%s0] sm:$0xff]
  %v32 = vld [vmem:[%s0 + $0x8] sm:$0xff]
  %v33 = vld [vmem:[%s0 + $0x10] sm:$0xff]
  %v34 = vld [vmem:[%s0 + $0x18] sm:$0xff]
  %v35 = vld [vmem:[%s0 + $0x20] sm:$0xff]
  %v36 = vld [vmem:[%s0 + $0x28] sm:$0xff]
  %v37 = vld [vmem:[%s0 + $0x30] sm:$0xff]
  %v38 = vld [vmem:[%s0 + $0x38] sm:$0xff]
  %v39 = vld [vmem:[%s0 + $0x40] sm:$0xff]
  %v40 = vld [vmem:[%s0 + $0x48] sm:$0xff]
  %v41 = vld [vmem:[%s0 + $0x50] sm:$0xff]
  %v42 = vld [vmem:[%s0 + $0x58] sm:$0xff]
  %v43 = vld [vmem:[%s0 + $0x60] sm:$0xff]
  %v44 = vld [vmem:[%s0 + $0x68] sm:$0xff]
  %v45 = vld [vmem:[%s0 + $0x70] sm:$0xff]
  %v46 = vld [vmem:[%s0 + $0x78] sm:$0xff]
  %v47 = vld [vmem:[%s0 + $0x80] sm:$0xff]
  %v48 = vld [vmem:[%s0 + $0x88] sm:$0xff]
  %v49 = vld [vmem:[%s0 + $0x90] sm:$0xff]
  %v50 = vld [vmem:[%s0 + $0x98] sm:$0xff]
  %v51 = vld [vmem:[%s0 + $0xa0] sm:$0xff]
  %v52 = vld [vmem:[%s0 + $0xa8] sm:$0xff]
  %v53 = vld [vmem:[%s0 + $0xb0] sm:$0xff]
  %v54 = vld [vmem:[%s0 + $0xb8] sm:$0xff]
  %v55 = vld [vmem:[%s0 + $0xc0] sm:$0xff]
  %v56 = vld [vmem:[%s0 + $0xc8] sm:$0xff]
  %v57 = vld [vmem:[%s0 + $0xd0] sm:$0xff]
  %v58 = vld [vmem:[%s0 + $0xd8] sm:$0xff]
  %v59 = vld [vmem:[%s0 + $0xe0] sm:$0xff]
  %v60 = vld [vmem:[%s0 + $0xe8] sm:$0xff]
  %v61 = vld [vmem:[%s0 + $0xf0] sm:$0xff]
  %v62 = vld [vmem:[%s0 + $0xf8] sm:$0xff]
  %v63 = vld [vmem:[%s0 + $0x100] sm:$0xff]
  %v64 = vld [vmem:[%s0 + $0x108] sm:$0xff]
  %v65 = vld [vmem:[%s0 + $0x110] sm:$0xff]
  %v66 = vld [vmem:[%s0 + $0x118] sm:$0xff]
  %v68 = vlaneseq
  %v69 = vshrl.u32 %v68, 7
  %v70 = vsub.s32 0, %v69
  %v71 = vrot.slane %v30, %v70
  %73 = vmatprep.subr.mxu0 0.0
  %74 = vmatpush1.msra.mxu0 %v14
  %75 = vmatprep.subr.mxu0 0.0
  %76 = vmatpush1.msra.mxu0 %v15
  %77 = vmatprep.subr.mxu0 0.0
  %78 = vmatpush1.msra.mxu0 %v16
  %79 = vmatprep.subr.mxu0 0.0
  %80 = vmatpush1.msra.mxu0 %v17
  %81 = vmatprep.subr.mxu0 0.0
  %82 = vmatpush1.msra.mxu0 %v18
  %83 = vmatprep.subr.mxu0 0.0
  %84 = vmatpush1.msra.mxu0 %v19
  %85 = vmatprep.subr.mxu0 0.0
  %86 = vmatpush1.msra.mxu0 %v20
  %87 = vmatprep.subr.mxu0 0.0
  %88 = vmatpush1.msra.mxu0 %v21
  %89 = vmatprep.subr.mxu0 0.0
  %90 = vmatpush1.msra.mxu0 %v22
  %91 = vmatprep.subr.mxu0 0.0
  %92 = vmatpush1.msra.mxu0 %v23
  %93 = vmatprep.subr.mxu0 0.0
  %94 = vmatpush1.msra.mxu0 %v24
  %95 = vmatprep.subr.mxu0 0.0
  %96 = vmatpush1.msra.mxu0 %v25
  %97 = vmatprep.subr.mxu0 0.0
  %98 = vmatpush1.msra.mxu0 %v26
  %99 = vmatprep.subr.mxu0 0.0
  %100 = vmatpush1.msra.mxu0 %v27
  %101 = vmatprep.subr.mxu0 0.0
  %102 = vmatpush1.msra.mxu0 %v28
  %103 = vmatprep.subr.mxu0 0.0
  %104 = vmatpush1.msra.mxu0 %v29
  %105 = vmatprep.subr.mxu0 0.0
  %106 = vmatpush1.msra.mxu0 0.0
  %107 = vmatprep.subr.mxu0 0.0
  %108 = vmatpush1.msra.mxu0 0.0
  %109 = vmatprep.subr.mxu0 0.0
  %110 = vmatpush1.msra.mxu0 0.0
  %111 = vmatprep.subr.mxu0 0.0
  %112 = vmatpush1.msra.mxu0 0.0
  %113 = vmatprep.subr.mxu0 0.0
  %114 = vmatpush1.msra.mxu0 0.0
  %115 = vmatprep.subr.mxu0 0.0
  %116 = vmatpush1.msra.mxu0 0.0
  %117 = vmatprep.subr.mxu0 0.0
  %118 = vmatpush1.msra.mxu0 0.0
  %119 = vmatprep.subr.mxu0 0.0
  %120 = vmatpush1.msra.mxu0 0.0
  %121 = vmatprep.subr.mxu0 0.0
  %122 = vmatpush1.msra.mxu0 0.0
  %123 = vmatprep.subr.mxu0 0.0
  %124 = vmatpush1.msra.mxu0 0.0
  %125 = vmatprep.subr.mxu0 0.0
  %126 = vmatpush1.msra.mxu0 0.0
  %127 = vmatprep.subr.mxu0 0.0
  %128 = vmatpush1.msra.mxu0 0.0
  %129 = vmatprep.subr.mxu0 0.0
  %130 = vmatpush1.msra.mxu0 0.0
  %131 = vmatprep.subr.mxu0 0.0
  %132 = vmatpush1.msra.mxu0 0.0
  %133 = vmatprep.subr.mxu0 0.0
  %134 = vmatpush1.msra.mxu0 0.0
  %135 = vmatprep.subr.mxu0 0.0
  %136 = vmatpush1.msra.mxu0 0.0
  %137 = vmatprep.mubr.f32.mxu0 0.0
  %138 = vmatmul.mubr.f32.gmra.mrb[0].mxu0 %v31
  %v139 = vpop.f32.mrb[0].mxu0
  %v140 = vadd.f32 %v71, %v139
  %v141 = vpop.f32.mrb[0].mxu0
  %142 = vmatprep.mubr.f32.mxu0 0.0
  %143 = vmatmul.mubr.f32.gmra.mrb[0].mxu0 %v32
  %v144 = vpop.f32.mrb[0].mxu0
  %v145 = vadd.f32 %v71, %v144
  %v146 = vpop.f32.mrb[0].mxu0
  %147 = vmatprep.mubr.f32.mxu0 0.0
  %148 = vmatmul.mubr.f32.gmra.mrb[0].mxu0 %v33
  %v149 = vpop.f32.mrb[0].mxu0
  %v150 = vadd.f32 %v71, %v149
  %v151 = vpop.f32.mrb[0].mxu0
  %152 = vmatprep.mubr.f32.mxu0 0.0
  %153 = vmatmul.mubr.f32.gmra.mrb[0].mxu0 %v34
  %v154 = vpop.f32.mrb[0].mxu0
  %v155 = vadd.f32 %v71, %v154
  %v156 = vpop.f32.mrb[0].mxu0
  %157 = vmatprep.mubr.f32.mxu0 0.0
  %158 = vmatmul.mubr.f32.gmra.mrb[0].mxu0 %v35
  %v159 = vpop.f32.mrb[0].mxu0
  %v160 = vadd.f32 %v71, %v159
  %v161 = vpop.f32.mrb[0].mxu0
  %162 = vmatprep.mubr.f32.mxu0 0.0
  %163 = vmatmul.mubr.f32.gmra.mrb[0].mxu0 %v36
  %v164 = vpop.f32.mrb[0].mxu0
  %v165 = vadd.f32 %v71, %v164
  %v166 = vpop.f32.mrb[0].mxu0
  %167 = vmatprep.mubr.f32.mxu0 0.0
  %168 = vmatmul.mubr.f32.gmra.mrb[0].mxu0 %v37
  %v169 = vpop.f32.mrb[0].mxu0
  %v170 = vadd.f32 %v71, %v169
  %v171 = vpop.f32.mrb[0].mxu0
  %172 = vmatprep.mubr.f32.mxu0 0.0
  %173 = vmatmul.mubr.f32.gmra.mrb[0].mxu0 %v38
  %v174 = vpop.f32.mrb[0].mxu0
  %v175 = vadd.f32 %v71, %v174
  %v176 = vpop.f32.mrb[0].mxu0
  %177 = vmatprep.mubr.f32.mxu0 0.0
  %178 = vmatmul.mubr.f32.gmra.mrb[0].mxu0 %v39
  %v179 = vpop.f32.mrb[0].mxu0
  %v180 = vadd.f32 %v71, %v179
  %v181 = vpop.f32.mrb[0].mxu0
  %182 = vmatprep.mubr.f32.mxu0 0.0
  %183 = vmatmul.mubr.f32.gmra.mrb[0].mxu0 %v40
  %v184 = vpop.f32.mrb[0].mxu0
  %v185 = vadd.f32 %v71, %v184
  %v186 = vpop.f32.mrb[0].mxu0
  %187 = vmatprep.mubr.f32.mxu0 0.0
  %188 = vmatmul.mubr.f32.gmra.mrb[0].mxu0 %v41
  %v189 = vpop.f32.mrb[0].mxu0
  %v190 = vadd.f32 %v71, %v189
  %v191 = vpop.f32.mrb[0].mxu0
  %192 = vmatprep.mubr.f32.mxu0 0.0
  %193 = vmatmul.mubr.f32.gmra.mrb[0].mxu0 %v42
  %v194 = vpop.f32.mrb[0].mxu0
  %v195 = vadd.f32 %v71, %v194
  %v196 = vpop.f32.mrb[0].mxu0
  %197 = vmatprep.mubr.f32.mxu0 0.0
  %198 = vmatmul.mubr.f32.gmra.mrb[0].mxu0 %v43
  %v199 = vpop.f32.mrb[0].mxu0
  %v200 = vadd.f32 %v71, %v199
  %v201 = vpop.f32.mrb[0].mxu0
  %202 = vmatprep.mubr.f32.mxu0 0.0
  %203 = vmatmul.mubr.f32.gmra.mrb[0].mxu0 %v44
  %v204 = vpop.f32.mrb[0].mxu0
  %v205 = vadd.f32 %v71, %v204
  %v206 = vpop.f32.mrb[0].mxu0
  %207 = vmatprep.mubr.f32.mxu0 0.0
  %208 = vmatmul.mubr.f32.gmra.mrb[0].mxu0 %v45
  %v209 = vpop.f32.mrb[0].mxu0
  %v210 = vadd.f32 %v71, %v209
  %v211 = vpop.f32.mrb[0].mxu0
  %212 = vmatprep.mubr.f32.mxu0 0.0
  %213 = vmatmul.mubr.f32.gmra.mrb[0].mxu0 %v46
  %v214 = vpop.f32.mrb[0].mxu0
  %v215 = vadd.f32 %v71, %v214
  %v216 = vpop.f32.mrb[0].mxu0
  %217 = vmatprep.mubr.f32.mxu0 0.0
  %218 = vmatmul.mubr.f32.gmra.mrb[0].mxu0 %v47
  %v219 = vpop.f32.mrb[0].mxu0
  %v220 = vadd.f32 %v71, %v219
  %v221 = vpop.f32.mrb[0].mxu0
  %222 = vmatprep.mubr.f32.mxu0 0.0
  %223 = vmatmul.mubr.f32.gmra.mrb[0].mxu0 %v48
  %v224 = vpop.f32.mrb[0].mxu0
  %v225 = vadd.f32 %v71, %v224
  %v226 = vpop.f32.mrb[0].mxu0
  %227 = vmatprep.mubr.f32.mxu0 0.0
  %228 = vmatmul.mubr.f32.gmra.mrb[0].mxu0 %v49
  %v229 = vpop.f32.mrb[0].mxu0
  %v230 = vadd.f32 %v71, %v229
  %v231 = vpop.f32.mrb[0].mxu0
  %232 = vmatprep.mubr.f32.mxu0 0.0
  %233 = vmatmul.mubr.f32.gmra.mrb[0].mxu0 %v50
  %v234 = vpop.f32.mrb[0].mxu0
  %v235 = vadd.f32 %v71, %v234
  %v236 = vpop.f32.mrb[0].mxu0
  %237 = vmatprep.mubr.f32.mxu0 0.0
  %238 = vmatmul.mubr.f32.gmra.mrb[0].mxu0 %v51
  %v239 = vpop.f32.mrb[0].mxu0
  %v240 = vadd.f32 %v71, %v239
  %v241 = vpop.f32.mrb[0].mxu0
  %242 = vmatprep.mubr.f32.mxu0 0.0
  %243 = vmatmul.mubr.f32.gmra.mrb[0].mxu0 %v52
  %v244 = vpop.f32.mrb[0].mxu0
  %v245 = vadd.f32 %v71, %v244
  %v246 = vpop.f32.mrb[0].mxu0
  %247 = vmatprep.mubr.f32.mxu0 0.0
  %248 = vmatmul.mubr.f32.gmra.mrb[0].mxu0 %v53
  %v249 = vpop.f32.mrb[0].mxu0
  %v250 = vadd.f32 %v71, %v249
  %v251 = vpop.f32.mrb[0].mxu0
  %252 = vmatprep.mubr.f32.mxu0 0.0
  %253 = vmatmul.mubr.f32.gmra.mrb[0].mxu0 %v54
  %v254 = vpop.f32.mrb[0].mxu0
  %v255 = vadd.f32 %v71, %v254
  %v256 = vpop.f32.mrb[0].mxu0
  %257 = vmatprep.mubr.f32.mxu0 0.0
  %258 = vmatmul.mubr.f32.gmra.mrb[0].mxu0 %v55
  %v259 = vpop.f32.mrb[0].mxu0
  %v260 = vadd.f32 %v71, %v259
  %v261 = vpop.f32.mrb[0].mxu0
  %262 = vmatprep.mubr.f32.mxu0 0.0
  %263 = vmatmul.mubr.f32.gmra.mrb[0].mxu0 %v56
  %v264 = vpop.f32.mrb[0].mxu0
  %v265 = vadd.f32 %v71, %v264
  %v266 = vpop.f32.mrb[0].mxu0
  %267 = vmatprep.mubr.f32.mxu0 0.0
  %268 = vmatmul.mubr.f32.gmra.mrb[0].mxu0 %v57
  %v269 = vpop.f32.mrb[0].mxu0
  %v270 = vadd.f32 %v71, %v269
  %v271 = vpop.f32.mrb[0].mxu0
  %272 = vmatprep.mubr.f32.mxu0 0.0
  %273 = vmatmul.mubr.f32.gmra.mrb[0].mxu0 %v58
  %v274 = vpop.f32.mrb[0].mxu0
  %v275 = vadd.f32 %v71, %v274
  %v276 = vpop.f32.mrb[0].mxu0
  %277 = vmatprep.mubr.f32.mxu0 0.0
  %278 = vmatmul.mubr.f32.gmra.mrb[0].mxu0 %v59
  %v279 = vpop.f32.mrb[0].mxu0
  %v280 = vadd.f32 %v71, %v279
  %v281 = vpop.f32.mrb[0].mxu0
  %282 = vmatprep.mubr.f32.mxu0 0.0
  %283 = vmatmul.mubr.f32.gmra.mrb[0].mxu0 %v60
  %v284 = vpop.f32.mrb[0].mxu0
  %v285 = vadd.f32 %v71, %v284
  %v286 = vpop.f32.mrb[0].mxu0
  %287 = vmatprep.mubr.f32.mxu0 0.0
  %288 = vmatmul.mubr.f32.gmra.mrb[0].mxu0 %v61
  %v289 = vpop.f32.mrb[0].mxu0
  %v290 = vadd.f32 %v71, %v289
  %v291 = vpop.f32.mrb[0].mxu0
  %292 = vmatprep.mubr.f32.mxu0 0.0
  %293 = vmatmul.mubr.f32.gmra.mrb[0].mxu0 %v62
  %v294 = vpop.f32.mrb[0].mxu0
  %v295 = vadd.f32 %v71, %v294
  %v296 = vpop.f32.mrb[0].mxu0
  %297 = vmatprep.mubr.f32.mxu0 0.0
  %298 = vmatmul.mubr.f32.gmra.mrb[0].mxu0 %v63
  %v299 = vpop.f32.mrb[0].mxu0
  %v300 = vadd.f32 %v71, %v299
  %v301 = vpop.f32.mrb[0].mxu0
  %302 = vmatprep.mubr.f32.mxu0 0.0
  %303 = vmatmul.mubr.f32.gmra.mrb[0].mxu0 %v64
  %v304 = vpop.f32.mrb[0].mxu0
  %v305 = vadd.f32 %v71, %v304
  %v306 = vpop.f32.mrb[0].mxu0
  %307 = vmatprep.mubr.f32.mxu0 0.0
  %308 = vmatmul.mubr.f32.gmra.mrb[0].mxu0 %v65
  %v309 = vpop.f32.mrb[0].mxu0
  %v310 = vadd.f32 %v71, %v309
  %v311 = vpop.f32.mrb[0].mxu0
  %312 = vmatprep.mubr.f32.mxu0 0.0
  %313 = vmatmul.mubr.f32.gmra.mrb[0].mxu0 %v66
  %v314 = vpop.f32.mrb[0].mxu0
  %v315 = vadd.f32 %v71, %v314
  %v316 = vpop.f32.mrb[0].mxu0
  %317 = vdwg.mxu0
  %v318 = vmax.f32 %v140, 0.0
  %v319 = vmax.f32 %v145, 0.0
  %v320 = vmax.f32 %v150, 0.0
  %v321 = vmax.f32 %v155, 0.0
  %v322 = vmax.f32 %v160, 0.0
  %v323 = vmax.f32 %v165, 0.0
  %v324 = vmax.f32 %v170, 0.0
  %v325 = vmax.f32 %v175, 0.0
  %v326 = vmax.f32 %v180, 0.0
  %v327 = vmax.f32 %v185, 0.0
  %v328 = vmax.f32 %v190, 0.0
  %v329 = vmax.f32 %v195, 0.0
  %v330 = vmax.f32 %v200, 0.0
  %v331 = vmax.f32 %v205, 0.0
  %v332 = vmax.f32 %v210, 0.0
  %v333 = vmax.f32 %v215, 0.0
  %v334 = vmax.f32 %v220, 0.0
  %v335 = vmax.f32 %v225, 0.0
  %v336 = vmax.f32 %v230, 0.0
  %v337 = vmax.f32 %v235, 0.0
  %v338 = vmax.f32 %v240, 0.0
  %v339 = vmax.f32 %v245, 0.0
  %v340 = vmax.f32 %v250, 0.0
  %v341 = vmax.f32 %v255, 0.0
  %v342 = vmax.f32 %v260, 0.0
  %v343 = vmax.f32 %v265, 0.0
  %v344 = vmax.f32 %v270, 0.0
  %v345 = vmax.f32 %v275, 0.0
  %v346 = vmax.f32 %v280, 0.0
  %v347 = vmax.f32 %v285, 0.0
  %v348 = vmax.f32 %v290, 0.0
  %v349 = vmax.f32 %v295, 0.0
  %v350 = vmax.f32 %v300, 0.0
  %v351 = vmax.f32 %v305, 0.0
  %v352 = vmax.f32 %v310, 0.0
  %v353 = vmax.f32 %v315, 0.0
  %s354 = scalar_lea.vmem %s0, 288
  %v355 = vld [vmem:[%s354] sm:$0xff]
  %v356 = vld [vmem:[%s354 + $0x8] sm:$0xff]
  %v357 = vld [vmem:[%s354 + $0x10] sm:$0xff]
  %v358 = vld [vmem:[%s354 + $0x18] sm:$0xff]
  %v359 = vld [vmem:[%s354 + $0x20] sm:$0xff]
  %v360 = vld [vmem:[%s354 + $0x28] sm:$0xff]
  %v361 = vld [vmem:[%s354 + $0x30] sm:$0xff]
  %v362 = vld [vmem:[%s354 + $0x38] sm:$0xff]
  %v363 = vld [vmem:[%s354 + $0x40] sm:$0xff]
  %v364 = vld [vmem:[%s354 + $0x48] sm:$0xff]
  %v365 = vld [vmem:[%s354 + $0x50] sm:$0xff]
  %v366 = vld [vmem:[%s354 + $0x58] sm:$0xff]
  %v367 = vld [vmem:[%s354 + $0x60] sm:$0xff]
  %v368 = vld [vmem:[%s354 + $0x68] sm:$0xff]
  %v369 = vld [vmem:[%s354 + $0x70] sm:$0xff]
  %v370 = vld [vmem:[%s354 + $0x78] sm:$0xff]
  %v371 = vld [vmem:[%s354 + $0x80] sm:$0xff]
  %v372 = vld [vmem:[%s354 + $0x88] sm:$0xff]
  %v373 = vld [vmem:[%s354 + $0x90] sm:$0xff]
  %v374 = vld [vmem:[%s354 + $0x98] sm:$0xff]
  %v375 = vld [vmem:[%s354 + $0xa0] sm:$0xff]
  %v376 = vld [vmem:[%s354 + $0xa8] sm:$0xff]
  %v377 = vld [vmem:[%s354 + $0xb0] sm:$0xff]
  %v378 = vld [vmem:[%s354 + $0xb8] sm:$0xff]
  %v379 = vld [vmem:[%s354 + $0xc0] sm:$0xff]
  %v380 = vld [vmem:[%s354 + $0xc8] sm:$0xff]
  %v381 = vld [vmem:[%s354 + $0xd0] sm:$0xff]
  %v382 = vld [vmem:[%s354 + $0xd8] sm:$0xff]
  %v383 = vld [vmem:[%s354 + $0xe0] sm:$0xff]
  %v384 = vld [vmem:[%s354 + $0xe8] sm:$0xff]
  %v385 = vld [vmem:[%s354 + $0xf0] sm:$0xff]
  %v386 = vld [vmem:[%s354 + $0xf8] sm:$0xff]
  %v387 = vld [vmem:[%s354 + $0x100] sm:$0xff]
  %v388 = vld [vmem:[%s354 + $0x108] sm:$0xff]
  %v389 = vld [vmem:[%s354 + $0x110] sm:$0xff]
  %v390 = vld [vmem:[%s354 + $0x118] sm:$0xff]
  %391 = vmatprep.subr.mxu0 0.0
  %392 = vmatpush1.msra.mxu0 %v14
  %393 = vmatprep.subr.mxu0 0.0
  %394 = vmatpush1.msra.mxu0 %v15
  %395 = vmatprep.subr.mxu0 0.0
  %396 = vmatpush1.msra.mxu0 %v16
  %397 = vmatprep.subr.mxu0 0.0
  %398 = vmatpush1.msra.mxu0 %v17
  %399 = vmatprep.subr.mxu0 0.0
  %400 = vmatpush1.msra.mxu0 %v18
  %401 = vmatprep.subr.mxu0 0.0
  %402 = vmatpush1.msra.mxu0 %v19
  %403 = vmatprep.subr.mxu0 0.0
  %404 = vmatpush1.msra.mxu0 %v20
  %405 = vmatprep.subr.mxu0 0.0
  %406 = vmatpush1.msra.mxu0 %v21
  %407 = vmatprep.subr.mxu0 0.0
  %408 = vmatpush1.msra.mxu0 %v22
  %409 = vmatprep.subr.mxu0 0.0
  %410 = vmatpush1.msra.mxu0 %v23
  %411 = vmatprep.subr.mxu0 0.0
  %412 = vmatpush1.msra.mxu0 %v24
  %413 = vmatprep.subr.mxu0 0.0
  %414 = vmatpush1.msra.mxu0 %v25
  %415 = vmatprep.subr.mxu0 0.0
  %416 = vmatpush1.msra.mxu0 %v26
  %417 = vmatprep.subr.mxu0 0.0
  %418 = vmatpush1.msra.mxu0 %v27
  %419 = vmatprep.subr.mxu0 0.0
  %420 = vmatpush1.msra.mxu0 %v28
  %421 = vmatprep.subr.mxu0 0.0
  %422 = vmatpush1.msra.mxu0 %v29
  %423 = vmatprep.subr.mxu0 0.0
  %424 = vmatpush1.msra.mxu0 0.0
  %425 = vmatprep.subr.mxu0 0.0
  %426 = vmatpush1.msra.mxu0 0.0
  %427 = vmatprep.subr.mxu0 0.0
  %428 = vmatpush1.msra.mxu0 0.0
  %429 = vmatprep.subr.mxu0 0.0
  %430 = vmatpush1.msra.mxu0 0.0
  %431 = vmatprep.subr.mxu0 0.0
  %432 = vmatpush1.msra.mxu0 0.0
  %433 = vmatprep.subr.mxu0 0.0
  %434 = vmatpush1.msra.mxu0 0.0
  %435 = vmatprep.subr.mxu0 0.0
  %436 = vmatpush1.msra.mxu0 0.0
  %437 = vmatprep.subr.mxu0 0.0
  %438 = vmatpush1.msra.mxu0 0.0
  %439 = vmatprep.subr.mxu0 0.0
  %440 = vmatpush1.msra.mxu0 0.0
  %441 = vmatprep.subr.mxu0 0.0
  %442 = vmatpush1.msra.mxu0 0.0
  %443 = vmatprep.subr.mxu0 0.0
  %444 = vmatpush1.msra.mxu0 0.0
  %445 = vmatprep.subr.mxu0 0.0
  %446 = vmatpush1.msra.mxu0 0.0
  %447 = vmatprep.subr.mxu0 0.0
  %448 = vmatpush1.msra.mxu0 0.0
  %449 = vmatprep.subr.mxu0 0.0
  %450 = vmatpush1.msra.mxu0 0.0
  %451 = vmatprep.subr.mxu0 0.0
  %452 = vmatpush1.msra.mxu0 0.0
  %453 = vmatprep.subr.mxu0 0.0
  %454 = vmatpush1.msra.mxu0 0.0
  %455 = vmatprep.mubr.f32.mxu0 0.0
  %456 = vmatmul.mubr.f32.gmra.mrb[0].mxu0 %v355
  %v457 = vpop.f32.mrb[0].mxu0
  %v458 = vadd.f32 %v71, %v457
  %v459 = vpop.f32.mrb[0].mxu0
  %460 = vmatprep.mubr.f32.mxu0 0.0
  %461 = vmatmul.mubr.f32.gmra.mrb[0].mxu0 %v356
  %v462 = vpop.f32.mrb[0].mxu0
  %v463 = vadd.f32 %v71, %v462
  %v464 = vpop.f32.mrb[0].mxu0
  %465 = vmatprep.mubr.f32.mxu0 0.0
  %466 = vmatmul.mubr.f32.gmra.mrb[0].mxu0 %v357
  %v467 = vpop.f32.mrb[0].mxu0
  %v468 = vadd.f32 %v71, %v467
  %v469 = vpop.f32.mrb[0].mxu0
  %470 = vmatprep.mubr.f32.mxu0 0.0
  %471 = vmatmul.mubr.f32.gmra.mrb[0].mxu0 %v358
  %v472 = vpop.f32.mrb[0].mxu0
  %v473 = vadd.f32 %v71, %v472
  %v474 = vpop.f32.mrb[0].mxu0
  %475 = vmatprep.mubr.f32.mxu0 0.0
  %476 = vmatmul.mubr.f32.gmra.mrb[0].mxu0 %v359
  %v477 = vpop.f32.mrb[0].mxu0
  %v478 = vadd.f32 %v71, %v477
  %v479 = vpop.f32.mrb[0].mxu0
  %480 = vmatprep.mubr.f32.mxu0 0.0
  %481 = vmatmul.mubr.f32.gmra.mrb[0].mxu0 %v360
  %v482 = vpop.f32.mrb[0].mxu0
  %v483 = vadd.f32 %v71, %v482
  %v484 = vpop.f32.mrb[0].mxu0
  %485 = vmatprep.mubr.f32.mxu0 0.0
  %486 = vmatmul.mubr.f32.gmra.mrb[0].mxu0 %v361
  %v487 = vpop.f32.mrb[0].mxu0
  %v488 = vadd.f32 %v71, %v487
  %v489 = vpop.f32.mrb[0].mxu0
  %490 = vmatprep.mubr.f32.mxu0 0.0
  %491 = vmatmul.mubr.f32.gmra.mrb[0].mxu0 %v362
  %v492 = vpop.f32.mrb[0].mxu0
  %v493 = vadd.f32 %v71, %v492
  %v494 = vpop.f32.mrb[0].mxu0
  %495 = vmatprep.mubr.f32.mxu0 0.0
  %496 = vmatmul.mubr.f32.gmra.mrb[0].mxu0 %v363
  %v497 = vpop.f32.mrb[0].mxu0
  %v498 = vadd.f32 %v71, %v497
  %v499 = vpop.f32.mrb[0].mxu0
  %500 = vmatprep.mubr.f32.mxu0 0.0
  %501 = vmatmul.mubr.f32.gmra.mrb[0].mxu0 %v364
  %v502 = vpop.f32.mrb[0].mxu0
  %v503 = vadd.f32 %v71, %v502
  %v504 = vpop.f32.mrb[0].mxu0
  %505 = vmatprep.mubr.f32.mxu0 0.0
  %506 = vmatmul.mubr.f32.gmra.mrb[0].mxu0 %v365
  %v507 = vpop.f32.mrb[0].mxu0
  %v508 = vadd.f32 %v71, %v507
  %v509 = vpop.f32.mrb[0].mxu0
  %510 = vmatprep.mubr.f32.mxu0 0.0
  %511 = vmatmul.mubr.f32.gmra.mrb[0].mxu0 %v366
  %v512 = vpop.f32.mrb[0].mxu0
  %v513 = vadd.f32 %v71, %v512
  %v514 = vpop.f32.mrb[0].mxu0
  %515 = vmatprep.mubr.f32.mxu0 0.0
  %516 = vmatmul.mubr.f32.gmra.mrb[0].mxu0 %v367
  %v517 = vpop.f32.mrb[0].mxu0
  %v518 = vadd.f32 %v71, %v517
  %v519 = vpop.f32.mrb[0].mxu0
  %520 = vmatprep.mubr.f32.mxu0 0.0
  %521 = vmatmul.mubr.f32.gmra.mrb[0].mxu0 %v368
  %v522 = vpop.f32.mrb[0].mxu0
  %v523 = vadd.f32 %v71, %v522
  %v524 = vpop.f32.mrb[0].mxu0
  %525 = vmatprep.mubr.f32.mxu0 0.0
  %526 = vmatmul.mubr.f32.gmra.mrb[0].mxu0 %v369
  %v527 = vpop.f32.mrb[0].mxu0
  %v528 = vadd.f32 %v71, %v527
  %v529 = vpop.f32.mrb[0].mxu0
  %530 = vmatprep.mubr.f32.mxu0 0.0
  %531 = vmatmul.mubr.f32.gmra.mrb[0].mxu0 %v370
  %v532 = vpop.f32.mrb[0].mxu0
  %v533 = vadd.f32 %v71, %v532
  %v534 = vpop.f32.mrb[0].mxu0
  %535 = vmatprep.mubr.f32.mxu0 0.0
  %536 = vmatmul.mubr.f32.gmra.mrb[0].mxu0 %v371
  %v537 = vpop.f32.mrb[0].mxu0
  %v538 = vadd.f32 %v71, %v537
  %v539 = vpop.f32.mrb[0].mxu0
  %540 = vmatprep.mubr.f32.mxu0 0.0
  %541 = vmatmul.mubr.f32.gmra.mrb[0].mxu0 %v372
  %v542 = vpop.f32.mrb[0].mxu0
  %v543 = vadd.f32 %v71, %v542
  %v544 = vpop.f32.mrb[0].mxu0
  %545 = vmatprep.mubr.f32.mxu0 0.0
  %546 = vmatmul.mubr.f32.gmra.mrb[0].mxu0 %v373
  %v547 = vpop.f32.mrb[0].mxu0
  %v548 = vadd.f32 %v71, %v547
  %v549 = vpop.f32.mrb[0].mxu0
  %550 = vmatprep.mubr.f32.mxu0 0.0
  %551 = vmatmul.mubr.f32.gmra.mrb[0].mxu0 %v374
  %v552 = vpop.f32.mrb[0].mxu0
  %v553 = vadd.f32 %v71, %v552
  %v554 = vpop.f32.mrb[0].mxu0
  %555 = vmatprep.mubr.f32.mxu0 0.0
  %556 = vmatmul.mubr.f32.gmra.mrb[0].mxu0 %v375
  %v557 = vpop.f32.mrb[0].mxu0
  %v558 = vadd.f32 %v71, %v557
  %v559 = vpop.f32.mrb[0].mxu0
  %560 = vmatprep.mubr.f32.mxu0 0.0
  %561 = vmatmul.mubr.f32.gmra.mrb[0].mxu0 %v376
  %v562 = vpop.f32.mrb[0].mxu0
  %v563 = vadd.f32 %v71, %v562
  %v564 = vpop.f32.mrb[0].mxu0
  %565 = vmatprep.mubr.f32.mxu0 0.0
  %566 = vmatmul.mubr.f32.gmra.mrb[0].mxu0 %v377
  %v567 = vpop.f32.mrb[0].mxu0
  %v568 = vadd.f32 %v71, %v567
  %v569 = vpop.f32.mrb[0].mxu0
  %570 = vmatprep.mubr.f32.mxu0 0.0
  %571 = vmatmul.mubr.f32.gmra.mrb[0].mxu0 %v378
  %v572 = vpop.f32.mrb[0].mxu0
  %v573 = vadd.f32 %v71, %v572
  %v574 = vpop.f32.mrb[0].mxu0
  %575 = vmatprep.mubr.f32.mxu0 0.0
  %576 = vmatmul.mubr.f32.gmra.mrb[0].mxu0 %v379
  %v577 = vpop.f32.mrb[0].mxu0
  %v578 = vadd.f32 %v71, %v577
  %v579 = vpop.f32.mrb[0].mxu0
  %580 = vmatprep.mubr.f32.mxu0 0.0
  %581 = vmatmul.mubr.f32.gmra.mrb[0].mxu0 %v380
  %v582 = vpop.f32.mrb[0].mxu0
  %v583 = vadd.f32 %v71, %v582
  %v584 = vpop.f32.mrb[0].mxu0
  %585 = vmatprep.mubr.f32.mxu0 0.0
  %586 = vmatmul.mubr.f32.gmra.mrb[0].mxu0 %v381
  %v587 = vpop.f32.mrb[0].mxu0
  %v588 = vadd.f32 %v71, %v587
  %v589 = vpop.f32.mrb[0].mxu0
  %590 = vmatprep.mubr.f32.mxu0 0.0
  %591 = vmatmul.mubr.f32.gmra.mrb[0].mxu0 %v382
  %v592 = vpop.f32.mrb[0].mxu0
  %v593 = vadd.f32 %v71, %v592
  %v594 = vpop.f32.mrb[0].mxu0
  %595 = vmatprep.mubr.f32.mxu0 0.0
  %596 = vmatmul.mubr.f32.gmra.mrb[0].mxu0 %v383
  %v597 = vpop.f32.mrb[0].mxu0
  %v598 = vadd.f32 %v71, %v597
  %v599 = vpop.f32.mrb[0].mxu0
  %600 = vmatprep.mubr.f32.mxu0 0.0
  %601 = vmatmul.mubr.f32.gmra.mrb[0].mxu0 %v384
  %v602 = vpop.f32.mrb[0].mxu0
  %v603 = vadd.f32 %v71, %v602
  %v604 = vpop.f32.mrb[0].mxu0
  %605 = vmatprep.mubr.f32.mxu0 0.0
  %606 = vmatmul.mubr.f32.gmra.mrb[0].mxu0 %v385
  %v607 = vpop.f32.mrb[0].mxu0
  %v608 = vadd.f32 %v71, %v607
  %v609 = vpop.f32.mrb[0].mxu0
  %610 = vmatprep.mubr.f32.mxu0 0.0
  %611 = vmatmul.mubr.f32.gmra.mrb[0].mxu0 %v386
  %v612 = vpop.f32.mrb[0].mxu0
  %v613 = vadd.f32 %v71, %v612
  %v614 = vpop.f32.mrb[0].mxu0
  %615 = vmatprep.mubr.f32.mxu0 0.0
  %616 = vmatmul.mubr.f32.gmra.mrb[0].mxu0 %v387
  %v617 = vpop.f32.mrb[0].mxu0
  %v618 = vadd.f32 %v71, %v617
  %v619 = vpop.f32.mrb[0].mxu0
  %620 = vmatprep.mubr.f32.mxu0 0.0
  %621 = vmatmul.mubr.f32.gmra.mrb[0].mxu0 %v388
  %v622 = vpop.f32.mrb[0].mxu0
  %v623 = vadd.f32 %v71, %v622
  %v624 = vpop.f32.mrb[0].mxu0
  %625 = vmatprep.mubr.f32.mxu0 0.0
  %626 = vmatmul.mubr.f32.gmra.mrb[0].mxu0 %v389
  %v627 = vpop.f32.mrb[0].mxu0
  %v628 = vadd.f32 %v71, %v627
  %v629 = vpop.f32.mrb[0].mxu0
  %630 = vmatprep.mubr.f32.mxu0 0.0
  %631 = vmatmul.mubr.f32.gmra.mrb[0].mxu0 %v390
  %v632 = vpop.f32.mrb[0].mxu0
  %v633 = vadd.f32 %v71, %v632
  %v634 = vpop.f32.mrb[0].mxu0
  %635 = vdwg.mxu0
  %v636 = vmax.f32 %v458, 0.0
  %v637 = vmax.f32 %v463, 0.0
  %v638 = vmax.f32 %v468, 0.0
  %v639 = vmax.f32 %v473, 0.0
  %v640 = vmax.f32 %v478, 0.0
  %v641 = vmax.f32 %v483, 0.0
  %v642 = vmax.f32 %v488, 0.0
  %v643 = vmax.f32 %v493, 0.0
  %v644 = vmax.f32 %v498, 0.0
  %v645 = vmax.f32 %v503, 0.0
  %v646 = vmax.f32 %v508, 0.0
  %v647 = vmax.f32 %v513, 0.0
  %v648 = vmax.f32 %v518, 0.0
  %v649 = vmax.f32 %v523, 0.0
  %v650 = vmax.f32 %v528, 0.0
  %v651 = vmax.f32 %v533, 0.0
  %v652 = vmax.f32 %v538, 0.0
  %v653 = vmax.f32 %v543, 0.0
  %v654 = vmax.f32 %v548, 0.0
  %v655 = vmax.f32 %v553, 0.0
  %v656 = vmax.f32 %v558, 0.0
  %v657 = vmax.f32 %v563, 0.0
  %v658 = vmax.f32 %v568, 0.0
  %v659 = vmax.f32 %v573, 0.0
  %v660 = vmax.f32 %v578, 0.0
  %v661 = vmax.f32 %v583, 0.0
  %v662 = vmax.f32 %v588, 0.0
  %v663 = vmax.f32 %v593, 0.0
  %v664 = vmax.f32 %v598, 0.0
  %v665 = vmax.f32 %v603, 0.0
  %v666 = vmax.f32 %v608, 0.0
  %v667 = vmax.f32 %v613, 0.0
  %v668 = vmax.f32 %v618, 0.0
  %v669 = vmax.f32 %v623, 0.0
  %v670 = vmax.f32 %v628, 0.0
  %v671 = vmax.f32 %v633, 0.0
  %v672 = vmax.f32 %v318, %v636
  %v673 = vmax.f32 %v319, %v637
  %v674 = vmax.f32 %v320, %v638
  %v675 = vmax.f32 %v321, %v639
  %v676 = vmax.f32 %v322, %v640
  %v677 = vmax.f32 %v323, %v641
  %v678 = vmax.f32 %v324, %v642
  %v679 = vmax.f32 %v325, %v643
  %v680 = vmax.f32 %v326, %v644
  %v681 = vmax.f32 %v327, %v645
  %v682 = vmax.f32 %v328, %v646
  %v683 = vmax.f32 %v329, %v647
  %v684 = vmax.f32 %v330, %v648
  %v685 = vmax.f32 %v331, %v649
  %v686 = vmax.f32 %v332, %v650
  %v687 = vmax.f32 %v333, %v651
  %v688 = vmax.f32 %v334, %v652
  %v689 = vmax.f32 %v335, %v653
  %v690 = vmax.f32 %v336, %v654
  %v691 = vmax.f32 %v337, %v655
  %v692 = vmax.f32 %v338, %v656
  %v693 = vmax.f32 %v339, %v657
  %v694 = vmax.f32 %v340, %v658
  %v695 = vmax.f32 %v341, %v659
  %v696 = vmax.f32 %v342, %v660
  %v697 = vmax.f32 %v343, %v661
  %v698 = vmax.f32 %v344, %v662
  %v699 = vmax.f32 %v345, %v663
  %v700 = vmax.f32 %v346, %v664
  %v701 = vmax.f32 %v347, %v665
  %v702 = vmax.f32 %v348, %v666
  %v703 = vmax.f32 %v349, %v667
  %v704 = vmax.f32 %v350, %v668
  %v705 = vmax.f32 %v351, %v669
  %v706 = vmax.f32 %v352, %v670
  %v707 = vmax.f32 %v353, %v671
  %s708 = scalar_lea.vmem %s0, 576
  %v709 = vld [vmem:[%s708] sm:$0xff]
  %v710 = vld [vmem:[%s708 + $0x8] sm:$0xff]
  %v711 = vld [vmem:[%s708 + $0x10] sm:$0xff]
  %v712 = vld [vmem:[%s708 + $0x18] sm:$0xff]
  %v713 = vld [vmem:[%s708 + $0x20] sm:$0xff]
  %v714 = vld [vmem:[%s708 + $0x28] sm:$0xff]
  %v715 = vld [vmem:[%s708 + $0x30] sm:$0xff]
  %v716 = vld [vmem:[%s708 + $0x38] sm:$0xff]
  %v717 = vld [vmem:[%s708 + $0x40] sm:$0xff]
  %v718 = vld [vmem:[%s708 + $0x48] sm:$0xff]
  %v719 = vld [vmem:[%s708 + $0x50] sm:$0xff]
  %v720 = vld [vmem:[%s708 + $0x58] sm:$0xff]
  %v721 = vld [vmem:[%s708 + $0x60] sm:$0xff]
  %v722 = vld [vmem:[%s708 + $0x68] sm:$0xff]
  %v723 = vld [vmem:[%s708 + $0x70] sm:$0xff]
  %v724 = vld [vmem:[%s708 + $0x78] sm:$0xff]
  %v725 = vld [vmem:[%s708 + $0x80] sm:$0xff]
  %v726 = vld [vmem:[%s708 + $0x88] sm:$0xff]
  %v727 = vld [vmem:[%s708 + $0x90] sm:$0xff]
  %v728 = vld [vmem:[%s708 + $0x98] sm:$0xff]
  %v729 = vld [vmem:[%s708 + $0xa0] sm:$0xff]
  %v730 = vld [vmem:[%s708 + $0xa8] sm:$0xff]
  %v731 = vld [vmem:[%s708 + $0xb0] sm:$0xff]
  %v732 = vld [vmem:[%s708 + $0xb8] sm:$0xff]
  %v733 = vld [vmem:[%s708 + $0xc0] sm:$0xff]
  %v734 = vld [vmem:[%s708 + $0xc8] sm:$0xff]
  %v735 = vld [vmem:[%s708 + $0xd0] sm:$0xff]
  %v736 = vld [vmem:[%s708 + $0xd8] sm:$0xff]
  %v737 = vld [vmem:[%s708 + $0xe0] sm:$0xff]
  %v738 = vld [vmem:[%s708 + $0xe8] sm:$0xff]
  %v739 = vld [vmem:[%s708 + $0xf0] sm:$0xff]
  %v740 = vld [vmem:[%s708 + $0xf8] sm:$0xff]
  %v741 = vld [vmem:[%s708 + $0x100] sm:$0xff]
  %v742 = vld [vmem:[%s708 + $0x108] sm:$0xff]
  %v743 = vld [vmem:[%s708 + $0x110] sm:$0xff]
  %v744 = vld [vmem:[%s708 + $0x118] sm:$0xff]
  %745 = vmatprep.subr.mxu0 0.0
  %746 = vmatpush1.msra.mxu0 %v14
  %747 = vmatprep.subr.mxu0 0.0
  %748 = vmatpush1.msra.mxu0 %v15
  %749 = vmatprep.subr.mxu0 0.0
  %750 = vmatpush1.msra.mxu0 %v16
  %751 = vmatprep.subr.mxu0 0.0
  %752 = vmatpush1.msra.mxu0 %v17
  %753 = vmatprep.subr.mxu0 0.0
  %754 = vmatpush1.msra.mxu0 %v18
  %755 = vmatprep.subr.mxu0 0.0
  %756 = vmatpush1.msra.mxu0 %v19
  %757 = vmatprep.subr.mxu0 0.0
  %758 = vmatpush1.msra.mxu0 %v20
  %759 = vmatprep.subr.mxu0 0.0
  %760 = vmatpush1.msra.mxu0 %v21
  %761 = vmatprep.subr.mxu0 0.0
  %762 = vmatpush1.msra.mxu0 %v22
  %763 = vmatprep.subr.mxu0 0.0
  %764 = vmatpush1.msra.mxu0 %v23
  %765 = vmatprep.subr.mxu0 0.0
  %766 = vmatpush1.msra.mxu0 %v24
  %767 = vmatprep.subr.mxu0 0.0
  %768 = vmatpush1.msra.mxu0 %v25
  %769 = vmatprep.subr.mxu0 0.0
  %770 = vmatpush1.msra.mxu0 %v26
  %771 = vmatprep.subr.mxu0 0.0
  %772 = vmatpush1.msra.mxu0 %v27
  %773 = vmatprep.subr.mxu0 0.0
  %774 = vmatpush1.msra.mxu0 %v28
  %775 = vmatprep.subr.mxu0 0.0
  %776 = vmatpush1.msra.mxu0 %v29
  %777 = vmatprep.subr.mxu0 0.0
  %778 = vmatpush1.msra.mxu0 0.0
  %779 = vmatprep.subr.mxu0 0.0
  %780 = vmatpush1.msra.mxu0 0.0
  %781 = vmatprep.subr.mxu0 0.0
  %782 = vmatpush1.msra.mxu0 0.0
  %783 = vmatprep.subr.mxu0 0.0
  %784 = vmatpush1.msra.mxu0 0.0
  %785 = vmatprep.subr.mxu0 0.0
  %786 = vmatpush1.msra.mxu0 0.0
  %787 = vmatprep.subr.mxu0 0.0
  %788 = vmatpush1.msra.mxu0 0.0
  %789 = vmatprep.subr.mxu0 0.0
  %790 = vmatpush1.msra.mxu0 0.0
  %791 = vmatprep.subr.mxu0 0.0
  %792 = vmatpush1.msra.mxu0 0.0
  %793 = vmatprep.subr.mxu0 0.0
  %794 = vmatpush1.msra.mxu0 0.0
  %795 = vmatprep.subr.mxu0 0.0
  %796 = vmatpush1.msra.mxu0 0.0
  %797 = vmatprep.subr.mxu0 0.0
  %798 = vmatpush1.msra.mxu0 0.0
  %799 = vmatprep.subr.mxu0 0.0
  %800 = vmatpush1.msra.mxu0 0.0
  %801 = vmatprep.subr.mxu0 0.0
  %802 = vmatpush1.msra.mxu0 0.0
  %803 = vmatprep.subr.mxu0 0.0
  %804 = vmatpush1.msra.mxu0 0.0
  %805 = vmatprep.subr.mxu0 0.0
  %806 = vmatpush1.msra.mxu0 0.0
  %807 = vmatprep.subr.mxu0 0.0
  %808 = vmatpush1.msra.mxu0 0.0
  %809 = vmatprep.mubr.f32.mxu0 0.0
  %810 = vmatmul.mubr.f32.gmra.mrb[0].mxu0 %v709
  %v811 = vpop.f32.mrb[0].mxu0
  %v812 = vadd.f32 %v71, %v811
  %v813 = vpop.f32.mrb[0].mxu0
  %814 = vmatprep.mubr.f32.mxu0 0.0
  %815 = vmatmul.mubr.f32.gmra.mrb[0].mxu0 %v710
  %v816 = vpop.f32.mrb[0].mxu0
  %v817 = vadd.f32 %v71, %v816
  %v818 = vpop.f32.mrb[0].mxu0
  %819 = vmatprep.mubr.f32.mxu0 0.0
  %820 = vmatmul.mubr.f32.gmra.mrb[0].mxu0 %v711
  %v821 = vpop.f32.mrb[0].mxu0
  %v822 = vadd.f32 %v71, %v821
  %v823 = vpop.f32.mrb[0].mxu0
  %824 = vmatprep.mubr.f32.mxu0 0.0
  %825 = vmatmul.mubr.f32.gmra.mrb[0].mxu0 %v712
  %v826 = vpop.f32.mrb[0].mxu0
  %v827 = vadd.f32 %v71, %v826
  %v828 = vpop.f32.mrb[0].mxu0
  %829 = vmatprep.mubr.f32.mxu0 0.0
  %830 = vmatmul.mubr.f32.gmra.mrb[0].mxu0 %v713
  %v831 = vpop.f32.mrb[0].mxu0
  %v832 = vadd.f32 %v71, %v831
  %v833 = vpop.f32.mrb[0].mxu0
  %834 = vmatprep.mubr.f32.mxu0 0.0
  %835 = vmatmul.mubr.f32.gmra.mrb[0].mxu0 %v714
  %v836 = vpop.f32.mrb[0].mxu0
  %v837 = vadd.f32 %v71, %v836
  %v838 = vpop.f32.mrb[0].mxu0
  %839 = vmatprep.mubr.f32.mxu0 0.0
  %840 = vmatmul.mubr.f32.gmra.mrb[0].mxu0 %v715
  %v841 = vpop.f32.mrb[0].mxu0
  %v842 = vadd.f32 %v71, %v841
  %v843 = vpop.f32.mrb[0].mxu0
  %844 = vmatprep.mubr.f32.mxu0 0.0
  %845 = vmatmul.mubr.f32.gmra.mrb[0].mxu0 %v716
  %v846 = vpop.f32.mrb[0].mxu0
  %v847 = vadd.f32 %v71, %v846
  %v848 = vpop.f32.mrb[0].mxu0
  %849 = vmatprep.mubr.f32.mxu0 0.0
  %850 = vmatmul.mubr.f32.gmra.mrb[0].mxu0 %v717
  %v851 = vpop.f32.mrb[0].mxu0
  %v852 = vadd.f32 %v71, %v851
  %v853 = vpop.f32.mrb[0].mxu0
  %854 = vmatprep.mubr.f32.mxu0 0.0
  %855 = vmatmul.mubr.f32.gmra.mrb[0].mxu0 %v718
  %v856 = vpop.f32.mrb[0].mxu0
  %v857 = vadd.f32 %v71, %v856
  %v858 = vpop.f32.mrb[0].mxu0
  %859 = vmatprep.mubr.f32.mxu0 0.0
  %860 = vmatmul.mubr.f32.gmra.mrb[0].mxu0 %v719
  %v861 = vpop.f32.mrb[0].mxu0
  %v862 = vadd.f32 %v71, %v861
  %v863 = vpop.f32.mrb[0].mxu0
  %864 = vmatprep.mubr.f32.mxu0 0.0
  %865 = vmatmul.mubr.f32.gmra.mrb[0].mxu0 %v720
  %v866 = vpop.f32.mrb[0].mxu0
  %v867 = vadd.f32 %v71, %v866
  %v868 = vpop.f32.mrb[0].mxu0
  %869 = vmatprep.mubr.f32.mxu0 0.0
  %870 = vmatmul.mubr.f32.gmra.mrb[0].mxu0 %v721
  %v871 = vpop.f32.mrb[0].mxu0
  %v872 = vadd.f32 %v71, %v871
  %v873 = vpop.f32.mrb[0].mxu0
  %874 = vmatprep.mubr.f32.mxu0 0.0
  %875 = vmatmul.mubr.f32.gmra.mrb[0].mxu0 %v722
  %v876 = vpop.f32.mrb[0].mxu0
  %v877 = vadd.f32 %v71, %v876
  %v878 = vpop.f32.mrb[0].mxu0
  %879 = vmatprep.mubr.f32.mxu0 0.0
  %880 = vmatmul.mubr.f32.gmra.mrb[0].mxu0 %v723
  %v881 = vpop.f32.mrb[0].mxu0
  %v882 = vadd.f32 %v71, %v881
  %v883 = vpop.f32.mrb[0].mxu0
  %884 = vmatprep.mubr.f32.mxu0 0.0
  %885 = vmatmul.mubr.f32.gmra.mrb[0].mxu0 %v724
  %v886 = vpop.f32.mrb[0].mxu0
  %v887 = vadd.f32 %v71, %v886
  %v888 = vpop.f32.mrb[0].mxu0
  %889 = vmatprep.mubr.f32.mxu0 0.0
  %890 = vmatmul.mubr.f32.gmra.mrb[0].mxu0 %v725
  %v891 = vpop.f32.mrb[0].mxu0
  %v892 = vadd.f32 %v71, %v891
  %v893 = vpop.f32.mrb[0].mxu0
  %894 = vmatprep.mubr.f32.mxu0 0.0
  %895 = vmatmul.mubr.f32.gmra.mrb[0].mxu0 %v726
  %v896 = vpop.f32.mrb[0].mxu0
  %v897 = vadd.f32 %v71, %v896
  %v898 = vpop.f32.mrb[0].mxu0
  %899 = vmatprep.mubr.f32.mxu0 0.0
  %900 = vmatmul.mubr.f32.gmra.mrb[0].mxu0 %v727
  %v901 = vpop.f32.mrb[0].mxu0
  %v902 = vadd.f32 %v71, %v901
  %v903 = vpop.f32.mrb[0].mxu0
  %904 = vmatprep.mubr.f32.mxu0 0.0
  %905 = vmatmul.mubr.f32.gmra.mrb[0].mxu0 %v728
  %v906 = vpop.f32.mrb[0].mxu0
  %v907 = vadd.f32 %v71, %v906
  %v908 = vpop.f32.mrb[0].mxu0
  %909 = vmatprep.mubr.f32.mxu0 0.0
  %910 = vmatmul.mubr.f32.gmra.mrb[0].mxu0 %v729
  %v911 = vpop.f32.mrb[0].mxu0
  %v912 = vadd.f32 %v71, %v911
  %v913 = vpop.f32.mrb[0].mxu0
  %914 = vmatprep.mubr.f32.mxu0 0.0
  %915 = vmatmul.mubr.f32.gmra.mrb[0].mxu0 %v730
  %v916 = vpop.f32.mrb[0].mxu0
  %v917 = vadd.f32 %v71, %v916
  %v918 = vpop.f32.mrb[0].mxu0
  %919 = vmatprep.mubr.f32.mxu0 0.0
  %920 = vmatmul.mubr.f32.gmra.mrb[0].mxu0 %v731
  %v921 = vpop.f32.mrb[0].mxu0
  %v922 = vadd.f32 %v71, %v921
  %v923 = vpop.f32.mrb[0].mxu0
  %924 = vmatprep.mubr.f32.mxu0 0.0
  %925 = vmatmul.mubr.f32.gmra.mrb[0].mxu0 %v732
  %v926 = vpop.f32.mrb[0].mxu0
  %v927 = vadd.f32 %v71, %v926
  %v928 = vpop.f32.mrb[0].mxu0
  %929 = vmatprep.mubr.f32.mxu0 0.0
  %930 = vmatmul.mubr.f32.gmra.mrb[0].mxu0 %v733
  %v931 = vpop.f32.mrb[0].mxu0
  %v932 = vadd.f32 %v71, %v931
  %v933 = vpop.f32.mrb[0].mxu0
  %934 = vmatprep.mubr.f32.mxu0 0.0
  %935 = vmatmul.mubr.f32.gmra.mrb[0].mxu0 %v734
  %v936 = vpop.f32.mrb[0].mxu0
  %v937 = vadd.f32 %v71, %v936
  %v938 = vpop.f32.mrb[0].mxu0
  %939 = vmatprep.mubr.f32.mxu0 0.0
  %940 = vmatmul.mubr.f32.gmra.mrb[0].mxu0 %v735
  %v941 = vpop.f32.mrb[0].mxu0
  %v942 = vadd.f32 %v71, %v941
  %v943 = vpop.f32.mrb[0].mxu0
  %944 = vmatprep.mubr.f32.mxu0 0.0
  %945 = vmatmul.mubr.f32.gmra.mrb[0].mxu0 %v736
  %v946 = vpop.f32.mrb[0].mxu0
  %v947 = vadd.f32 %v71, %v946
  %v948 = vpop.f32.mrb[0].mxu0
  %949 = vmatprep.mubr.f32.mxu0 0.0
  %950 = vmatmul.mubr.f32.gmra.mrb[0].mxu0 %v737
  %v951 = vpop.f32.mrb[0].mxu0
  %v952 = vadd.f32 %v71, %v951
  %v953 = vpop.f32.mrb[0].mxu0
  %954 = vmatprep.mubr.f32.mxu0 0.0
  %955 = vmatmul.mubr.f32.gmra.mrb[0].mxu0 %v738
  %v956 = vpop.f32.mrb[0].mxu0
  %v957 = vadd.f32 %v71, %v956
  %v958 = vpop.f32.mrb[0].mxu0
  %959 = vmatprep.mubr.f32.mxu0 0.0
  %960 = vmatmul.mubr.f32.gmra.mrb[0].mxu0 %v739
  %v961 = vpop.f32.mrb[0].mxu0
  %v962 = vadd.f32 %v71, %v961
  %v963 = vpop.f32.mrb[0].mxu0
  %964 = vmatprep.mubr.f32.mxu0 0.0
  %965 = vmatmul.mubr.f32.gmra.mrb[0].mxu0 %v740
  %v966 = vpop.f32.mrb[0].mxu0
  %v967 = vadd.f32 %v71, %v966
  %v968 = vpop.f32.mrb[0].mxu0
  %969 = vmatprep.mubr.f32.mxu0 0.0
  %970 = vmatmul.mubr.f32.gmra.mrb[0].mxu0 %v741
  %v971 = vpop.f32.mrb[0].mxu0
  %v972 = vadd.f32 %v71, %v971
  %v973 = vpop.f32.mrb[0].mxu0
  %974 = vmatprep.mubr.f32.mxu0 0.0
  %975 = vmatmul.mubr.f32.gmra.mrb[0].mxu0 %v742
  %v976 = vpop.f32.mrb[0].mxu0
  %v977 = vadd.f32 %v71, %v976
  %v978 = vpop.f32.mrb[0].mxu0
  %979 = vmatprep.mubr.f32.mxu0 0.0
  %980 = vmatmul.mubr.f32.gmra.mrb[0].mxu0 %v743
  %v981 = vpop.f32.mrb[0].mxu0
  %v982 = vadd.f32 %v71, %v981
  %v983 = vpop.f32.mrb[0].mxu0
  %984 = vmatprep.mubr.f32.mxu0 0.0
  %985 = vmatmul.mubr.f32.gmra.mrb[0].mxu0 %v744
  %v986 = vpop.f32.mrb[0].mxu0
  %v987 = vadd.f32 %v71, %v986
  %v988 = vpop.f32.mrb[0].mxu0
  %989 = vdwg.mxu0
  %v990 = vmax.f32 %v812, 0.0
  %v991 = vmax.f32 %v817, 0.0
  %v992 = vmax.f32 %v822, 0.0
  %v993 = vmax.f32 %v827, 0.0
  %v994 = vmax.f32 %v832, 0.0
  %v995 = vmax.f32 %v837, 0.0
  %v996 = vmax.f32 %v842, 0.0
  %v997 = vmax.f32 %v847, 0.0
  %v998 = vmax.f32 %v852, 0.0
  %v999 = vmax.f32 %v857, 0.0
  %v1000 = vmax.f32 %v862, 0.0
  %v1001 = vmax.f32 %v867, 0.0
  %v1002 = vmax.f32 %v872, 0.0
  %v1003 = vmax.f32 %v877, 0.0
  %v1004 = vmax.f32 %v882, 0.0
  %v1005 = vmax.f32 %v887, 0.0
  %v1006 = vmax.f32 %v892, 0.0
  %v1007 = vmax.f32 %v897, 0.0
  %v1008 = vmax.f32 %v902, 0.0
  %v1009 = vmax.f32 %v907, 0.0
  %v1010 = vmax.f32 %v912, 0.0
  %v1011 = vmax.f32 %v917, 0.0
  %v1012 = vmax.f32 %v922, 0.0
  %v1013 = vmax.f32 %v927, 0.0
  %v1014 = vmax.f32 %v932, 0.0
  %v1015 = vmax.f32 %v937, 0.0
  %v1016 = vmax.f32 %v942, 0.0
  %v1017 = vmax.f32 %v947, 0.0
  %v1018 = vmax.f32 %v952, 0.0
  %v1019 = vmax.f32 %v957, 0.0
  %v1020 = vmax.f32 %v962, 0.0
  %v1021 = vmax.f32 %v967, 0.0
  %v1022 = vmax.f32 %v972, 0.0
  %v1023 = vmax.f32 %v977, 0.0
  %v1024 = vmax.f32 %v982, 0.0
  %v1025 = vmax.f32 %v987, 0.0
  %v1026 = vmax.f32 %v672, %v990
  %v1027 = vmax.f32 %v673, %v991
  %v1028 = vmax.f32 %v674, %v992
  %v1029 = vmax.f32 %v675, %v993
  %v1030 = vmax.f32 %v676, %v994
  %v1031 = vmax.f32 %v677, %v995
  %v1032 = vmax.f32 %v678, %v996
  %v1033 = vmax.f32 %v679, %v997
  %v1034 = vmax.f32 %v680, %v998
  %v1035 = vmax.f32 %v681, %v999
  %v1036 = vmax.f32 %v682, %v1000
  %v1037 = vmax.f32 %v683, %v1001
  %v1038 = vmax.f32 %v684, %v1002
  %v1039 = vmax.f32 %v685, %v1003
  %v1040 = vmax.f32 %v686, %v1004
  %v1041 = vmax.f32 %v687, %v1005
  %v1042 = vmax.f32 %v688, %v1006
  %v1043 = vmax.f32 %v689, %v1007
  %v1044 = vmax.f32 %v690, %v1008
  %v1045 = vmax.f32 %v691, %v1009
  %v1046 = vmax.f32 %v692, %v1010
  %v1047 = vmax.f32 %v693, %v1011
  %v1048 = vmax.f32 %v694, %v1012
  %v1049 = vmax.f32 %v695, %v1013
  %v1050 = vmax.f32 %v696, %v1014
  %v1051 = vmax.f32 %v697, %v1015
  %v1052 = vmax.f32 %v698, %v1016
  %v1053 = vmax.f32 %v699, %v1017
  %v1054 = vmax.f32 %v700, %v1018
  %v1055 = vmax.f32 %v701, %v1019
  %v1056 = vmax.f32 %v702, %v1020
  %v1057 = vmax.f32 %v703, %v1021
  %v1058 = vmax.f32 %v704, %v1022
  %v1059 = vmax.f32 %v705, %v1023
  %v1060 = vmax.f32 %v706, %v1024
  %v1061 = vmax.f32 %v707, %v1025
  %s1062 = scalar_lea.vmem %s0, 864
  %v1063 = vld [vmem:[%s1062] sm:$0xff]
  %v1064 = vld [vmem:[%s1062 + $0x8] sm:$0xff]
  %v1065 = vld [vmem:[%s1062 + $0x10] sm:$0xff]
  %v1066 = vld [vmem:[%s1062 + $0x18] sm:$0xff]
  %v1067 = vld [vmem:[%s1062 + $0x20] sm:$0xff]
  %v1068 = vld [vmem:[%s1062 + $0x28] sm:$0xff]
  %v1069 = vld [vmem:[%s1062 + $0x30] sm:$0xff]
  %v1070 = vld [vmem:[%s1062 + $0x38] sm:$0xff]
  %v1071 = vld [vmem:[%s1062 + $0x40] sm:$0xff]
  %v1072 = vld [vmem:[%s1062 + $0x48] sm:$0xff]
  %v1073 = vld [vmem:[%s1062 + $0x50] sm:$0xff]
  %v1074 = vld [vmem:[%s1062 + $0x58] sm:$0xff]
  %v1075 = vld [vmem:[%s1062 + $0x60] sm:$0xff]
  %v1076 = vld [vmem:[%s1062 + $0x68] sm:$0xff]
  %v1077 = vld [vmem:[%s1062 + $0x70] sm:$0xff]
  %v1078 = vld [vmem:[%s1062 + $0x78] sm:$0xff]
  %v1079 = vld [vmem:[%s1062 + $0x80] sm:$0xff]
  %v1080 = vld [vmem:[%s1062 + $0x88] sm:$0xff]
  %v1081 = vld [vmem:[%s1062 + $0x90] sm:$0xff]
  %v1082 = vld [vmem:[%s1062 + $0x98] sm:$0xff]
  %v1083 = vld [vmem:[%s1062 + $0xa0] sm:$0xff]
  %v1084 = vld [vmem:[%s1062 + $0xa8] sm:$0xff]
  %v1085 = vld [vmem:[%s1062 + $0xb0] sm:$0xff]
  %v1086 = vld [vmem:[%s1062 + $0xb8] sm:$0xff]
  %v1087 = vld [vmem:[%s1062 + $0xc0] sm:$0xff]
  %v1088 = vld [vmem:[%s1062 + $0xc8] sm:$0xff]
  %v1089 = vld [vmem:[%s1062 + $0xd0] sm:$0xff]
  %v1090 = vld [vmem:[%s1062 + $0xd8] sm:$0xff]
  %v1091 = vld [vmem:[%s1062 + $0xe0] sm:$0xff]
  %v1092 = vld [vmem:[%s1062 + $0xe8] sm:$0xff]
  %v1093 = vld [vmem:[%s1062 + $0xf0] sm:$0xff]
  %v1094 = vld [vmem:[%s1062 + $0xf8] sm:$0xff]
  %v1095 = vld [vmem:[%s1062 + $0x100] sm:$0xff]
  %v1096 = vld [vmem:[%s1062 + $0x108] sm:$0xff]
  %v1097 = vld [vmem:[%s1062 + $0x110] sm:$0xff]
  %v1098 = vld [vmem:[%s1062 + $0x118] sm:$0xff]
  %1099 = vmatprep.subr.mxu0 0.0
  %1100 = vmatpush1.msra.mxu0 %v14
  %1101 = vmatprep.subr.mxu0 0.0
  %1102 = vmatpush1.msra.mxu0 %v15
  %1103 = vmatprep.subr.mxu0 0.0
  %1104 = vmatpush1.msra.mxu0 %v16
  %1105 = vmatprep.subr.mxu0 0.0
  %1106 = vmatpush1.msra.mxu0 %v17
  %1107 = vmatprep.subr.mxu0 0.0
  %1108 = vmatpush1.msra.mxu0 %v18
  %1109 = vmatprep.subr.mxu0 0.0
  %1110 = vmatpush1.msra.mxu0 %v19
  %1111 = vmatprep.subr.mxu0 0.0
  %1112 = vmatpush1.msra.mxu0 %v20
  %1113 = vmatprep.subr.mxu0 0.0
  %1114 = vmatpush1.msra.mxu0 %v21
  %1115 = vmatprep.subr.mxu0 0.0
  %1116 = vmatpush1.msra.mxu0 %v22
  %1117 = vmatprep.subr.mxu0 0.0
  %1118 = vmatpush1.msra.mxu0 %v23
  %1119 = vmatprep.subr.mxu0 0.0
  %1120 = vmatpush1.msra.mxu0 %v24
  %1121 = vmatprep.subr.mxu0 0.0
  %1122 = vmatpush1.msra.mxu0 %v25
  %1123 = vmatprep.subr.mxu0 0.0
  %1124 = vmatpush1.msra.mxu0 %v26
  %1125 = vmatprep.subr.mxu0 0.0
  %1126 = vmatpush1.msra.mxu0 %v27
  %1127 = vmatprep.subr.mxu0 0.0
  %1128 = vmatpush1.msra.mxu0 %v28
  %1129 = vmatprep.subr.mxu0 0.0
  %1130 = vmatpush1.msra.mxu0 %v29
  %1131 = vmatprep.subr.mxu0 0.0
  %1132 = vmatpush1.msra.mxu0 0.0
  %1133 = vmatprep.subr.mxu0 0.0
  %1134 = vmatpush1.msra.mxu0 0.0
  %1135 = vmatprep.subr.mxu0 0.0
  %1136 = vmatpush1.msra.mxu0 0.0
  %1137 = vmatprep.subr.mxu0 0.0
  %1138 = vmatpush1.msra.mxu0 0.0
  %1139 = vmatprep.subr.mxu0 0.0
  %1140 = vmatpush1.msra.mxu0 0.0
  %1141 = vmatprep.subr.mxu0 0.0
  %1142 = vmatpush1.msra.mxu0 0.0
  %1143 = vmatprep.subr.mxu0 0.0
  %1144 = vmatpush1.msra.mxu0 0.0
  %1145 = vmatprep.subr.mxu0 0.0
  %1146 = vmatpush1.msra.mxu0 0.0
  %1147 = vmatprep.subr.mxu0 0.0
  %1148 = vmatpush1.msra.mxu0 0.0
  %1149 = vmatprep.subr.mxu0 0.0
  %1150 = vmatpush1.msra.mxu0 0.0
  %1151 = vmatprep.subr.mxu0 0.0
  %1152 = vmatpush1.msra.mxu0 0.0
  %1153 = vmatprep.subr.mxu0 0.0
  %1154 = vmatpush1.msra.mxu0 0.0
  %1155 = vmatprep.subr.mxu0 0.0
  %1156 = vmatpush1.msra.mxu0 0.0
  %1157 = vmatprep.subr.mxu0 0.0
  %1158 = vmatpush1.msra.mxu0 0.0
  %1159 = vmatprep.subr.mxu0 0.0
  %1160 = vmatpush1.msra.mxu0 0.0
  %1161 = vmatprep.subr.mxu0 0.0
  %1162 = vmatpush1.msra.mxu0 0.0
  %1163 = vmatprep.mubr.f32.mxu0 0.0
  %1164 = vmatmul.mubr.f32.gmra.mrb[0].mxu0 %v1063
  %v1165 = vpop.f32.mrb[0].mxu0
  %v1166 = vadd.f32 %v71, %v1165
  %v1167 = vpop.f32.mrb[0].mxu0
  %1168 = vmatprep.mubr.f32.mxu0 0.0
  %1169 = vmatmul.mubr.f32.gmra.mrb[0].mxu0 %v1064
  %v1170 = vpop.f32.mrb[0].mxu0
  %v1171 = vadd.f32 %v71, %v1170
  %v1172 = vpop.f32.mrb[0].mxu0
  %1173 = vmatprep.mubr.f32.mxu0 0.0
  %1174 = vmatmul.mubr.f32.gmra.mrb[0].mxu0 %v1065
  %v1175 = vpop.f32.mrb[0].mxu0
  %v1176 = vadd.f32 %v71, %v1175
  %v1177 = vpop.f32.mrb[0].mxu0
  %1178 = vmatprep.mubr.f32.mxu0 0.0
  %1179 = vmatmul.mubr.f32.gmra.mrb[0].mxu0 %v1066
  %v1180 = vpop.f32.mrb[0].mxu0
  %v1181 = vadd.f32 %v71, %v1180
  %v1182 = vpop.f32.mrb[0].mxu0
  %1183 = vmatprep.mubr.f32.mxu0 0.0
  %1184 = vmatmul.mubr.f32.gmra.mrb[0].mxu0 %v1067
  %v1185 = vpop.f32.mrb[0].mxu0
  %v1186 = vadd.f32 %v71, %v1185
  %v1187 = vpop.f32.mrb[0].mxu0
  %1188 = vmatprep.mubr.f32.mxu0 0.0
  %1189 = vmatmul.mubr.f32.gmra.mrb[0].mxu0 %v1068
  %v1190 = vpop.f32.mrb[0].mxu0
  %v1191 = vadd.f32 %v71, %v1190
  %v1192 = vpop.f32.mrb[0].mxu0
  %1193 = vmatprep.mubr.f32.mxu0 0.0
  %1194 = vmatmul.mubr.f32.gmra.mrb[0].mxu0 %v1069
  %v1195 = vpop.f32.mrb[0].mxu0
  %v1196 = vadd.f32 %v71, %v1195
  %v1197 = vpop.f32.mrb[0].mxu0
  %1198 = vmatprep.mubr.f32.mxu0 0.0
  %1199 = vmatmul.mubr.f32.gmra.mrb[0].mxu0 %v1070
  %v1200 = vpop.f32.mrb[0].mxu0
  %v1201 = vadd.f32 %v71, %v1200
  %v1202 = vpop.f32.mrb[0].mxu0
  %1203 = vmatprep.mubr.f32.mxu0 0.0
  %1204 = vmatmul.mubr.f32.gmra.mrb[0].mxu0 %v1071
  %v1205 = vpop.f32.mrb[0].mxu0
  %v1206 = vadd.f32 %v71, %v1205
  %v1207 = vpop.f32.mrb[0].mxu0
  %1208 = vmatprep.mubr.f32.mxu0 0.0
  %1209 = vmatmul.mubr.f32.gmra.mrb[0].mxu0 %v1072
  %v1210 = vpop.f32.mrb[0].mxu0
  %v1211 = vadd.f32 %v71, %v1210
  %v1212 = vpop.f32.mrb[0].mxu0
  %1213 = vmatprep.mubr.f32.mxu0 0.0
  %1214 = vmatmul.mubr.f32.gmra.mrb[0].mxu0 %v1073
  %v1215 = vpop.f32.mrb[0].mxu0
  %v1216 = vadd.f32 %v71, %v1215
  %v1217 = vpop.f32.mrb[0].mxu0
  %1218 = vmatprep.mubr.f32.mxu0 0.0
  %1219 = vmatmul.mubr.f32.gmra.mrb[0].mxu0 %v1074
  %v1220 = vpop.f32.mrb[0].mxu0
  %v1221 = vadd.f32 %v71, %v1220
  %v1222 = vpop.f32.mrb[0].mxu0
  %1223 = vmatprep.mubr.f32.mxu0 0.0
  %1224 = vmatmul.mubr.f32.gmra.mrb[0].mxu0 %v1075
  %v1225 = vpop.f32.mrb[0].mxu0
  %v1226 = vadd.f32 %v71, %v1225
  %v1227 = vpop.f32.mrb[0].mxu0
  %1228 = vmatprep.mubr.f32.mxu0 0.0
  %1229 = vmatmul.mubr.f32.gmra.mrb[0].mxu0 %v1076
  %v1230 = vpop.f32.mrb[0].mxu0
  %v1231 = vadd.f32 %v71, %v1230
  %v1232 = vpop.f32.mrb[0].mxu0
  %1233 = vmatprep.mubr.f32.mxu0 0.0
  %1234 = vmatmul.mubr.f32.gmra.mrb[0].mxu0 %v1077
  %v1235 = vpop.f32.mrb[0].mxu0
  %v1236 = vadd.f32 %v71, %v1235
  %v1237 = vpop.f32.mrb[0].mxu0
  %1238 = vmatprep.mubr.f32.mxu0 0.0
  %1239 = vmatmul.mubr.f32.gmra.mrb[0].mxu0 %v1078
  %v1240 = vpop.f32.mrb[0].mxu0
  %v1241 = vadd.f32 %v71, %v1240
  %v1242 = vpop.f32.mrb[0].mxu0
  %1243 = vmatprep.mubr.f32.mxu0 0.0
  %1244 = vmatmul.mubr.f32.gmra.mrb[0].mxu0 %v1079
  %v1245 = vpop.f32.mrb[0].mxu0
  %v1246 = vadd.f32 %v71, %v1245
  %v1247 = vpop.f32.mrb[0].mxu0
  %1248 = vmatprep.mubr.f32.mxu0 0.0
  %1249 = vmatmul.mubr.f32.gmra.mrb[0].mxu0 %v1080
  %v1250 = vpop.f32.mrb[0].mxu0
  %v1251 = vadd.f32 %v71, %v1250
  %v1252 = vpop.f32.mrb[0].mxu0
  %1253 = vmatprep.mubr.f32.mxu0 0.0
  %1254 = vmatmul.mubr.f32.gmra.mrb[0].mxu0 %v1081
  %v1255 = vpop.f32.mrb[0].mxu0
  %v1256 = vadd.f32 %v71, %v1255
  %v1257 = vpop.f32.mrb[0].mxu0
  %1258 = vmatprep.mubr.f32.mxu0 0.0
  %1259 = vmatmul.mubr.f32.gmra.mrb[0].mxu0 %v1082
  %v1260 = vpop.f32.mrb[0].mxu0
  %v1261 = vadd.f32 %v71, %v1260
  %v1262 = vpop.f32.mrb[0].mxu0
  %1263 = vmatprep.mubr.f32.mxu0 0.0
  %1264 = vmatmul.mubr.f32.gmra.mrb[0].mxu0 %v1083
  %v1265 = vpop.f32.mrb[0].mxu0
  %v1266 = vadd.f32 %v71, %v1265
  %v1267 = vpop.f32.mrb[0].mxu0
  %1268 = vmatprep.mubr.f32.mxu0 0.0
  %1269 = vmatmul.mubr.f32.gmra.mrb[0].mxu0 %v1084
  %v1270 = vpop.f32.mrb[0].mxu0
  %v1271 = vadd.f32 %v71, %v1270
  %v1272 = vpop.f32.mrb[0].mxu0
  %1273 = vmatprep.mubr.f32.mxu0 0.0
  %1274 = vmatmul.mubr.f32.gmra.mrb[0].mxu0 %v1085
  %v1275 = vpop.f32.mrb[0].mxu0
  %v1276 = vadd.f32 %v71, %v1275
  %v1277 = vpop.f32.mrb[0].mxu0
  %1278 = vmatprep.mubr.f32.mxu0 0.0
  %1279 = vmatmul.mubr.f32.gmra.mrb[0].mxu0 %v1086
  %v1280 = vpop.f32.mrb[0].mxu0
  %v1281 = vadd.f32 %v71, %v1280
  %v1282 = vpop.f32.mrb[0].mxu0
  %1283 = vmatprep.mubr.f32.mxu0 0.0
  %1284 = vmatmul.mubr.f32.gmra.mrb[0].mxu0 %v1087
  %v1285 = vpop.f32.mrb[0].mxu0
  %v1286 = vadd.f32 %v71, %v1285
  %v1287 = vpop.f32.mrb[0].mxu0
  %1288 = vmatprep.mubr.f32.mxu0 0.0
  %1289 = vmatmul.mubr.f32.gmra.mrb[0].mxu0 %v1088
  %v1290 = vpop.f32.mrb[0].mxu0
  %v1291 = vadd.f32 %v71, %v1290
  %v1292 = vpop.f32.mrb[0].mxu0
  %1293 = vmatprep.mubr.f32.mxu0 0.0
  %1294 = vmatmul.mubr.f32.gmra.mrb[0].mxu0 %v1089
  %v1295 = vpop.f32.mrb[0].mxu0
  %v1296 = vadd.f32 %v71, %v1295
  %v1297 = vpop.f32.mrb[0].mxu0
  %1298 = vmatprep.mubr.f32.mxu0 0.0
  %1299 = vmatmul.mubr.f32.gmra.mrb[0].mxu0 %v1090
  %v1300 = vpop.f32.mrb[0].mxu0
  %v1301 = vadd.f32 %v71, %v1300
  %v1302 = vpop.f32.mrb[0].mxu0
  %1303 = vmatprep.mubr.f32.mxu0 0.0
  %1304 = vmatmul.mubr.f32.gmra.mrb[0].mxu0 %v1091
  %v1305 = vpop.f32.mrb[0].mxu0
  %v1306 = vadd.f32 %v71, %v1305
  %v1307 = vpop.f32.mrb[0].mxu0
  %1308 = vmatprep.mubr.f32.mxu0 0.0
  %1309 = vmatmul.mubr.f32.gmra.mrb[0].mxu0 %v1092
  %v1310 = vpop.f32.mrb[0].mxu0
  %v1311 = vadd.f32 %v71, %v1310
  %v1312 = vpop.f32.mrb[0].mxu0
  %1313 = vmatprep.mubr.f32.mxu0 0.0
  %1314 = vmatmul.mubr.f32.gmra.mrb[0].mxu0 %v1093
  %v1315 = vpop.f32.mrb[0].mxu0
  %v1316 = vadd.f32 %v71, %v1315
  %v1317 = vpop.f32.mrb[0].mxu0
  %1318 = vmatprep.mubr.f32.mxu0 0.0
  %1319 = vmatmul.mubr.f32.gmra.mrb[0].mxu0 %v1094
  %v1320 = vpop.f32.mrb[0].mxu0
  %v1321 = vadd.f32 %v71, %v1320
  %v1322 = vpop.f32.mrb[0].mxu0
  %1323 = vmatprep.mubr.f32.mxu0 0.0
  %1324 = vmatmul.mubr.f32.gmra.mrb[0].mxu0 %v1095
  %v1325 = vpop.f32.mrb[0].mxu0
  %v1326 = vadd.f32 %v71, %v1325
  %v1327 = vpop.f32.mrb[0].mxu0
  %1328 = vmatprep.mubr.f32.mxu0 0.0
  %1329 = vmatmul.mubr.f32.gmra.mrb[0].mxu0 %v1096
  %v1330 = vpop.f32.mrb[0].mxu0
  %v1331 = vadd.f32 %v71, %v1330
  %v1332 = vpop.f32.mrb[0].mxu0
  %1333 = vmatprep.mubr.f32.mxu0 0.0
  %1334 = vmatmul.mubr.f32.gmra.mrb[0].mxu0 %v1097
  %v1335 = vpop.f32.mrb[0].mxu0
  %v1336 = vadd.f32 %v71, %v1335
  %v1337 = vpop.f32.mrb[0].mxu0
  %1338 = vmatprep.mubr.f32.mxu0 0.0
  %1339 = vmatmul.mubr.f32.gmra.mrb[0].mxu0 %v1098
  %v1340 = vpop.f32.mrb[0].mxu0
  %v1341 = vadd.f32 %v71, %v1340
  %v1342 = vpop.f32.mrb[0].mxu0
  %1343 = vdwg.mxu0
  %v1344 = vmax.f32 %v1166, 0.0
  %v1345 = vmax.f32 %v1171, 0.0
  %v1346 = vmax.f32 %v1176, 0.0
  %v1347 = vmax.f32 %v1181, 0.0
  %v1348 = vmax.f32 %v1186, 0.0
  %v1349 = vmax.f32 %v1191, 0.0
  %v1350 = vmax.f32 %v1196, 0.0
  %v1351 = vmax.f32 %v1201, 0.0
  %v1352 = vmax.f32 %v1206, 0.0
  %v1353 = vmax.f32 %v1211, 0.0
  %v1354 = vmax.f32 %v1216, 0.0
  %v1355 = vmax.f32 %v1221, 0.0
  %v1356 = vmax.f32 %v1226, 0.0
  %v1357 = vmax.f32 %v1231, 0.0
  %v1358 = vmax.f32 %v1236, 0.0
  %v1359 = vmax.f32 %v1241, 0.0
  %v1360 = vmax.f32 %v1246, 0.0
  %v1361 = vmax.f32 %v1251, 0.0
  %v1362 = vmax.f32 %v1256, 0.0
  %v1363 = vmax.f32 %v1261, 0.0
  %v1364 = vmax.f32 %v1266, 0.0
  %v1365 = vmax.f32 %v1271, 0.0
  %v1366 = vmax.f32 %v1276, 0.0
  %v1367 = vmax.f32 %v1281, 0.0
  %v1368 = vmax.f32 %v1286, 0.0
  %v1369 = vmax.f32 %v1291, 0.0
  %v1370 = vmax.f32 %v1296, 0.0
  %v1371 = vmax.f32 %v1301, 0.0
  %v1372 = vmax.f32 %v1306, 0.0
  %v1373 = vmax.f32 %v1311, 0.0
  %v1374 = vmax.f32 %v1316, 0.0
  %v1375 = vmax.f32 %v1321, 0.0
  %v1376 = vmax.f32 %v1326, 0.0
  %v1377 = vmax.f32 %v1331, 0.0
  %v1378 = vmax.f32 %v1336, 0.0
  %v1379 = vmax.f32 %v1341, 0.0
  %v1380 = vmax.f32 %v1026, %v1344
  %v1381 = vmax.f32 %v1027, %v1345
  %v1382 = vmax.f32 %v1028, %v1346
  %v1383 = vmax.f32 %v1029, %v1347
  %v1384 = vmax.f32 %v1030, %v1348
  %v1385 = vmax.f32 %v1031, %v1349
  %v1386 = vmax.f32 %v1032, %v1350
  %v1387 = vmax.f32 %v1033, %v1351
  %v1388 = vmax.f32 %v1034, %v1352
  %v1389 = vmax.f32 %v1035, %v1353
  %v1390 = vmax.f32 %v1036, %v1354
  %v1391 = vmax.f32 %v1037, %v1355
  %v1392 = vmax.f32 %v1038, %v1356
  %v1393 = vmax.f32 %v1039, %v1357
  %v1394 = vmax.f32 %v1040, %v1358
  %v1395 = vmax.f32 %v1041, %v1359
  %v1396 = vmax.f32 %v1042, %v1360
  %v1397 = vmax.f32 %v1043, %v1361
  %v1398 = vmax.f32 %v1044, %v1362
  %v1399 = vmax.f32 %v1045, %v1363
  %v1400 = vmax.f32 %v1046, %v1364
  %v1401 = vmax.f32 %v1047, %v1365
  %v1402 = vmax.f32 %v1048, %v1366
  %v1403 = vmax.f32 %v1049, %v1367
  %v1404 = vmax.f32 %v1050, %v1368
  %v1405 = vmax.f32 %v1051, %v1369
  %v1406 = vmax.f32 %v1052, %v1370
  %v1407 = vmax.f32 %v1053, %v1371
  %v1408 = vmax.f32 %v1054, %v1372
  %v1409 = vmax.f32 %v1055, %v1373
  %v1410 = vmax.f32 %v1056, %v1374
  %v1411 = vmax.f32 %v1057, %v1375
  %v1412 = vmax.f32 %v1058, %v1376
  %v1413 = vmax.f32 %v1059, %v1377
  %v1414 = vmax.f32 %v1060, %v1378
  %v1415 = vmax.f32 %v1061, %v1379
  %1416 = vst [vmem:[%s3] sm:$0xff] %v1380
  %1417 = vst [vmem:[%s3 + $0x8] sm:$0xff] %v1381
  %1418 = vst [vmem:[%s3 + $0x10] sm:$0xff] %v1382
  %1419 = vst [vmem:[%s3 + $0x18] sm:$0xff] %v1383
  %1420 = vst [vmem:[%s3 + $0x20] sm:$0xff] %v1384
  %1421 = vst [vmem:[%s3 + $0x28] sm:$0xff] %v1385
  %1422 = vst [vmem:[%s3 + $0x30] sm:$0xff] %v1386
  %1423 = vst [vmem:[%s3 + $0x38] sm:$0xff] %v1387
  %1424 = vst [vmem:[%s3 + $0x40] sm:$0xff] %v1388
  %1425 = vst [vmem:[%s3 + $0x48] sm:$0xff] %v1389
  %1426 = vst [vmem:[%s3 + $0x50] sm:$0xff] %v1390
  %1427 = vst [vmem:[%s3 + $0x58] sm:$0xff] %v1391
  %1428 = vst [vmem:[%s3 + $0x60] sm:$0xff] %v1392
  %1429 = vst [vmem:[%s3 + $0x68] sm:$0xff] %v1393
  %1430 = vst [vmem:[%s3 + $0x70] sm:$0xff] %v1394
  %1431 = vst [vmem:[%s3 + $0x78] sm:$0xff] %v1395
  %1432 = vst [vmem:[%s3 + $0x80] sm:$0xff] %v1396
  %1433 = vst [vmem:[%s3 + $0x88] sm:$0xff] %v1397
  %1434 = vst [vmem:[%s3 + $0x90] sm:$0xff] %v1398
  %1435 = vst [vmem:[%s3 + $0x98] sm:$0xff] %v1399
  %1436 = vst [vmem:[%s3 + $0xa0] sm:$0xff] %v1400
  %1437 = vst [vmem:[%s3 + $0xa8] sm:$0xff] %v1401
  %1438 = vst [vmem:[%s3 + $0xb0] sm:$0xff] %v1402
  %1439 = vst [vmem:[%s3 + $0xb8] sm:$0xff] %v1403
  %1440 = vst [vmem:[%s3 + $0xc0] sm:$0xff] %v1404
  %1441 = vst [vmem:[%s3 + $0xc8] sm:$0xff] %v1405
  %1442 = vst [vmem:[%s3 + $0xd0] sm:$0xff] %v1406
  %1443 = vst [vmem:[%s3 + $0xd8] sm:$0xff] %v1407
  %1444 = vst [vmem:[%s3 + $0xe0] sm:$0xff] %v1408
  %1445 = vst [vmem:[%s3 + $0xe8] sm:$0xff] %v1409
  %1446 = vst [vmem:[%s3 + $0xf0] sm:$0xff] %v1410
  %1447 = vst [vmem:[%s3 + $0xf8] sm:$0xff] %v1411
  %1448 = vst [vmem:[%s3 + $0x100] sm:$0xff] %v1412
  %1449 = vst [vmem:[%s3 + $0x108] sm:$0xff] %v1413
  %1450 = vst [vmem:[%s3 + $0x110] sm:$0xff] %v1414
  %1451 = vst [vmem:[%s3 + $0x118] sm:$0xff] %v1415
  // Predicated region
  $region14: #{forward_pallas.3} parent=0 // pred_check
    _
  $region15: #{forward_pallas.3} parent=0 // pred_check_branch
    %1453 = sbr.rel (0) target = $region17
  $region16: #{forward_pallas.3} parent=0 // pred_region
    _
  $region17: #{forward_pallas.3} parent=0 // pred_fallthru
    _
  // Predicated region
  $region18: #{forward_pallas.3} parent=0 // pred_check
    _
  $region19: #{forward_pallas.3} parent=0 // pred_check_branch
    %1455 = sbr.rel (0) target = $region21
  $region20: #{forward_pallas.3} parent=0 // pred_region
    _
  $region21: #{forward_pallas.3} parent=0 // pred_fallthru
    _

// kernel: forward_pallas.4
$region0: #{forward_pallas.4}
  #allocation0 [shape = 'u32[]', space=smem, size = 0x4, offset = 0x4, fixed_abs, tag = 'smem constant byte address 0x4 - core index']
  #allocation1 [shape = 'u32[144,128]{1,0:T(1,128)}', space=vmem, size = 0x12000, scoped, tag = 'internal scratch']
  %s0 = inlined_call_operand.vmem [shape: f32[208,128], index: 0, kind: input, shape index: {}]
  %s1 = inlined_call_operand.vmem [shape: f32[128,128], index: 1, kind: input, shape index: {}]
  %s2 = inlined_call_operand.vmem [shape: f32[1,128], index: 2, kind: input, shape index: {}]
  %s3 = inlined_call_operand.vmem [shape: f32[208,128], index: 3, kind: output, shape index: {}]
  %s4 = sld [smem:[#allocation0]]
  $region22: #{forward_pallas.4} parent=0
    _
  %s6 = ssub.s32 1, %s4
  %s7 = scalar_select 0, %s6, %s4
  // Predicated region
  $region2: #{forward_pallas.4} parent=0 // pred_check
    _
  $region3: #{forward_pallas.4} parent=0 // pred_check_branch
    %9 = sbr.rel (0) target = $region5
  $region4: #{forward_pallas.4} parent=0 // pred_region
    _
  $region5: #{forward_pallas.4} parent=0 // pred_fallthru
    _
  // Predicated region
  $region6: #{forward_pallas.4} parent=0 // pred_check
    _
  $region7: #{forward_pallas.4} parent=0 // pred_check_branch
    %11 = sbr.rel (0) target = $region9
  $region8: #{forward_pallas.4} parent=0 // pred_region
    _
  $region9: #{forward_pallas.4} parent=0 // pred_fallthru
    _
  // Predicated region
  $region10: #{forward_pallas.4} parent=0 // pred_check
    _
  $region11: #{forward_pallas.4} parent=0 // pred_check_branch
    %13 = sbr.rel (0) target = $region13
  $region12: #{forward_pallas.4} parent=0 // pred_region
    _
  $region13: #{forward_pallas.4} parent=0 // pred_fallthru
    _
  %v14 = vld [vmem:[%s0] sm:$0xff]
  %v15 = vld [vmem:[%s0 + $0x8] sm:$0xff]
  %v16 = vld [vmem:[%s0 + $0x10] sm:$0xff]
  %v17 = vld [vmem:[%s0 + $0x18] sm:$0xff]
  %v18 = vld [vmem:[%s0 + $0x20] sm:$0xff]
  %v19 = vld [vmem:[%s0 + $0x28] sm:$0xff]
  %v20 = vld [vmem:[%s0 + $0x30] sm:$0xff]
  %v21 = vld [vmem:[%s0 + $0x38] sm:$0xff]
  %v22 = vld [vmem:[%s0 + $0x40] sm:$0xff]
  %v23 = vld [vmem:[%s0 + $0x48] sm:$0xff]
  %v24 = vld [vmem:[%s0 + $0x50] sm:$0xff]
  %v25 = vld [vmem:[%s0 + $0x58] sm:$0xff]
  %v26 = vld [vmem:[%s0 + $0x60] sm:$0xff]
  %v27 = vld [vmem:[%s0 + $0x68] sm:$0xff]
  %v28 = vld [vmem:[%s0 + $0x70] sm:$0xff]
  %v29 = vld [vmem:[%s0 + $0x78] sm:$0xff]
  %v30 = vld [vmem:[%s0 + $0x80] sm:$0xff]
  %v31 = vld [vmem:[%s0 + $0x88] sm:$0xff]
  %v32 = vld [vmem:[%s0 + $0x90] sm:$0xff]
  %v33 = vld [vmem:[%s0 + $0x98] sm:$0xff]
  %v34 = vld [vmem:[%s0 + $0xa0] sm:$0xff]
  %v35 = vld [vmem:[%s0 + $0xa8] sm:$0xff]
  %v36 = vld [vmem:[%s0 + $0xb0] sm:$0xff]
  %v37 = vld [vmem:[%s0 + $0xb8] sm:$0xff]
  %v38 = vld [vmem:[%s0 + $0xc0] sm:$0xff]
  %v39 = vld [vmem:[%s0 + $0xc8] sm:$0xff]
  %v40 = vld [vmem:[%s1] sm:$0xff]
  %v41 = vld [vmem:[%s1 + $0x8] sm:$0xff]
  %v42 = vld [vmem:[%s1 + $0x10] sm:$0xff]
  %v43 = vld [vmem:[%s1 + $0x18] sm:$0xff]
  %v44 = vld [vmem:[%s1 + $0x20] sm:$0xff]
  %v45 = vld [vmem:[%s1 + $0x28] sm:$0xff]
  %v46 = vld [vmem:[%s1 + $0x30] sm:$0xff]
  %v47 = vld [vmem:[%s1 + $0x38] sm:$0xff]
  %v48 = vld [vmem:[%s1 + $0x40] sm:$0xff]
  %v49 = vld [vmem:[%s1 + $0x48] sm:$0xff]
  %v50 = vld [vmem:[%s1 + $0x50] sm:$0xff]
  %v51 = vld [vmem:[%s1 + $0x58] sm:$0xff]
  %v52 = vld [vmem:[%s1 + $0x60] sm:$0xff]
  %v53 = vld [vmem:[%s1 + $0x68] sm:$0xff]
  %v54 = vld [vmem:[%s1 + $0x70] sm:$0xff]
  %v55 = vld [vmem:[%s1 + $0x78] sm:$0xff]
  %v56 = vld [vmem:[%s2] sm:$0x1]
  %v58 = vlaneseq
  %v59 = vshrl.u32 %v58, 7
  %v60 = vsub.s32 0, %v59
  %v61 = vrot.slane %v56, %v60
  %63 = vmatprep.subr.mxu0 0.0
  %64 = vmatpush1.msra.mxu0 %v40
  %65 = vmatprep.subr.mxu0 0.0
  %66 = vmatpush1.msra.mxu0 %v41
  %67 = vmatprep.subr.mxu0 0.0
  %68 = vmatpush1.msra.mxu0 %v42
  %69 = vmatprep.subr.mxu0 0.0
  %70 = vmatpush1.msra.mxu0 %v43
  %71 = vmatprep.subr.mxu0 0.0
  %72 = vmatpush1.msra.mxu0 %v44
  %73 = vmatprep.subr.mxu0 0.0
  %74 = vmatpush1.msra.mxu0 %v45
  %75 = vmatprep.subr.mxu0 0.0
  %76 = vmatpush1.msra.mxu0 %v46
  %77 = vmatprep.subr.mxu0 0.0
  %78 = vmatpush1.msra.mxu0 %v47
  %79 = vmatprep.subr.mxu0 0.0
  %80 = vmatpush1.msra.mxu0 %v48
  %81 = vmatprep.subr.mxu0 0.0
  %82 = vmatpush1.msra.mxu0 %v49
  %83 = vmatprep.subr.mxu0 0.0
  %84 = vmatpush1.msra.mxu0 %v50
  %85 = vmatprep.subr.mxu0 0.0
  %86 = vmatpush1.msra.mxu0 %v51
  %87 = vmatprep.subr.mxu0 0.0
  %88 = vmatpush1.msra.mxu0 %v52
  %89 = vmatprep.subr.mxu0 0.0
  %90 = vmatpush1.msra.mxu0 %v53
  %91 = vmatprep.subr.mxu0 0.0
  %92 = vmatpush1.msra.mxu0 %v54
  %93 = vmatprep.subr.mxu0 0.0
  %94 = vmatpush1.msra.mxu0 %v55
  %95 = vmatprep.subr.mxu0 0.0
  %96 = vmatpush1.msra.mxu0 0.0
  %97 = vmatprep.subr.mxu0 0.0
  %98 = vmatpush1.msra.mxu0 0.0
  %99 = vmatprep.subr.mxu0 0.0
  %100 = vmatpush1.msra.mxu0 0.0
  %101 = vmatprep.subr.mxu0 0.0
  %102 = vmatpush1.msra.mxu0 0.0
  %103 = vmatprep.subr.mxu0 0.0
  %104 = vmatpush1.msra.mxu0 0.0
  %105 = vmatprep.subr.mxu0 0.0
  %106 = vmatpush1.msra.mxu0 0.0
  %107 = vmatprep.subr.mxu0 0.0
  %108 = vmatpush1.msra.mxu0 0.0
  %109 = vmatprep.subr.mxu0 0.0
  %110 = vmatpush1.msra.mxu0 0.0
  %111 = vmatprep.subr.mxu0 0.0
  %112 = vmatpush1.msra.mxu0 0.0
  %113 = vmatprep.subr.mxu0 0.0
  %114 = vmatpush1.msra.mxu0 0.0
  %115 = vmatprep.subr.mxu0 0.0
  %116 = vmatpush1.msra.mxu0 0.0
  %117 = vmatprep.subr.mxu0 0.0
  %118 = vmatpush1.msra.mxu0 0.0
  %119 = vmatprep.subr.mxu0 0.0
  %120 = vmatpush1.msra.mxu0 0.0
  %121 = vmatprep.subr.mxu0 0.0
  %122 = vmatpush1.msra.mxu0 0.0
  %123 = vmatprep.subr.mxu0 0.0
  %124 = vmatpush1.msra.mxu0 0.0
  %125 = vmatprep.subr.mxu0 0.0
  %126 = vmatpush1.msra.mxu0 0.0
  %127 = vmatprep.mubr.f32.mxu0 0.0
  %128 = vmatmul.mubr.f32.gmra.mrb[0].mxu0 %v14
  %v129 = vpop.f32.mrb[0].mxu0
  %v130 = vadd.f32 %v61, %v129
  %v131 = vpop.f32.mrb[0].mxu0
  %132 = vmatprep.mubr.f32.mxu0 0.0
  %133 = vmatmul.mubr.f32.gmra.mrb[0].mxu0 %v15
  %v134 = vpop.f32.mrb[0].mxu0
  %v135 = vadd.f32 %v61, %v134
  %v136 = vpop.f32.mrb[0].mxu0
  %137 = vmatprep.mubr.f32.mxu0 0.0
  %138 = vmatmul.mubr.f32.gmra.mrb[0].mxu0 %v16
  %v139 = vpop.f32.mrb[0].mxu0
  %v140 = vadd.f32 %v61, %v139
  %v141 = vpop.f32.mrb[0].mxu0
  %142 = vmatprep.mubr.f32.mxu0 0.0
  %143 = vmatmul.mubr.f32.gmra.mrb[0].mxu0 %v17
  %v144 = vpop.f32.mrb[0].mxu0
  %v145 = vadd.f32 %v61, %v144
  %v146 = vpop.f32.mrb[0].mxu0
  %147 = vmatprep.mubr.f32.mxu0 0.0
  %148 = vmatmul.mubr.f32.gmra.mrb[0].mxu0 %v18
  %v149 = vpop.f32.mrb[0].mxu0
  %v150 = vadd.f32 %v61, %v149
  %v151 = vpop.f32.mrb[0].mxu0
  %152 = vmatprep.mubr.f32.mxu0 0.0
  %153 = vmatmul.mubr.f32.gmra.mrb[0].mxu0 %v19
  %v154 = vpop.f32.mrb[0].mxu0
  %v155 = vadd.f32 %v61, %v154
  %v156 = vpop.f32.mrb[0].mxu0
  %157 = vmatprep.mubr.f32.mxu0 0.0
  %158 = vmatmul.mubr.f32.gmra.mrb[0].mxu0 %v20
  %v159 = vpop.f32.mrb[0].mxu0
  %v160 = vadd.f32 %v61, %v159
  %v161 = vpop.f32.mrb[0].mxu0
  %162 = vmatprep.mubr.f32.mxu0 0.0
  %163 = vmatmul.mubr.f32.gmra.mrb[0].mxu0 %v21
  %v164 = vpop.f32.mrb[0].mxu0
  %v165 = vadd.f32 %v61, %v164
  %v166 = vpop.f32.mrb[0].mxu0
  %167 = vmatprep.mubr.f32.mxu0 0.0
  %168 = vmatmul.mubr.f32.gmra.mrb[0].mxu0 %v22
  %v169 = vpop.f32.mrb[0].mxu0
  %v170 = vadd.f32 %v61, %v169
  %v171 = vpop.f32.mrb[0].mxu0
  %172 = vmatprep.mubr.f32.mxu0 0.0
  %173 = vmatmul.mubr.f32.gmra.mrb[0].mxu0 %v23
  %v174 = vpop.f32.mrb[0].mxu0
  %v175 = vadd.f32 %v61, %v174
  %v176 = vpop.f32.mrb[0].mxu0
  %177 = vmatprep.mubr.f32.mxu0 0.0
  %178 = vmatmul.mubr.f32.gmra.mrb[0].mxu0 %v24
  %v179 = vpop.f32.mrb[0].mxu0
  %v180 = vadd.f32 %v61, %v179
  %v181 = vpop.f32.mrb[0].mxu0
  %182 = vmatprep.mubr.f32.mxu0 0.0
  %183 = vmatmul.mubr.f32.gmra.mrb[0].mxu0 %v25
  %v184 = vpop.f32.mrb[0].mxu0
  %v185 = vadd.f32 %v61, %v184
  %v186 = vpop.f32.mrb[0].mxu0
  %187 = vmatprep.mubr.f32.mxu0 0.0
  %188 = vmatmul.mubr.f32.gmra.mrb[0].mxu0 %v26
  %v189 = vpop.f32.mrb[0].mxu0
  %v190 = vadd.f32 %v61, %v189
  %v191 = vpop.f32.mrb[0].mxu0
  %192 = vmatprep.mubr.f32.mxu0 0.0
  %193 = vmatmul.mubr.f32.gmra.mrb[0].mxu0 %v27
  %v194 = vpop.f32.mrb[0].mxu0
  %v195 = vadd.f32 %v61, %v194
  %v196 = vpop.f32.mrb[0].mxu0
  %197 = vmatprep.mubr.f32.mxu0 0.0
  %198 = vmatmul.mubr.f32.gmra.mrb[0].mxu0 %v28
  %v199 = vpop.f32.mrb[0].mxu0
  %v200 = vadd.f32 %v61, %v199
  %v201 = vpop.f32.mrb[0].mxu0
  %202 = vmatprep.mubr.f32.mxu0 0.0
  %203 = vmatmul.mubr.f32.gmra.mrb[0].mxu0 %v29
  %v204 = vpop.f32.mrb[0].mxu0
  %v205 = vadd.f32 %v61, %v204
  %v206 = vpop.f32.mrb[0].mxu0
  %207 = vmatprep.mubr.f32.mxu0 0.0
  %208 = vmatmul.mubr.f32.gmra.mrb[0].mxu0 %v30
  %v209 = vpop.f32.mrb[0].mxu0
  %v210 = vadd.f32 %v61, %v209
  %v211 = vpop.f32.mrb[0].mxu0
  %212 = vmatprep.mubr.f32.mxu0 0.0
  %213 = vmatmul.mubr.f32.gmra.mrb[0].mxu0 %v31
  %v214 = vpop.f32.mrb[0].mxu0
  %v215 = vadd.f32 %v61, %v214
  %v216 = vpop.f32.mrb[0].mxu0
  %217 = vmatprep.mubr.f32.mxu0 0.0
  %218 = vmatmul.mubr.f32.gmra.mrb[0].mxu0 %v32
  %v219 = vpop.f32.mrb[0].mxu0
  %v220 = vadd.f32 %v61, %v219
  %v221 = vpop.f32.mrb[0].mxu0
  %222 = vmatprep.mubr.f32.mxu0 0.0
  %223 = vmatmul.mubr.f32.gmra.mrb[0].mxu0 %v33
  %v224 = vpop.f32.mrb[0].mxu0
  %v225 = vadd.f32 %v61, %v224
  %v226 = vpop.f32.mrb[0].mxu0
  %227 = vmatprep.mubr.f32.mxu0 0.0
  %228 = vmatmul.mubr.f32.gmra.mrb[0].mxu0 %v34
  %v229 = vpop.f32.mrb[0].mxu0
  %v230 = vadd.f32 %v61, %v229
  %v231 = vpop.f32.mrb[0].mxu0
  %232 = vmatprep.mubr.f32.mxu0 0.0
  %233 = vmatmul.mubr.f32.gmra.mrb[0].mxu0 %v35
  %v234 = vpop.f32.mrb[0].mxu0
  %v235 = vadd.f32 %v61, %v234
  %v236 = vpop.f32.mrb[0].mxu0
  %237 = vmatprep.mubr.f32.mxu0 0.0
  %238 = vmatmul.mubr.f32.gmra.mrb[0].mxu0 %v36
  %v239 = vpop.f32.mrb[0].mxu0
  %v240 = vadd.f32 %v61, %v239
  %v241 = vpop.f32.mrb[0].mxu0
  %242 = vmatprep.mubr.f32.mxu0 0.0
  %243 = vmatmul.mubr.f32.gmra.mrb[0].mxu0 %v37
  %v244 = vpop.f32.mrb[0].mxu0
  %v245 = vadd.f32 %v61, %v244
  %v246 = vpop.f32.mrb[0].mxu0
  %247 = vmatprep.mubr.f32.mxu0 0.0
  %248 = vmatmul.mubr.f32.gmra.mrb[0].mxu0 %v38
  %v249 = vpop.f32.mrb[0].mxu0
  %v250 = vadd.f32 %v61, %v249
  %v251 = vpop.f32.mrb[0].mxu0
  %252 = vmatprep.mubr.f32.mxu0 0.0
  %253 = vmatmul.mubr.f32.gmra.mrb[0].mxu0 %v39
  %v254 = vpop.f32.mrb[0].mxu0
  %v255 = vadd.f32 %v61, %v254
  %v256 = vpop.f32.mrb[0].mxu0
  %257 = vdwg.mxu0
  %v258 = vmax.f32 %v130, 0.0
  %v259 = vmax.f32 %v135, 0.0
  %v260 = vmax.f32 %v140, 0.0
  %v261 = vmax.f32 %v145, 0.0
  %v262 = vmax.f32 %v150, 0.0
  %v263 = vmax.f32 %v155, 0.0
  %v264 = vmax.f32 %v160, 0.0
  %v265 = vmax.f32 %v165, 0.0
  %v266 = vmax.f32 %v170, 0.0
  %v267 = vmax.f32 %v175, 0.0
  %v268 = vmax.f32 %v180, 0.0
  %v269 = vmax.f32 %v185, 0.0
  %v270 = vmax.f32 %v190, 0.0
  %v271 = vmax.f32 %v195, 0.0
  %v272 = vmax.f32 %v200, 0.0
  %v273 = vmax.f32 %v205, 0.0
  %v274 = vmax.f32 %v210, 0.0
  %v275 = vmax.f32 %v215, 0.0
  %v276 = vmax.f32 %v220, 0.0
  %v277 = vmax.f32 %v225, 0.0
  %v278 = vmax.f32 %v230, 0.0
  %v279 = vmax.f32 %v235, 0.0
  %v280 = vmax.f32 %v240, 0.0
  %v281 = vmax.f32 %v245, 0.0
  %v282 = vmax.f32 %v250, 0.0
  %v283 = vmax.f32 %v255, 0.0
  %284 = vst [vmem:[%s3] sm:$0xff] %v258
  %285 = vst [vmem:[%s3 + $0x8] sm:$0xff] %v259
  %286 = vst [vmem:[%s3 + $0x10] sm:$0xff] %v260
  %287 = vst [vmem:[%s3 + $0x18] sm:$0xff] %v261
  %288 = vst [vmem:[%s3 + $0x20] sm:$0xff] %v262
  %289 = vst [vmem:[%s3 + $0x28] sm:$0xff] %v263
  %290 = vst [vmem:[%s3 + $0x30] sm:$0xff] %v264
  %291 = vst [vmem:[%s3 + $0x38] sm:$0xff] %v265
  %292 = vst [vmem:[%s3 + $0x40] sm:$0xff] %v266
  %293 = vst [vmem:[%s3 + $0x48] sm:$0xff] %v267
  %294 = vst [vmem:[%s3 + $0x50] sm:$0xff] %v268
  %295 = vst [vmem:[%s3 + $0x58] sm:$0xff] %v269
  %296 = vst [vmem:[%s3 + $0x60] sm:$0xff] %v270
  %297 = vst [vmem:[%s3 + $0x68] sm:$0xff] %v271
  %298 = vst [vmem:[%s3 + $0x70] sm:$0xff] %v272
  %299 = vst [vmem:[%s3 + $0x78] sm:$0xff] %v273
  %300 = vst [vmem:[%s3 + $0x80] sm:$0xff] %v274
  %301 = vst [vmem:[%s3 + $0x88] sm:$0xff] %v275
  %302 = vst [vmem:[%s3 + $0x90] sm:$0xff] %v276
  %303 = vst [vmem:[%s3 + $0x98] sm:$0xff] %v277
  %304 = vst [vmem:[%s3 + $0xa0] sm:$0xff] %v278
  %305 = vst [vmem:[%s3 + $0xa8] sm:$0xff] %v279
  %306 = vst [vmem:[%s3 + $0xb0] sm:$0xff] %v280
  %307 = vst [vmem:[%s3 + $0xb8] sm:$0xff] %v281
  %308 = vst [vmem:[%s3 + $0xc0] sm:$0xff] %v282
  %309 = vst [vmem:[%s3 + $0xc8] sm:$0xff] %v283
  // Predicated region
  $region14: #{forward_pallas.4} parent=0 // pred_check
    _
  $region15: #{forward_pallas.4} parent=0 // pred_check_branch
    %311 = sbr.rel (0) target = $region17
  $region16: #{forward_pallas.4} parent=0 // pred_region
    _
  $region17: #{forward_pallas.4} parent=0 // pred_fallthru
    _
  // Predicated region
  $region18: #{forward_pallas.4} parent=0 // pred_check
    _
  $region19: #{forward_pallas.4} parent=0 // pred_check_branch
    %313 = sbr.rel (0) target = $region21
  $region20: #{forward_pallas.4} parent=0 // pred_region
    _
  $region21: #{forward_pallas.4} parent=0 // pred_fallthru
    _

// kernel: forward_pallas.5
$region0: #{forward_pallas.5}
  #allocation0 [shape = 'u32[]', space=smem, size = 0x4, offset = 0x4, fixed_abs, tag = 'smem constant byte address 0x4 - core index']
  #allocation1 [shape = 'u32[144,128]{1,0:T(1,128)}', space=vmem, size = 0x12000, scoped, tag = 'internal scratch']
  %s0 = inlined_call_operand.vmem [shape: f32[16,2048], index: 0, kind: input, shape index: {}]
  %s1 = inlined_call_operand.vmem [shape: f32[2048,512], index: 1, kind: input, shape index: {}]
  %s2 = inlined_call_operand.vmem [shape: f32[1,512], index: 2, kind: input, shape index: {}]
  %s3 = inlined_call_operand.vmem [shape: f32[512,128], index: 3, kind: input, shape index: {}]
  %s4 = inlined_call_operand.vmem [shape: f32[1,128], index: 4, kind: input, shape index: {}]
  %s5 = inlined_call_operand.vmem [shape: f32[16,128], index: 5, kind: output, shape index: {}]
  %s6 = sld [smem:[#allocation0]]
  $region30: #{forward_pallas.5} parent=0
    _
  %s8 = ssub.s32 1, %s6
  %s9 = scalar_select 0, %s8, %s6
  // Predicated region
  $region2: #{forward_pallas.5} parent=0 // pred_check
    _
  $region3: #{forward_pallas.5} parent=0 // pred_check_branch
    %11 = sbr.rel (0) target = $region5
  $region4: #{forward_pallas.5} parent=0 // pred_region
    _
  $region5: #{forward_pallas.5} parent=0 // pred_fallthru
    _
  // Predicated region
  $region6: #{forward_pallas.5} parent=0 // pred_check
    _
  $region7: #{forward_pallas.5} parent=0 // pred_check_branch
    %13 = sbr.rel (0) target = $region9
  $region8: #{forward_pallas.5} parent=0 // pred_region
    _
  $region9: #{forward_pallas.5} parent=0 // pred_fallthru
    _
  // Predicated region
  $region10: #{forward_pallas.5} parent=0 // pred_check
    _
  $region11: #{forward_pallas.5} parent=0 // pred_check_branch
    %15 = sbr.rel (0) target = $region13
  $region12: #{forward_pallas.5} parent=0 // pred_region
    _
  $region13: #{forward_pallas.5} parent=0 // pred_fallthru
    _
  // Predicated region
  $region14: #{forward_pallas.5} parent=0 // pred_check
    _
  $region15: #{forward_pallas.5} parent=0 // pred_check_branch
    %17 = sbr.rel (0) target = $region17
  $region16: #{forward_pallas.5} parent=0 // pred_region
    _
  $region17: #{forward_pallas.5} parent=0 // pred_fallthru
    _
  // Predicated region
  $region18: #{forward_pallas.5} parent=0 // pred_check
    _
  $region19: #{forward_pallas.5} parent=0 // pred_check_branch
    %19 = sbr.rel (0) target = $region21
  $region20: #{forward_pallas.5} parent=0 // pred_region
    _
  $region21: #{forward_pallas.5} parent=0 // pred_fallthru
    _
  %v20 = vld [vmem:[%s0] sm:$0xff]
  %v21 = vld [vmem:[%s0 + $0x8] sm:$0xff]
  %v22 = vld [vmem:[%s0 + $0x10] sm:$0xff]
  %v23 = vld [vmem:[%s0 + $0x18] sm:$0xff]
  %v24 = vld [vmem:[%s0 + $0x20] sm:$0xff]
  %v25 = vld [vmem:[%s0 + $0x28] sm:$0xff]
  %v26 = vld [vmem:[%s0 + $0x30] sm:$0xff]
  %v27 = vld [vmem:[%s0 + $0x38] sm:$0xff]
  %v28 = vld [vmem:[%s0 + $0x40] sm:$0xff]
  %v29 = vld [vmem:[%s0 + $0x48] sm:$0xff]
  %v30 = vld [vmem:[%s0 + $0x50] sm:$0xff]
  %v31 = vld [vmem:[%s0 + $0x58] sm:$0xff]
  %v32 = vld [vmem:[%s0 + $0x60] sm:$0xff]
  %v33 = vld [vmem:[%s0 + $0x68] sm:$0xff]
  %v34 = vld [vmem:[%s0 + $0x70] sm:$0xff]
  %v35 = vld [vmem:[%s0 + $0x78] sm:$0xff]
  %v36 = vld [vmem:[%s0 + $0x80] sm:$0xff]
  %v37 = vld [vmem:[%s0 + $0x88] sm:$0xff]
  %v38 = vld [vmem:[%s0 + $0x90] sm:$0xff]
  %v39 = vld [vmem:[%s0 + $0x98] sm:$0xff]
  %v40 = vld [vmem:[%s0 + $0xa0] sm:$0xff]
  %v41 = vld [vmem:[%s0 + $0xa8] sm:$0xff]
  %v42 = vld [vmem:[%s0 + $0xb0] sm:$0xff]
  %v43 = vld [vmem:[%s0 + $0xb8] sm:$0xff]
  %v44 = vld [vmem:[%s0 + $0xc0] sm:$0xff]
  %v45 = vld [vmem:[%s0 + $0xc8] sm:$0xff]
  %v46 = vld [vmem:[%s0 + $0xd0] sm:$0xff]
  %v47 = vld [vmem:[%s0 + $0xd8] sm:$0xff]
  %v48 = vld [vmem:[%s0 + $0xe0] sm:$0xff]
  %v49 = vld [vmem:[%s0 + $0xe8] sm:$0xff]
  %v50 = vld [vmem:[%s0 + $0xf0] sm:$0xff]
  %v51 = vld [vmem:[%s0 + $0xf8] sm:$0xff]
  %v52 = vld [vmem:[%s1] sm:$0xff]
  %v53 = vld [vmem:[%s1 + $0x8] sm:$0xff]
  %v54 = vld [vmem:[%s1 + $0x10] sm:$0xff]
  %v55 = vld [vmem:[%s1 + $0x18] sm:$0xff]
  %v56 = vld [vmem:[%s1 + $0x20] sm:$0xff]
  %v57 = vld [vmem:[%s1 + $0x28] sm:$0xff]
  %v58 = vld [vmem:[%s1 + $0x30] sm:$0xff]
  %v59 = vld [vmem:[%s1 + $0x38] sm:$0xff]
  %v60 = vld [vmem:[%s1 + $0x40] sm:$0xff]
  %v61 = vld [vmem:[%s1 + $0x48] sm:$0xff]
  %v62 = vld [vmem:[%s1 + $0x50] sm:$0xff]
  %v63 = vld [vmem:[%s1 + $0x58] sm:$0xff]
  %v64 = vld [vmem:[%s1 + $0x60] sm:$0xff]
  %v65 = vld [vmem:[%s1 + $0x68] sm:$0xff]
  %v66 = vld [vmem:[%s1 + $0x70] sm:$0xff]
  %v67 = vld [vmem:[%s1 + $0x78] sm:$0xff]
  %v68 = vld [vmem:[%s1 + $0x80] sm:$0xff]
  %v69 = vld [vmem:[%s1 + $0x88] sm:$0xff]
  %v70 = vld [vmem:[%s1 + $0x90] sm:$0xff]
  %v71 = vld [vmem:[%s1 + $0x98] sm:$0xff]
  %v72 = vld [vmem:[%s1 + $0xa0] sm:$0xff]
  %v73 = vld [vmem:[%s1 + $0xa8] sm:$0xff]
  %v74 = vld [vmem:[%s1 + $0xb0] sm:$0xff]
  %v75 = vld [vmem:[%s1 + $0xb8] sm:$0xff]
  %v76 = vld [vmem:[%s1 + $0xc0] sm:$0xff]
  %v77 = vld [vmem:[%s1 + $0xc8] sm:$0xff]
  %v78 = vld [vmem:[%s1 + $0xd0] sm:$0xff]
  %v79 = vld [vmem:[%s1 + $0xd8] sm:$0xff]
  %v80 = vld [vmem:[%s1 + $0xe0] sm:$0xff]
  %v81 = vld [vmem:[%s1 + $0xe8] sm:$0xff]
  %v82 = vld [vmem:[%s1 + $0xf0] sm:$0xff]
  %v83 = vld [vmem:[%s1 + $0xf8] sm:$0xff]
  %v84 = vld [vmem:[%s1 + $0x100] sm:$0xff]
  %v85 = vld [vmem:[%s1 + $0x108] sm:$0xff]
  %v86 = vld [vmem:[%s1 + $0x110] sm:$0xff]
  %v87 = vld [vmem:[%s1 + $0x118] sm:$0xff]
  %v88 = vld [vmem:[%s1 + $0x120] sm:$0xff]
  %v89 = vld [vmem:[%s1 + $0x128] sm:$0xff]
  %v90 = vld [vmem:[%s1 + $0x130] sm:$0xff]
  %v91 = vld [vmem:[%s1 + $0x138] sm:$0xff]
  %v92 = vld [vmem:[%s1 + $0x140] sm:$0xff]
  %v93 = vld [vmem:[%s1 + $0x148] sm:$0xff]
  %v94 = vld [vmem:[%s1 + $0x150] sm:$0xff]
  %v95 = vld [vmem:[%s1 + $0x158] sm:$0xff]
  %v96 = vld [vmem:[%s1 + $0x160] sm:$0xff]
  %v97 = vld [vmem:[%s1 + $0x168] sm:$0xff]
  %v98 = vld [vmem:[%s1 + $0x170] sm:$0xff]
  %v99 = vld [vmem:[%s1 + $0x178] sm:$0xff]
  %v100 = vld [vmem:[%s1 + $0x180] sm:$0xff]
  %v101 = vld [vmem:[%s1 + $0x188] sm:$0xff]
  %v102 = vld [vmem:[%s1 + $0x190] sm:$0xff]
  %v103 = vld [vmem:[%s1 + $0x198] sm:$0xff]
  %v104 = vld [vmem:[%s1 + $0x1a0] sm:$0xff]
  %v105 = vld [vmem:[%s1 + $0x1a8] sm:$0xff]
  %v106 = vld [vmem:[%s1 + $0x1b0] sm:$0xff]
  %v107 = vld [vmem:[%s1 + $0x1b8] sm:$0xff]
  %v108 = vld [vmem:[%s1 + $0x1c0] sm:$0xff]
  %v109 = vld [vmem:[%s1 + $0x1c8] sm:$0xff]
  %v110 = vld [vmem:[%s1 + $0x1d0] sm:$0xff]
  %v111 = vld [vmem:[%s1 + $0x1d8] sm:$0xff]
  %v112 = vld [vmem:[%s1 + $0x1e0] sm:$0xff]
  %v113 = vld [vmem:[%s1 + $0x1e8] sm:$0xff]
  %v114 = vld [vmem:[%s1 + $0x1f0] sm:$0xff]
  %v115 = vld [vmem:[%s1 + $0x1f8] sm:$0xff]
  %v116 = vld [vmem:[%s1 + $0x200] sm:$0xff]
  %v117 = vld [vmem:[%s1 + $0x208] sm:$0xff]
  %v118 = vld [vmem:[%s1 + $0x210] sm:$0xff]
  %v119 = vld [vmem:[%s1 + $0x218] sm:$0xff]
  %v120 = vld [vmem:[%s1 + $0x220] sm:$0xff]
  %v121 = vld [vmem:[%s1 + $0x228] sm:$0xff]
  %v122 = vld [vmem:[%s1 + $0x230] sm:$0xff]
  %v123 = vld [vmem:[%s1 + $0x238] sm:$0xff]
  %v124 = vld [vmem:[%s1 + $0x240] sm:$0xff]
  %v125 = vld [vmem:[%s1 + $0x248] sm:$0xff]
  %v126 = vld [vmem:[%s1 + $0x250] sm:$0xff]
  %v127 = vld [vmem:[%s1 + $0x258] sm:$0xff]
  %v128 = vld [vmem:[%s1 + $0x260] sm:$0xff]
  %v129 = vld [vmem:[%s1 + $0x268] sm:$0xff]
  %v130 = vld [vmem:[%s1 + $0x270] sm:$0xff]
  %v131 = vld [vmem:[%s1 + $0x278] sm:$0xff]
  %v132 = vld [vmem:[%s1 + $0x280] sm:$0xff]
  %v133 = vld [vmem:[%s1 + $0x288] sm:$0xff]
  %v134 = vld [vmem:[%s1 + $0x290] sm:$0xff]
  %v135 = vld [vmem:[%s1 + $0x298] sm:$0xff]
  %v136 = vld [vmem:[%s1 + $0x2a0] sm:$0xff]
  %v137 = vld [vmem:[%s1 + $0x2a8] sm:$0xff]
  %v138 = vld [vmem:[%s1 + $0x2b0] sm:$0xff]
  %v139 = vld [vmem:[%s1 + $0x2b8] sm:$0xff]
  %v140 = vld [vmem:[%s1 + $0x2c0] sm:$0xff]
  %v141 = vld [vmem:[%s1 + $0x2c8] sm:$0xff]
  %v142 = vld [vmem:[%s1 + $0x2d0] sm:$0xff]
  %v143 = vld [vmem:[%s1 + $0x2d8] sm:$0xff]
  %v144 = vld [vmem:[%s1 + $0x2e0] sm:$0xff]
  %v145 = vld [vmem:[%s1 + $0x2e8] sm:$0xff]
  %v146 = vld [vmem:[%s1 + $0x2f0] sm:$0xff]
  %v147 = vld [vmem:[%s1 + $0x2f8] sm:$0xff]
  %v148 = vld [vmem:[%s1 + $0x300] sm:$0xff]
  %v149 = vld [vmem:[%s1 + $0x308] sm:$0xff]
  %v150 = vld [vmem:[%s1 + $0x310] sm:$0xff]
  %v151 = vld [vmem:[%s1 + $0x318] sm:$0xff]
  %v152 = vld [vmem:[%s1 + $0x320] sm:$0xff]
  %v153 = vld [vmem:[%s1 + $0x328] sm:$0xff]
  %v154 = vld [vmem:[%s1 + $0x330] sm:$0xff]
  %v155 = vld [vmem:[%s1 + $0x338] sm:$0xff]
  %v156 = vld [vmem:[%s1 + $0x340] sm:$0xff]
  %v157 = vld [vmem:[%s1 + $0x348] sm:$0xff]
  %v158 = vld [vmem:[%s1 + $0x350] sm:$0xff]
  %v159 = vld [vmem:[%s1 + $0x358] sm:$0xff]
  %v160 = vld [vmem:[%s1 + $0x360] sm:$0xff]
  %v161 = vld [vmem:[%s1 + $0x368] sm:$0xff]
  %v162 = vld [vmem:[%s1 + $0x370] sm:$0xff]
  %v163 = vld [vmem:[%s1 + $0x378] sm:$0xff]
  %v164 = vld [vmem:[%s1 + $0x380] sm:$0xff]
  %v165 = vld [vmem:[%s1 + $0x388] sm:$0xff]
  %v166 = vld [vmem:[%s1 + $0x390] sm:$0xff]
  %v167 = vld [vmem:[%s1 + $0x398] sm:$0xff]
  %v168 = vld [vmem:[%s1 + $0x3a0] sm:$0xff]
  %v169 = vld [vmem:[%s1 + $0x3a8] sm:$0xff]
  %v170 = vld [vmem:[%s1 + $0x3b0] sm:$0xff]
  %v171 = vld [vmem:[%s1 + $0x3b8] sm:$0xff]
  %v172 = vld [vmem:[%s1 + $0x3c0] sm:$0xff]
  %v173 = vld [vmem:[%s1 + $0x3c8] sm:$0xff]
  %v174 = vld [vmem:[%s1 + $0x3d0] sm:$0xff]
  %v175 = vld [vmem:[%s1 + $0x3d8] sm:$0xff]
  %v176 = vld [vmem:[%s1 + $0x3e0] sm:$0xff]
  %v177 = vld [vmem:[%s1 + $0x3e8] sm:$0xff]
  %v178 = vld [vmem:[%s1 + $0x3f0] sm:$0xff]
  %v179 = vld [vmem:[%s1 + $0x3f8] sm:$0xff]
  %v180 = vld [vmem:[%s1 + $0x400] sm:$0xff]
  %v181 = vld [vmem:[%s1 + $0x408] sm:$0xff]
  %v182 = vld [vmem:[%s1 + $0x410] sm:$0xff]
  %v183 = vld [vmem:[%s1 + $0x418] sm:$0xff]
  %v184 = vld [vmem:[%s1 + $0x420] sm:$0xff]
  %v185 = vld [vmem:[%s1 + $0x428] sm:$0xff]
  %v186 = vld [vmem:[%s1 + $0x430] sm:$0xff]
  %v187 = vld [vmem:[%s1 + $0x438] sm:$0xff]
  %v188 = vld [vmem:[%s1 + $0x440] sm:$0xff]
  %v189 = vld [vmem:[%s1 + $0x448] sm:$0xff]
  %v190 = vld [vmem:[%s1 + $0x450] sm:$0xff]
  %v191 = vld [vmem:[%s1 + $0x458] sm:$0xff]
  %v192 = vld [vmem:[%s1 + $0x460] sm:$0xff]
  %v193 = vld [vmem:[%s1 + $0x468] sm:$0xff]
  %v194 = vld [vmem:[%s1 + $0x470] sm:$0xff]
  %v195 = vld [vmem:[%s1 + $0x478] sm:$0xff]
  %v196 = vld [vmem:[%s1 + $0x480] sm:$0xff]
  %v197 = vld [vmem:[%s1 + $0x488] sm:$0xff]
  %v198 = vld [vmem:[%s1 + $0x490] sm:$0xff]
  %v199 = vld [vmem:[%s1 + $0x498] sm:$0xff]
  %v200 = vld [vmem:[%s1 + $0x4a0] sm:$0xff]
  %v201 = vld [vmem:[%s1 + $0x4a8] sm:$0xff]
  %v202 = vld [vmem:[%s1 + $0x4b0] sm:$0xff]
  %v203 = vld [vmem:[%s1 + $0x4b8] sm:$0xff]
  %v204 = vld [vmem:[%s1 + $0x4c0] sm:$0xff]
  %v205 = vld [vmem:[%s1 + $0x4c8] sm:$0xff]
  %v206 = vld [vmem:[%s1 + $0x4d0] sm:$0xff]
  %v207 = vld [vmem:[%s1 + $0x4d8] sm:$0xff]
  %v208 = vld [vmem:[%s1 + $0x4e0] sm:$0xff]
  %v209 = vld [vmem:[%s1 + $0x4e8] sm:$0xff]
  %v210 = vld [vmem:[%s1 + $0x4f0] sm:$0xff]
  %v211 = vld [vmem:[%s1 + $0x4f8] sm:$0xff]
  %v212 = vld [vmem:[%s1 + $0x500] sm:$0xff]
  %v213 = vld [vmem:[%s1 + $0x508] sm:$0xff]
  %v214 = vld [vmem:[%s1 + $0x510] sm:$0xff]
  %v215 = vld [vmem:[%s1 + $0x518] sm:$0xff]
  %v216 = vld [vmem:[%s1 + $0x520] sm:$0xff]
  %v217 = vld [vmem:[%s1 + $0x528] sm:$0xff]
  %v218 = vld [vmem:[%s1 + $0x530] sm:$0xff]
  %v219 = vld [vmem:[%s1 + $0x538] sm:$0xff]
  %v220 = vld [vmem:[%s1 + $0x540] sm:$0xff]
  %v221 = vld [vmem:[%s1 + $0x548] sm:$0xff]
  %v222 = vld [vmem:[%s1 + $0x550] sm:$0xff]
  %v223 = vld [vmem:[%s1 + $0x558] sm:$0xff]
  %v224 = vld [vmem:[%s1 + $0x560] sm:$0xff]
  %v225 = vld [vmem:[%s1 + $0x568] sm:$0xff]
  %v226 = vld [vmem:[%s1 + $0x570] sm:$0xff]
  %v227 = vld [vmem:[%s1 + $0x578] sm:$0xff]
  %v228 = vld [vmem:[%s1 + $0x580] sm:$0xff]
  %v229 = vld [vmem:[%s1 + $0x588] sm:$0xff]
  %v230 = vld [vmem:[%s1 + $0x590] sm:$0xff]
  %v231 = vld [vmem:[%s1 + $0x598] sm:$0xff]
  %v232 = vld [vmem:[%s1 + $0x5a0] sm:$0xff]
  %v233 = vld [vmem:[%s1 + $0x5a8] sm:$0xff]
  %v234 = vld [vmem:[%s1 + $0x5b0] sm:$0xff]
  %v235 = vld [vmem:[%s1 + $0x5b8] sm:$0xff]
  %v236 = vld [vmem:[%s1 + $0x5c0] sm:$0xff]
  %v237 = vld [vmem:[%s1 + $0x5c8] sm:$0xff]
  %v238 = vld [vmem:[%s1 + $0x5d0] sm:$0xff]
  %v239 = vld [vmem:[%s1 + $0x5d8] sm:$0xff]
  %v240 = vld [vmem:[%s1 + $0x5e0] sm:$0xff]
  %v241 = vld [vmem:[%s1 + $0x5e8] sm:$0xff]
  %v242 = vld [vmem:[%s1 + $0x5f0] sm:$0xff]
  %v243 = vld [vmem:[%s1 + $0x5f8] sm:$0xff]
  %v244 = vld [vmem:[%s1 + $0x600] sm:$0xff]
  %v245 = vld [vmem:[%s1 + $0x608] sm:$0xff]
  %v246 = vld [vmem:[%s1 + $0x610] sm:$0xff]
  %v247 = vld [vmem:[%s1 + $0x618] sm:$0xff]
  %v248 = vld [vmem:[%s1 + $0x620] sm:$0xff]
  %v249 = vld [vmem:[%s1 + $0x628] sm:$0xff]
  %v250 = vld [vmem:[%s1 + $0x630] sm:$0xff]
  %v251 = vld [vmem:[%s1 + $0x638] sm:$0xff]
  %v252 = vld [vmem:[%s1 + $0x640] sm:$0xff]
  %v253 = vld [vmem:[%s1 + $0x648] sm:$0xff]
  %v254 = vld [vmem:[%s1 + $0x650] sm:$0xff]
  %v255 = vld [vmem:[%s1 + $0x658] sm:$0xff]
  %v256 = vld [vmem:[%s1 + $0x660] sm:$0xff]
  %v257 = vld [vmem:[%s1 + $0x668] sm:$0xff]
  %v258 = vld [vmem:[%s1 + $0x670] sm:$0xff]
  %v259 = vld [vmem:[%s1 + $0x678] sm:$0xff]
  %v260 = vld [vmem:[%s1 + $0x680] sm:$0xff]
  %v261 = vld [vmem:[%s1 + $0x688] sm:$0xff]
  %v262 = vld [vmem:[%s1 + $0x690] sm:$0xff]
  %v263 = vld [vmem:[%s1 + $0x698] sm:$0xff]
  %v264 = vld [vmem:[%s1 + $0x6a0] sm:$0xff]
  %v265 = vld [vmem:[%s1 + $0x6a8] sm:$0xff]
  %v266 = vld [vmem:[%s1 + $0x6b0] sm:$0xff]
  %v267 = vld [vmem:[%s1 + $0x6b8] sm:$0xff]
  %v268 = vld [vmem:[%s1 + $0x6c0] sm:$0xff]
  %v269 = vld [vmem:[%s1 + $0x6c8] sm:$0xff]
  %v270 = vld [vmem:[%s1 + $0x6d0] sm:$0xff]
  %v271 = vld [vmem:[%s1 + $0x6d8] sm:$0xff]
  %v272 = vld [vmem:[%s1 + $0x6e0] sm:$0xff]
  %v273 = vld [vmem:[%s1 + $0x6e8] sm:$0xff]
  %v274 = vld [vmem:[%s1 + $0x6f0] sm:$0xff]
  %v275 = vld [vmem:[%s1 + $0x6f8] sm:$0xff]
  %v276 = vld [vmem:[%s1 + $0x700] sm:$0xff]
  %v277 = vld [vmem:[%s1 + $0x708] sm:$0xff]
  %v278 = vld [vmem:[%s1 + $0x710] sm:$0xff]
  %v279 = vld [vmem:[%s1 + $0x718] sm:$0xff]
  %v280 = vld [vmem:[%s1 + $0x720] sm:$0xff]
  %v281 = vld [vmem:[%s1 + $0x728] sm:$0xff]
  %v282 = vld [vmem:[%s1 + $0x730] sm:$0xff]
  %v283 = vld [vmem:[%s1 + $0x738] sm:$0xff]
  %v284 = vld [vmem:[%s1 + $0x740] sm:$0xff]
  %v285 = vld [vmem:[%s1 + $0x748] sm:$0xff]
  %v286 = vld [vmem:[%s1 + $0x750] sm:$0xff]
  %v287 = vld [vmem:[%s1 + $0x758] sm:$0xff]
  %v288 = vld [vmem:[%s1 + $0x760] sm:$0xff]
  %v289 = vld [vmem:[%s1 + $0x768] sm:$0xff]
  %v290 = vld [vmem:[%s1 + $0x770] sm:$0xff]
  %v291 = vld [vmem:[%s1 + $0x778] sm:$0xff]
  %v292 = vld [vmem:[%s1 + $0x780] sm:$0xff]
  %v293 = vld [vmem:[%s1 + $0x788] sm:$0xff]
  %v294 = vld [vmem:[%s1 + $0x790] sm:$0xff]
  %v295 = vld [vmem:[%s1 + $0x798] sm:$0xff]
  %v296 = vld [vmem:[%s1 + $0x7a0] sm:$0xff]
  %v297 = vld [vmem:[%s1 + $0x7a8] sm:$0xff]
  %v298 = vld [vmem:[%s1 + $0x7b0] sm:$0xff]
  %v299 = vld [vmem:[%s1 + $0x7b8] sm:$0xff]
  %v300 = vld [vmem:[%s1 + $0x7c0] sm:$0xff]
  %v301 = vld [vmem:[%s1 + $0x7c8] sm:$0xff]
  %v302 = vld [vmem:[%s1 + $0x7d0] sm:$0xff]
  %v303 = vld [vmem:[%s1 + $0x7d8] sm:$0xff]
  %v304 = vld [vmem:[%s1 + $0x7e0] sm:$0xff]
  %v305 = vld [vmem:[%s1 + $0x7e8] sm:$0xff]
  %v306 = vld [vmem:[%s1 + $0x7f0] sm:$0xff]
  %v307 = vld [vmem:[%s1 + $0x7f8] sm:$0xff]
  %v308 = vld [vmem:[%s1 + $0x800] sm:$0xff]
  %v309 = vld [vmem:[%s1 + $0x808] sm:$0xff]
  %v310 = vld [vmem:[%s1 + $0x810] sm:$0xff]
  %v311 = vld [vmem:[%s1 + $0x818] sm:$0xff]
  %v312 = vld [vmem:[%s1 + $0x820] sm:$0xff]
  %v313 = vld [vmem:[%s1 + $0x828] sm:$0xff]
  %v314 = vld [vmem:[%s1 + $0x830] sm:$0xff]
  %v315 = vld [vmem:[%s1 + $0x838] sm:$0xff]
  %v316 = vld [vmem:[%s1 + $0x840] sm:$0xff]
  %v317 = vld [vmem:[%s1 + $0x848] sm:$0xff]
  %v318 = vld [vmem:[%s1 + $0x850] sm:$0xff]
  %v319 = vld [vmem:[%s1 + $0x858] sm:$0xff]
  %v320 = vld [vmem:[%s1 + $0x860] sm:$0xff]
  %v321 = vld [vmem:[%s1 + $0x868] sm:$0xff]
  %v322 = vld [vmem:[%s1 + $0x870] sm:$0xff]
  %v323 = vld [vmem:[%s1 + $0x878] sm:$0xff]
  %v324 = vld [vmem:[%s1 + $0x880] sm:$0xff]
  %v325 = vld [vmem:[%s1 + $0x888] sm:$0xff]
  %v326 = vld [vmem:[%s1 + $0x890] sm:$0xff]
  %v327 = vld [vmem:[%s1 + $0x898] sm:$0xff]
  %v328 = vld [vmem:[%s1 + $0x8a0] sm:$0xff]
  %v329 = vld [vmem:[%s1 + $0x8a8] sm:$0xff]
  %v330 = vld [vmem:[%s1 + $0x8b0] sm:$0xff]
  %v331 = vld [vmem:[%s1 + $0x8b8] sm:$0xff]
  %v332 = vld [vmem:[%s1 + $0x8c0] sm:$0xff]
  %v333 = vld [vmem:[%s1 + $0x8c8] sm:$0xff]
  %v334 = vld [vmem:[%s1 + $0x8d0] sm:$0xff]
  %v335 = vld [vmem:[%s1 + $0x8d8] sm:$0xff]
  %v336 = vld [vmem:[%s1 + $0x8e0] sm:$0xff]
  %v337 = vld [vmem:[%s1 + $0x8e8] sm:$0xff]
  %v338 = vld [vmem:[%s1 + $0x8f0] sm:$0xff]
  %v339 = vld [vmem:[%s1 + $0x8f8] sm:$0xff]
  %v340 = vld [vmem:[%s1 + $0x900] sm:$0xff]
  %v341 = vld [vmem:[%s1 + $0x908] sm:$0xff]
  %v342 = vld [vmem:[%s1 + $0x910] sm:$0xff]
  %v343 = vld [vmem:[%s1 + $0x918] sm:$0xff]
  %v344 = vld [vmem:[%s1 + $0x920] sm:$0xff]
  %v345 = vld [vmem:[%s1 + $0x928] sm:$0xff]
  %v346 = vld [vmem:[%s1 + $0x930] sm:$0xff]
  %v347 = vld [vmem:[%s1 + $0x938] sm:$0xff]
  %v348 = vld [vmem:[%s1 + $0x940] sm:$0xff]
  %v349 = vld [vmem:[%s1 + $0x948] sm:$0xff]
  %v350 = vld [vmem:[%s1 + $0x950] sm:$0xff]
  %v351 = vld [vmem:[%s1 + $0x958] sm:$0xff]
  %v352 = vld [vmem:[%s1 + $0x960] sm:$0xff]
  %v353 = vld [vmem:[%s1 + $0x968] sm:$0xff]
  %v354 = vld [vmem:[%s1 + $0x970] sm:$0xff]
  %v355 = vld [vmem:[%s1 + $0x978] sm:$0xff]
  %v356 = vld [vmem:[%s1 + $0x980] sm:$0xff]
  %v357 = vld [vmem:[%s1 + $0x988] sm:$0xff]
  %v358 = vld [vmem:[%s1 + $0x990] sm:$0xff]
  %v359 = vld [vmem:[%s1 + $0x998] sm:$0xff]
  %v360 = vld [vmem:[%s1 + $0x9a0] sm:$0xff]
  %v361 = vld [vmem:[%s1 + $0x9a8] sm:$0xff]
  %v362 = vld [vmem:[%s1 + $0x9b0] sm:$0xff]
  %v363 = vld [vmem:[%s1 + $0x9b8] sm:$0xff]
  %v364 = vld [vmem:[%s1 + $0x9c0] sm:$0xff]
  %v365 = vld [vmem:[%s1 + $0x9c8] sm:$0xff]
  %v366 = vld [vmem:[%s1 + $0x9d0] sm:$0xff]
  %v367 = vld [vmem:[%s1 + $0x9d8] sm:$0xff]
  %v368 = vld [vmem:[%s1 + $0x9e0] sm:$0xff]
  %v369 = vld [vmem:[%s1 + $0x9e8] sm:$0xff]
  %v370 = vld [vmem:[%s1 + $0x9f0] sm:$0xff]
  %v371 = vld [vmem:[%s1 + $0x9f8] sm:$0xff]
  %v372 = vld [vmem:[%s1 + $0xa00] sm:$0xff]
  %v373 = vld [vmem:[%s1 + $0xa08] sm:$0xff]
  %v374 = vld [vmem:[%s1 + $0xa10] sm:$0xff]
  %v375 = vld [vmem:[%s1 + $0xa18] sm:$0xff]
  %v376 = vld [vmem:[%s1 + $0xa20] sm:$0xff]
  %v377 = vld [vmem:[%s1 + $0xa28] sm:$0xff]
  %v378 = vld [vmem:[%s1 + $0xa30] sm:$0xff]
  %v379 = vld [vmem:[%s1 + $0xa38] sm:$0xff]
  %v380 = vld [vmem:[%s1 + $0xa40] sm:$0xff]
  %v381 = vld [vmem:[%s1 + $0xa48] sm:$0xff]
  %v382 = vld [vmem:[%s1 + $0xa50] sm:$0xff]
  %v383 = vld [vmem:[%s1 + $0xa58] sm:$0xff]
  %v384 = vld [vmem:[%s1 + $0xa60] sm:$0xff]
  %v385 = vld [vmem:[%s1 + $0xa68] sm:$0xff]
  %v386 = vld [vmem:[%s1 + $0xa70] sm:$0xff]
  %v387 = vld [vmem:[%s1 + $0xa78] sm:$0xff]
  %v388 = vld [vmem:[%s1 + $0xa80] sm:$0xff]
  %v389 = vld [vmem:[%s1 + $0xa88] sm:$0xff]
  %v390 = vld [vmem:[%s1 + $0xa90] sm:$0xff]
  %v391 = vld [vmem:[%s1 + $0xa98] sm:$0xff]
  %v392 = vld [vmem:[%s1 + $0xaa0] sm:$0xff]
  %v393 = vld [vmem:[%s1 + $0xaa8] sm:$0xff]
  %v394 = vld [vmem:[%s1 + $0xab0] sm:$0xff]
  %v395 = vld [vmem:[%s1 + $0xab8] sm:$0xff]
  %v396 = vld [vmem:[%s1 + $0xac0] sm:$0xff]
  %v397 = vld [vmem:[%s1 + $0xac8] sm:$0xff]
  %v398 = vld [vmem:[%s1 + $0xad0] sm:$0xff]
  %v399 = vld [vmem:[%s1 + $0xad8] sm:$0xff]
  %v400 = vld [vmem:[%s1 + $0xae0] sm:$0xff]
  %v401 = vld [vmem:[%s1 + $0xae8] sm:$0xff]
  %v402 = vld [vmem:[%s1 + $0xaf0] sm:$0xff]
  %v403 = vld [vmem:[%s1 + $0xaf8] sm:$0xff]
  %v404 = vld [vmem:[%s1 + $0xb00] sm:$0xff]
  %v405 = vld [vmem:[%s1 + $0xb08] sm:$0xff]
  %v406 = vld [vmem:[%s1 + $0xb10] sm:$0xff]
  %v407 = vld [vmem:[%s1 + $0xb18] sm:$0xff]
  %v408 = vld [vmem:[%s1 + $0xb20] sm:$0xff]
  %v409 = vld [vmem:[%s1 + $0xb28] sm:$0xff]
  %v410 = vld [vmem:[%s1 + $0xb30] sm:$0xff]
  %v411 = vld [vmem:[%s1 + $0xb38] sm:$0xff]
  %v412 = vld [vmem:[%s1 + $0xb40] sm:$0xff]
  %v413 = vld [vmem:[%s1 + $0xb48] sm:$0xff]
  %v414 = vld [vmem:[%s1 + $0xb50] sm:$0xff]
  %v415 = vld [vmem:[%s1 + $0xb58] sm:$0xff]
  %v416 = vld [vmem:[%s1 + $0xb60] sm:$0xff]
  %v417 = vld [vmem:[%s1 + $0xb68] sm:$0xff]
  %v418 = vld [vmem:[%s1 + $0xb70] sm:$0xff]
  %v419 = vld [vmem:[%s1 + $0xb78] sm:$0xff]
  %v420 = vld [vmem:[%s1 + $0xb80] sm:$0xff]
  %v421 = vld [vmem:[%s1 + $0xb88] sm:$0xff]
  %v422 = vld [vmem:[%s1 + $0xb90] sm:$0xff]
  %v423 = vld [vmem:[%s1 + $0xb98] sm:$0xff]
  %v424 = vld [vmem:[%s1 + $0xba0] sm:$0xff]
  %v425 = vld [vmem:[%s1 + $0xba8] sm:$0xff]
  %v426 = vld [vmem:[%s1 + $0xbb0] sm:$0xff]
  %v427 = vld [vmem:[%s1 + $0xbb8] sm:$0xff]
  %v428 = vld [vmem:[%s1 + $0xbc0] sm:$0xff]
  %v429 = vld [vmem:[%s1 + $0xbc8] sm:$0xff]
  %v430 = vld [vmem:[%s1 + $0xbd0] sm:$0xff]
  %v431 = vld [vmem:[%s1 + $0xbd8] sm:$0xff]
  %v432 = vld [vmem:[%s1 + $0xbe0] sm:$0xff]
  %v433 = vld [vmem:[%s1 + $0xbe8] sm:$0xff]
  %v434 = vld [vmem:[%s1 + $0xbf0] sm:$0xff]
  %v435 = vld [vmem:[%s1 + $0xbf8] sm:$0xff]
  %v436 = vld [vmem:[%s1 + $0xc00] sm:$0xff]
  %v437 = vld [vmem:[%s1 + $0xc08] sm:$0xff]
  %v438 = vld [vmem:[%s1 + $0xc10] sm:$0xff]
  %v439 = vld [vmem:[%s1 + $0xc18] sm:$0xff]
  %v440 = vld [vmem:[%s1 + $0xc20] sm:$0xff]
  %v441 = vld [vmem:[%s1 + $0xc28] sm:$0xff]
  %v442 = vld [vmem:[%s1 + $0xc30] sm:$0xff]
  %v443 = vld [vmem:[%s1 + $0xc38] sm:$0xff]
  %v444 = vld [vmem:[%s1 + $0xc40] sm:$0xff]
  %v445 = vld [vmem:[%s1 + $0xc48] sm:$0xff]
  %v446 = vld [vmem:[%s1 + $0xc50] sm:$0xff]
  %v447 = vld [vmem:[%s1 + $0xc58] sm:$0xff]
  %v448 = vld [vmem:[%s1 + $0xc60] sm:$0xff]
  %v449 = vld [vmem:[%s1 + $0xc68] sm:$0xff]
  %v450 = vld [vmem:[%s1 + $0xc70] sm:$0xff]
  %v451 = vld [vmem:[%s1 + $0xc78] sm:$0xff]
  %v452 = vld [vmem:[%s1 + $0xc80] sm:$0xff]
  %v453 = vld [vmem:[%s1 + $0xc88] sm:$0xff]
  %v454 = vld [vmem:[%s1 + $0xc90] sm:$0xff]
  %v455 = vld [vmem:[%s1 + $0xc98] sm:$0xff]
  %v456 = vld [vmem:[%s1 + $0xca0] sm:$0xff]
  %v457 = vld [vmem:[%s1 + $0xca8] sm:$0xff]
  %v458 = vld [vmem:[%s1 + $0xcb0] sm:$0xff]
  %v459 = vld [vmem:[%s1 + $0xcb8] sm:$0xff]
  %v460 = vld [vmem:[%s1 + $0xcc0] sm:$0xff]
  %v461 = vld [vmem:[%s1 + $0xcc8] sm:$0xff]
  %v462 = vld [vmem:[%s1 + $0xcd0] sm:$0xff]
  %v463 = vld [vmem:[%s1 + $0xcd8] sm:$0xff]
  %v464 = vld [vmem:[%s1 + $0xce0] sm:$0xff]
  %v465 = vld [vmem:[%s1 + $0xce8] sm:$0xff]
  %v466 = vld [vmem:[%s1 + $0xcf0] sm:$0xff]
  %v467 = vld [vmem:[%s1 + $0xcf8] sm:$0xff]
  %v468 = vld [vmem:[%s1 + $0xd00] sm:$0xff]
  %v469 = vld [vmem:[%s1 + $0xd08] sm:$0xff]
  %v470 = vld [vmem:[%s1 + $0xd10] sm:$0xff]
  %v471 = vld [vmem:[%s1 + $0xd18] sm:$0xff]
  %v472 = vld [vmem:[%s1 + $0xd20] sm:$0xff]
  %v473 = vld [vmem:[%s1 + $0xd28] sm:$0xff]
  %v474 = vld [vmem:[%s1 + $0xd30] sm:$0xff]
  %v475 = vld [vmem:[%s1 + $0xd38] sm:$0xff]
  %v476 = vld [vmem:[%s1 + $0xd40] sm:$0xff]
  %v477 = vld [vmem:[%s1 + $0xd48] sm:$0xff]
  %v478 = vld [vmem:[%s1 + $0xd50] sm:$0xff]
  %v479 = vld [vmem:[%s1 + $0xd58] sm:$0xff]
  %v480 = vld [vmem:[%s1 + $0xd60] sm:$0xff]
  %v481 = vld [vmem:[%s1 + $0xd68] sm:$0xff]
  %v482 = vld [vmem:[%s1 + $0xd70] sm:$0xff]
  %v483 = vld [vmem:[%s1 + $0xd78] sm:$0xff]
  %v484 = vld [vmem:[%s1 + $0xd80] sm:$0xff]
  %v485 = vld [vmem:[%s1 + $0xd88] sm:$0xff]
  %v486 = vld [vmem:[%s1 + $0xd90] sm:$0xff]
  %v487 = vld [vmem:[%s1 + $0xd98] sm:$0xff]
  %v488 = vld [vmem:[%s1 + $0xda0] sm:$0xff]
  %v489 = vld [vmem:[%s1 + $0xda8] sm:$0xff]
  %v490 = vld [vmem:[%s1 + $0xdb0] sm:$0xff]
  %v491 = vld [vmem:[%s1 + $0xdb8] sm:$0xff]
  %v492 = vld [vmem:[%s1 + $0xdc0] sm:$0xff]
  %v493 = vld [vmem:[%s1 + $0xdc8] sm:$0xff]
  %v494 = vld [vmem:[%s1 + $0xdd0] sm:$0xff]
  %v495 = vld [vmem:[%s1 + $0xdd8] sm:$0xff]
  %v496 = vld [vmem:[%s1 + $0xde0] sm:$0xff]
  %v497 = vld [vmem:[%s1 + $0xde8] sm:$0xff]
  %v498 = vld [vmem:[%s1 + $0xdf0] sm:$0xff]
  %v499 = vld [vmem:[%s1 + $0xdf8] sm:$0xff]
  %v500 = vld [vmem:[%s1 + $0xe00] sm:$0xff]
  %v501 = vld [vmem:[%s1 + $0xe08] sm:$0xff]
  %v502 = vld [vmem:[%s1 + $0xe10] sm:$0xff]
  %v503 = vld [vmem:[%s1 + $0xe18] sm:$0xff]
  %v504 = vld [vmem:[%s1 + $0xe20] sm:$0xff]
  %v505 = vld [vmem:[%s1 + $0xe28] sm:$0xff]
  %v506 = vld [vmem:[%s1 + $0xe30] sm:$0xff]
  %v507 = vld [vmem:[%s1 + $0xe38] sm:$0xff]
  %v508 = vld [vmem:[%s1 + $0xe40] sm:$0xff]
  %v509 = vld [vmem:[%s1 + $0xe48] sm:$0xff]
  %v510 = vld [vmem:[%s1 + $0xe50] sm:$0xff]
  %v511 = vld [vmem:[%s1 + $0xe58] sm:$0xff]
  %v512 = vld [vmem:[%s1 + $0xe60] sm:$0xff]
  %v513 = vld [vmem:[%s1 + $0xe68] sm:$0xff]
  %v514 = vld [vmem:[%s1 + $0xe70] sm:$0xff]
  %v515 = vld [vmem:[%s1 + $0xe78] sm:$0xff]
  %v516 = vld [vmem:[%s1 + $0xe80] sm:$0xff]
  %v517 = vld [vmem:[%s1 + $0xe88] sm:$0xff]
  %v518 = vld [vmem:[%s1 + $0xe90] sm:$0xff]
  %v519 = vld [vmem:[%s1 + $0xe98] sm:$0xff]
  %v520 = vld [vmem:[%s1 + $0xea0] sm:$0xff]
  %v521 = vld [vmem:[%s1 + $0xea8] sm:$0xff]
  %v522 = vld [vmem:[%s1 + $0xeb0] sm:$0xff]
  %v523 = vld [vmem:[%s1 + $0xeb8] sm:$0xff]
  %v524 = vld [vmem:[%s1 + $0xec0] sm:$0xff]
  %v525 = vld [vmem:[%s1 + $0xec8] sm:$0xff]
  %v526 = vld [vmem:[%s1 + $0xed0] sm:$0xff]
  %v527 = vld [vmem:[%s1 + $0xed8] sm:$0xff]
  %v528 = vld [vmem:[%s1 + $0xee0] sm:$0xff]
  %v529 = vld [vmem:[%s1 + $0xee8] sm:$0xff]
  %v530 = vld [vmem:[%s1 + $0xef0] sm:$0xff]
  %v531 = vld [vmem:[%s1 + $0xef8] sm:$0xff]
  %v532 = vld [vmem:[%s1 + $0xf00] sm:$0xff]
  %v533 = vld [vmem:[%s1 + $0xf08] sm:$0xff]
  %v534 = vld [vmem:[%s1 + $0xf10] sm:$0xff]
  %v535 = vld [vmem:[%s1 + $0xf18] sm:$0xff]
  %v536 = vld [vmem:[%s1 + $0xf20] sm:$0xff]
  %v537 = vld [vmem:[%s1 + $0xf28] sm:$0xff]
  %v538 = vld [vmem:[%s1 + $0xf30] sm:$0xff]
  %v539 = vld [vmem:[%s1 + $0xf38] sm:$0xff]
  %v540 = vld [vmem:[%s1 + $0xf40] sm:$0xff]
  %v541 = vld [vmem:[%s1 + $0xf48] sm:$0xff]
  %v542 = vld [vmem:[%s1 + $0xf50] sm:$0xff]
  %v543 = vld [vmem:[%s1 + $0xf58] sm:$0xff]
  %v544 = vld [vmem:[%s1 + $0xf60] sm:$0xff]
  %v545 = vld [vmem:[%s1 + $0xf68] sm:$0xff]
  %v546 = vld [vmem:[%s1 + $0xf70] sm:$0xff]
  %v547 = vld [vmem:[%s1 + $0xf78] sm:$0xff]
  %v548 = vld [vmem:[%s1 + $0xf80] sm:$0xff]
  %v549 = vld [vmem:[%s1 + $0xf88] sm:$0xff]
  %v550 = vld [vmem:[%s1 + $0xf90] sm:$0xff]
  %v551 = vld [vmem:[%s1 + $0xf98] sm:$0xff]
  %v552 = vld [vmem:[%s1 + $0xfa0] sm:$0xff]
  %v553 = vld [vmem:[%s1 + $0xfa8] sm:$0xff]
  %v554 = vld [vmem:[%s1 + $0xfb0] sm:$0xff]
  %v555 = vld [vmem:[%s1 + $0xfb8] sm:$0xff]
  %v556 = vld [vmem:[%s1 + $0xfc0] sm:$0xff]
  %v557 = vld [vmem:[%s1 + $0xfc8] sm:$0xff]
  %v558 = vld [vmem:[%s1 + $0xfd0] sm:$0xff]
  %v559 = vld [vmem:[%s1 + $0xfd8] sm:$0xff]
  %v560 = vld [vmem:[%s1 + $0xfe0] sm:$0xff]
  %v561 = vld [vmem:[%s1 + $0xfe8] sm:$0xff]
  %v562 = vld [vmem:[%s1 + $0xff0] sm:$0xff]
  %v563 = vld [vmem:[%s1 + $0xff8] sm:$0xff]
  %v564 = vld [vmem:[%s1 + $0x1000] sm:$0xff]
  %v565 = vld [vmem:[%s1 + $0x1008] sm:$0xff]
  %v566 = vld [vmem:[%s1 + $0x1010] sm:$0xff]
  %v567 = vld [vmem:[%s1 + $0x1018] sm:$0xff]
  %v568 = vld [vmem:[%s1 + $0x1020] sm:$0xff]
  %v569 = vld [vmem:[%s1 + $0x1028] sm:$0xff]
  %v570 = vld [vmem:[%s1 + $0x1030] sm:$0xff]
  %v571 = vld [vmem:[%s1 + $0x1038] sm:$0xff]
  %v572 = vld [vmem:[%s1 + $0x1040] sm:$0xff]
  %v573 = vld [vmem:[%s1 + $0x1048] sm:$0xff]
  %v574 = vld [vmem:[%s1 + $0x1050] sm:$0xff]
  %v575 = vld [vmem:[%s1 + $0x1058] sm:$0xff]
  %v576 = vld [vmem:[%s1 + $0x1060] sm:$0xff]
  %v577 = vld [vmem:[%s1 + $0x1068] sm:$0xff]
  %v578 = vld [vmem:[%s1 + $0x1070] sm:$0xff]
  %v579 = vld [vmem:[%s1 + $0x1078] sm:$0xff]
  %v580 = vld [vmem:[%s1 + $0x1080] sm:$0xff]
  %v581 = vld [vmem:[%s1 + $0x1088] sm:$0xff]
  %v582 = vld [vmem:[%s1 + $0x1090] sm:$0xff]
  %v583 = vld [vmem:[%s1 + $0x1098] sm:$0xff]
  %v584 = vld [vmem:[%s1 + $0x10a0] sm:$0xff]
  %v585 = vld [vmem:[%s1 + $0x10a8] sm:$0xff]
  %v586 = vld [vmem:[%s1 + $0x10b0] sm:$0xff]
  %v587 = vld [vmem:[%s1 + $0x10b8] sm:$0xff]
  %v588 = vld [vmem:[%s1 + $0x10c0] sm:$0xff]
  %v589 = vld [vmem:[%s1 + $0x10c8] sm:$0xff]
  %v590 = vld [vmem:[%s1 + $0x10d0] sm:$0xff]
  %v591 = vld [vmem:[%s1 + $0x10d8] sm:$0xff]
  %v592 = vld [vmem:[%s1 + $0x10e0] sm:$0xff]
  %v593 = vld [vmem:[%s1 + $0x10e8] sm:$0xff]
  %v594 = vld [vmem:[%s1 + $0x10f0] sm:$0xff]
  %v595 = vld [vmem:[%s1 + $0x10f8] sm:$0xff]
  %v596 = vld [vmem:[%s1 + $0x1100] sm:$0xff]
  %v597 = vld [vmem:[%s1 + $0x1108] sm:$0xff]
  %v598 = vld [vmem:[%s1 + $0x1110] sm:$0xff]
  %v599 = vld [vmem:[%s1 + $0x1118] sm:$0xff]
  %v600 = vld [vmem:[%s1 + $0x1120] sm:$0xff]
  %v601 = vld [vmem:[%s1 + $0x1128] sm:$0xff]
  %v602 = vld [vmem:[%s1 + $0x1130] sm:$0xff]
  %v603 = vld [vmem:[%s1 + $0x1138] sm:$0xff]
  %v604 = vld [vmem:[%s1 + $0x1140] sm:$0xff]
  %v605 = vld [vmem:[%s1 + $0x1148] sm:$0xff]
  %v606 = vld [vmem:[%s1 + $0x1150] sm:$0xff]
  %v607 = vld [vmem:[%s1 + $0x1158] sm:$0xff]
  %v608 = vld [vmem:[%s1 + $0x1160] sm:$0xff]
  %v609 = vld [vmem:[%s1 + $0x1168] sm:$0xff]
  %v610 = vld [vmem:[%s1 + $0x1170] sm:$0xff]
  %v611 = vld [vmem:[%s1 + $0x1178] sm:$0xff]
  %v612 = vld [vmem:[%s1 + $0x1180] sm:$0xff]
  %v613 = vld [vmem:[%s1 + $0x1188] sm:$0xff]
  %v614 = vld [vmem:[%s1 + $0x1190] sm:$0xff]
  %v615 = vld [vmem:[%s1 + $0x1198] sm:$0xff]
  %v616 = vld [vmem:[%s1 + $0x11a0] sm:$0xff]
  %v617 = vld [vmem:[%s1 + $0x11a8] sm:$0xff]
  %v618 = vld [vmem:[%s1 + $0x11b0] sm:$0xff]
  %v619 = vld [vmem:[%s1 + $0x11b8] sm:$0xff]
  %v620 = vld [vmem:[%s1 + $0x11c0] sm:$0xff]
  %v621 = vld [vmem:[%s1 + $0x11c8] sm:$0xff]
  %v622 = vld [vmem:[%s1 + $0x11d0] sm:$0xff]
  %v623 = vld [vmem:[%s1 + $0x11d8] sm:$0xff]
  %v624 = vld [vmem:[%s1 + $0x11e0] sm:$0xff]
  %v625 = vld [vmem:[%s1 + $0x11e8] sm:$0xff]
  %v626 = vld [vmem:[%s1 + $0x11f0] sm:$0xff]
  %v627 = vld [vmem:[%s1 + $0x11f8] sm:$0xff]
  %v628 = vld [vmem:[%s1 + $0x1200] sm:$0xff]
  %v629 = vld [vmem:[%s1 + $0x1208] sm:$0xff]
  %v630 = vld [vmem:[%s1 + $0x1210] sm:$0xff]
  %v631 = vld [vmem:[%s1 + $0x1218] sm:$0xff]
  %v632 = vld [vmem:[%s1 + $0x1220] sm:$0xff]
  %v633 = vld [vmem:[%s1 + $0x1228] sm:$0xff]
  %v634 = vld [vmem:[%s1 + $0x1230] sm:$0xff]
  %v635 = vld [vmem:[%s1 + $0x1238] sm:$0xff]
  %v636 = vld [vmem:[%s1 + $0x1240] sm:$0xff]
  %v637 = vld [vmem:[%s1 + $0x1248] sm:$0xff]
  %v638 = vld [vmem:[%s1 + $0x1250] sm:$0xff]
  %v639 = vld [vmem:[%s1 + $0x1258] sm:$0xff]
  %v640 = vld [vmem:[%s1 + $0x1260] sm:$0xff]
  %v641 = vld [vmem:[%s1 + $0x1268] sm:$0xff]
  %v642 = vld [vmem:[%s1 + $0x1270] sm:$0xff]
  %v643 = vld [vmem:[%s1 + $0x1278] sm:$0xff]
  %v644 = vld [vmem:[%s1 + $0x1280] sm:$0xff]
  %v645 = vld [vmem:[%s1 + $0x1288] sm:$0xff]
  %v646 = vld [vmem:[%s1 + $0x1290] sm:$0xff]
  %v647 = vld [vmem:[%s1 + $0x1298] sm:$0xff]
  %v648 = vld [vmem:[%s1 + $0x12a0] sm:$0xff]
  %v649 = vld [vmem:[%s1 + $0x12a8] sm:$0xff]
  %v650 = vld [vmem:[%s1 + $0x12b0] sm:$0xff]
  %v651 = vld [vmem:[%s1 + $0x12b8] sm:$0xff]
  %v652 = vld [vmem:[%s1 + $0x12c0] sm:$0xff]
  %v653 = vld [vmem:[%s1 + $0x12c8] sm:$0xff]
  %v654 = vld [vmem:[%s1 + $0x12d0] sm:$0xff]
  %v655 = vld [vmem:[%s1 + $0x12d8] sm:$0xff]
  %v656 = vld [vmem:[%s1 + $0x12e0] sm:$0xff]
  %v657 = vld [vmem:[%s1 + $0x12e8] sm:$0xff]
  %v658 = vld [vmem:[%s1 + $0x12f0] sm:$0xff]
  %v659 = vld [vmem:[%s1 + $0x12f8] sm:$0xff]
  %v660 = vld [vmem:[%s1 + $0x1300] sm:$0xff]
  %v661 = vld [vmem:[%s1 + $0x1308] sm:$0xff]
  %v662 = vld [vmem:[%s1 + $0x1310] sm:$0xff]
  %v663 = vld [vmem:[%s1 + $0x1318] sm:$0xff]
  %v664 = vld [vmem:[%s1 + $0x1320] sm:$0xff]
  %v665 = vld [vmem:[%s1 + $0x1328] sm:$0xff]
  %v666 = vld [vmem:[%s1 + $0x1330] sm:$0xff]
  %v667 = vld [vmem:[%s1 + $0x1338] sm:$0xff]
  %v668 = vld [vmem:[%s1 + $0x1340] sm:$0xff]
  %v669 = vld [vmem:[%s1 + $0x1348] sm:$0xff]
  %v670 = vld [vmem:[%s1 + $0x1350] sm:$0xff]
  %v671 = vld [vmem:[%s1 + $0x1358] sm:$0xff]
  %v672 = vld [vmem:[%s1 + $0x1360] sm:$0xff]
  %v673 = vld [vmem:[%s1 + $0x1368] sm:$0xff]
  %v674 = vld [vmem:[%s1 + $0x1370] sm:$0xff]
  %v675 = vld [vmem:[%s1 + $0x1378] sm:$0xff]
  %v676 = vld [vmem:[%s1 + $0x1380] sm:$0xff]
  %v677 = vld [vmem:[%s1 + $0x1388] sm:$0xff]
  %v678 = vld [vmem:[%s1 + $0x1390] sm:$0xff]
  %v679 = vld [vmem:[%s1 + $0x1398] sm:$0xff]
  %v680 = vld [vmem:[%s1 + $0x13a0] sm:$0xff]
  %v681 = vld [vmem:[%s1 + $0x13a8] sm:$0xff]
  %v682 = vld [vmem:[%s1 + $0x13b0] sm:$0xff]
  %v683 = vld [vmem:[%s1 + $0x13b8] sm:$0xff]
  %v684 = vld [vmem:[%s1 + $0x13c0] sm:$0xff]
  %v685 = vld [vmem:[%s1 + $0x13c8] sm:$0xff]
  %v686 = vld [vmem:[%s1 + $0x13d0] sm:$0xff]
  %v687 = vld [vmem:[%s1 + $0x13d8] sm:$0xff]
  %v688 = vld [vmem:[%s1 + $0x13e0] sm:$0xff]
  %v689 = vld [vmem:[%s1 + $0x13e8] sm:$0xff]
  %v690 = vld [vmem:[%s1 + $0x13f0] sm:$0xff]
  %v691 = vld [vmem:[%s1 + $0x13f8] sm:$0xff]
  %v692 = vld [vmem:[%s1 + $0x1400] sm:$0xff]
  %v693 = vld [vmem:[%s1 + $0x1408] sm:$0xff]
  %v694 = vld [vmem:[%s1 + $0x1410] sm:$0xff]
  %v695 = vld [vmem:[%s1 + $0x1418] sm:$0xff]
  %v696 = vld [vmem:[%s1 + $0x1420] sm:$0xff]
  %v697 = vld [vmem:[%s1 + $0x1428] sm:$0xff]
  %v698 = vld [vmem:[%s1 + $0x1430] sm:$0xff]
  %v699 = vld [vmem:[%s1 + $0x1438] sm:$0xff]
  %v700 = vld [vmem:[%s1 + $0x1440] sm:$0xff]
  %v701 = vld [vmem:[%s1 + $0x1448] sm:$0xff]
  %v702 = vld [vmem:[%s1 + $0x1450] sm:$0xff]
  %v703 = vld [vmem:[%s1 + $0x1458] sm:$0xff]
  %v704 = vld [vmem:[%s1 + $0x1460] sm:$0xff]
  %v705 = vld [vmem:[%s1 + $0x1468] sm:$0xff]
  %v706 = vld [vmem:[%s1 + $0x1470] sm:$0xff]
  %v707 = vld [vmem:[%s1 + $0x1478] sm:$0xff]
  %v708 = vld [vmem:[%s1 + $0x1480] sm:$0xff]
  %v709 = vld [vmem:[%s1 + $0x1488] sm:$0xff]
  %v710 = vld [vmem:[%s1 + $0x1490] sm:$0xff]
  %v711 = vld [vmem:[%s1 + $0x1498] sm:$0xff]
  %v712 = vld [vmem:[%s1 + $0x14a0] sm:$0xff]
  %v713 = vld [vmem:[%s1 + $0x14a8] sm:$0xff]
  %v714 = vld [vmem:[%s1 + $0x14b0] sm:$0xff]
  %v715 = vld [vmem:[%s1 + $0x14b8] sm:$0xff]
  %v716 = vld [vmem:[%s1 + $0x14c0] sm:$0xff]
  %v717 = vld [vmem:[%s1 + $0x14c8] sm:$0xff]
  %v718 = vld [vmem:[%s1 + $0x14d0] sm:$0xff]
  %v719 = vld [vmem:[%s1 + $0x14d8] sm:$0xff]
  %v720 = vld [vmem:[%s1 + $0x14e0] sm:$0xff]
  %v721 = vld [vmem:[%s1 + $0x14e8] sm:$0xff]
  %v722 = vld [vmem:[%s1 + $0x14f0] sm:$0xff]
  %v723 = vld [vmem:[%s1 + $0x14f8] sm:$0xff]
  %v724 = vld [vmem:[%s1 + $0x1500] sm:$0xff]
  %v725 = vld [vmem:[%s1 + $0x1508] sm:$0xff]
  %v726 = vld [vmem:[%s1 + $0x1510] sm:$0xff]
  %v727 = vld [vmem:[%s1 + $0x1518] sm:$0xff]
  %v728 = vld [vmem:[%s1 + $0x1520] sm:$0xff]
  %v729 = vld [vmem:[%s1 + $0x1528] sm:$0xff]
  %v730 = vld [vmem:[%s1 + $0x1530] sm:$0xff]
  %v731 = vld [vmem:[%s1 + $0x1538] sm:$0xff]
  %v732 = vld [vmem:[%s1 + $0x1540] sm:$0xff]
  %v733 = vld [vmem:[%s1 + $0x1548] sm:$0xff]
  %v734 = vld [vmem:[%s1 + $0x1550] sm:$0xff]
  %v735 = vld [vmem:[%s1 + $0x1558] sm:$0xff]
  %v736 = vld [vmem:[%s1 + $0x1560] sm:$0xff]
  %v737 = vld [vmem:[%s1 + $0x1568] sm:$0xff]
  %v738 = vld [vmem:[%s1 + $0x1570] sm:$0xff]
  %v739 = vld [vmem:[%s1 + $0x1578] sm:$0xff]
  %v740 = vld [vmem:[%s1 + $0x1580] sm:$0xff]
  %v741 = vld [vmem:[%s1 + $0x1588] sm:$0xff]
  %v742 = vld [vmem:[%s1 + $0x1590] sm:$0xff]
  %v743 = vld [vmem:[%s1 + $0x1598] sm:$0xff]
  %v744 = vld [vmem:[%s1 + $0x15a0] sm:$0xff]
  %v745 = vld [vmem:[%s1 + $0x15a8] sm:$0xff]
  %v746 = vld [vmem:[%s1 + $0x15b0] sm:$0xff]
  %v747 = vld [vmem:[%s1 + $0x15b8] sm:$0xff]
  %v748 = vld [vmem:[%s1 + $0x15c0] sm:$0xff]
  %v749 = vld [vmem:[%s1 + $0x15c8] sm:$0xff]
  %v750 = vld [vmem:[%s1 + $0x15d0] sm:$0xff]
  %v751 = vld [vmem:[%s1 + $0x15d8] sm:$0xff]
  %v752 = vld [vmem:[%s1 + $0x15e0] sm:$0xff]
  %v753 = vld [vmem:[%s1 + $0x15e8] sm:$0xff]
  %v754 = vld [vmem:[%s1 + $0x15f0] sm:$0xff]
  %v755 = vld [vmem:[%s1 + $0x15f8] sm:$0xff]
  %v756 = vld [vmem:[%s1 + $0x1600] sm:$0xff]
  %v757 = vld [vmem:[%s1 + $0x1608] sm:$0xff]
  %v758 = vld [vmem:[%s1 + $0x1610] sm:$0xff]
  %v759 = vld [vmem:[%s1 + $0x1618] sm:$0xff]
  %v760 = vld [vmem:[%s1 + $0x1620] sm:$0xff]
  %v761 = vld [vmem:[%s1 + $0x1628] sm:$0xff]
  %v762 = vld [vmem:[%s1 + $0x1630] sm:$0xff]
  %v763 = vld [vmem:[%s1 + $0x1638] sm:$0xff]
  %v764 = vld [vmem:[%s1 + $0x1640] sm:$0xff]
  %v765 = vld [vmem:[%s1 + $0x1648] sm:$0xff]
  %v766 = vld [vmem:[%s1 + $0x1650] sm:$0xff]
  %v767 = vld [vmem:[%s1 + $0x1658] sm:$0xff]
  %v768 = vld [vmem:[%s1 + $0x1660] sm:$0xff]
  %v769 = vld [vmem:[%s1 + $0x1668] sm:$0xff]
  %v770 = vld [vmem:[%s1 + $0x1670] sm:$0xff]
  %v771 = vld [vmem:[%s1 + $0x1678] sm:$0xff]
  %v772 = vld [vmem:[%s1 + $0x1680] sm:$0xff]
  %v773 = vld [vmem:[%s1 + $0x1688] sm:$0xff]
  %v774 = vld [vmem:[%s1 + $0x1690] sm:$0xff]
  %v775 = vld [vmem:[%s1 + $0x1698] sm:$0xff]
  %v776 = vld [vmem:[%s1 + $0x16a0] sm:$0xff]
  %v777 = vld [vmem:[%s1 + $0x16a8] sm:$0xff]
  %v778 = vld [vmem:[%s1 + $0x16b0] sm:$0xff]
  %v779 = vld [vmem:[%s1 + $0x16b8] sm:$0xff]
  %v780 = vld [vmem:[%s1 + $0x16c0] sm:$0xff]
  %v781 = vld [vmem:[%s1 + $0x16c8] sm:$0xff]
  %v782 = vld [vmem:[%s1 + $0x16d0] sm:$0xff]
  %v783 = vld [vmem:[%s1 + $0x16d8] sm:$0xff]
  %v784 = vld [vmem:[%s1 + $0x16e0] sm:$0xff]
  %v785 = vld [vmem:[%s1 + $0x16e8] sm:$0xff]
  %v786 = vld [vmem:[%s1 + $0x16f0] sm:$0xff]
  %v787 = vld [vmem:[%s1 + $0x16f8] sm:$0xff]
  %v788 = vld [vmem:[%s1 + $0x1700] sm:$0xff]
  %v789 = vld [vmem:[%s1 + $0x1708] sm:$0xff]
  %v790 = vld [vmem:[%s1 + $0x1710] sm:$0xff]
  %v791 = vld [vmem:[%s1 + $0x1718] sm:$0xff]
  %v792 = vld [vmem:[%s1 + $0x1720] sm:$0xff]
  %v793 = vld [vmem:[%s1 + $0x1728] sm:$0xff]
  %v794 = vld [vmem:[%s1 + $0x1730] sm:$0xff]
  %v795 = vld [vmem:[%s1 + $0x1738] sm:$0xff]
  %v796 = vld [vmem:[%s1 + $0x1740] sm:$0xff]
  %v797 = vld [vmem:[%s1 + $0x1748] sm:$0xff]
  %v798 = vld [vmem:[%s1 + $0x1750] sm:$0xff]
  %v799 = vld [vmem:[%s1 + $0x1758] sm:$0xff]
  %v800 = vld [vmem:[%s1 + $0x1760] sm:$0xff]
  %v801 = vld [vmem:[%s1 + $0x1768] sm:$0xff]
  %v802 = vld [vmem:[%s1 + $0x1770] sm:$0xff]
  %v803 = vld [vmem:[%s1 + $0x1778] sm:$0xff]
  %v804 = vld [vmem:[%s1 + $0x1780] sm:$0xff]
  %v805 = vld [vmem:[%s1 + $0x1788] sm:$0xff]
  %v806 = vld [vmem:[%s1 + $0x1790] sm:$0xff]
  %v807 = vld [vmem:[%s1 + $0x1798] sm:$0xff]
  %v808 = vld [vmem:[%s1 + $0x17a0] sm:$0xff]
  %v809 = vld [vmem:[%s1 + $0x17a8] sm:$0xff]
  %v810 = vld [vmem:[%s1 + $0x17b0] sm:$0xff]
  %v811 = vld [vmem:[%s1 + $0x17b8] sm:$0xff]
  %v812 = vld [vmem:[%s1 + $0x17c0] sm:$0xff]
  %v813 = vld [vmem:[%s1 + $0x17c8] sm:$0xff]
  %v814 = vld [vmem:[%s1 + $0x17d0] sm:$0xff]
  %v815 = vld [vmem:[%s1 + $0x17d8] sm:$0xff]
  %v816 = vld [vmem:[%s1 + $0x17e0] sm:$0xff]
  %v817 = vld [vmem:[%s1 + $0x17e8] sm:$0xff]
  %v818 = vld [vmem:[%s1 + $0x17f0] sm:$0xff]
  %v819 = vld [vmem:[%s1 + $0x17f8] sm:$0xff]
  %v820 = vld [vmem:[%s1 + $0x1800] sm:$0xff]
  %v821 = vld [vmem:[%s1 + $0x1808] sm:$0xff]
  %v822 = vld [vmem:[%s1 + $0x1810] sm:$0xff]
  %v823 = vld [vmem:[%s1 + $0x1818] sm:$0xff]
  %v824 = vld [vmem:[%s1 + $0x1820] sm:$0xff]
  %v825 = vld [vmem:[%s1 + $0x1828] sm:$0xff]
  %v826 = vld [vmem:[%s1 + $0x1830] sm:$0xff]
  %v827 = vld [vmem:[%s1 + $0x1838] sm:$0xff]
  %v828 = vld [vmem:[%s1 + $0x1840] sm:$0xff]
  %v829 = vld [vmem:[%s1 + $0x1848] sm:$0xff]
  %v830 = vld [vmem:[%s1 + $0x1850] sm:$0xff]
  %v831 = vld [vmem:[%s1 + $0x1858] sm:$0xff]
  %v832 = vld [vmem:[%s1 + $0x1860] sm:$0xff]
  %v833 = vld [vmem:[%s1 + $0x1868] sm:$0xff]
  %v834 = vld [vmem:[%s1 + $0x1870] sm:$0xff]
  %v835 = vld [vmem:[%s1 + $0x1878] sm:$0xff]
  %v836 = vld [vmem:[%s1 + $0x1880] sm:$0xff]
  %v837 = vld [vmem:[%s1 + $0x1888] sm:$0xff]
  %v838 = vld [vmem:[%s1 + $0x1890] sm:$0xff]
  %v839 = vld [vmem:[%s1 + $0x1898] sm:$0xff]
  %v840 = vld [vmem:[%s1 + $0x18a0] sm:$0xff]
  %v841 = vld [vmem:[%s1 + $0x18a8] sm:$0xff]
  %v842 = vld [vmem:[%s1 + $0x18b0] sm:$0xff]
  %v843 = vld [vmem:[%s1 + $0x18b8] sm:$0xff]
  %v844 = vld [vmem:[%s1 + $0x18c0] sm:$0xff]
  %v845 = vld [vmem:[%s1 + $0x18c8] sm:$0xff]
  %v846 = vld [vmem:[%s1 + $0x18d0] sm:$0xff]
  %v847 = vld [vmem:[%s1 + $0x18d8] sm:$0xff]
  %v848 = vld [vmem:[%s1 + $0x18e0] sm:$0xff]
  %v849 = vld [vmem:[%s1 + $0x18e8] sm:$0xff]
  %v850 = vld [vmem:[%s1 + $0x18f0] sm:$0xff]
  %v851 = vld [vmem:[%s1 + $0x18f8] sm:$0xff]
  %v852 = vld [vmem:[%s1 + $0x1900] sm:$0xff]
  %v853 = vld [vmem:[%s1 + $0x1908] sm:$0xff]
  %v854 = vld [vmem:[%s1 + $0x1910] sm:$0xff]
  %v855 = vld [vmem:[%s1 + $0x1918] sm:$0xff]
  %v856 = vld [vmem:[%s1 + $0x1920] sm:$0xff]
  %v857 = vld [vmem:[%s1 + $0x1928] sm:$0xff]
  %v858 = vld [vmem:[%s1 + $0x1930] sm:$0xff]
  %v859 = vld [vmem:[%s1 + $0x1938] sm:$0xff]
  %v860 = vld [vmem:[%s1 + $0x1940] sm:$0xff]
  %v861 = vld [vmem:[%s1 + $0x1948] sm:$0xff]
  %v862 = vld [vmem:[%s1 + $0x1950] sm:$0xff]
  %v863 = vld [vmem:[%s1 + $0x1958] sm:$0xff]
  %v864 = vld [vmem:[%s1 + $0x1960] sm:$0xff]
  %v865 = vld [vmem:[%s1 + $0x1968] sm:$0xff]
  %v866 = vld [vmem:[%s1 + $0x1970] sm:$0xff]
  %v867 = vld [vmem:[%s1 + $0x1978] sm:$0xff]
  %v868 = vld [vmem:[%s1 + $0x1980] sm:$0xff]
  %v869 = vld [vmem:[%s1 + $0x1988] sm:$0xff]
  %v870 = vld [vmem:[%s1 + $0x1990] sm:$0xff]
  %v871 = vld [vmem:[%s1 + $0x1998] sm:$0xff]
  %v872 = vld [vmem:[%s1 + $0x19a0] sm:$0xff]
  %v873 = vld [vmem:[%s1 + $0x19a8] sm:$0xff]
  %v874 = vld [vmem:[%s1 + $0x19b0] sm:$0xff]
  %v875 = vld [vmem:[%s1 + $0x19b8] sm:$0xff]
  %v876 = vld [vmem:[%s1 + $0x19c0] sm:$0xff]
  %v877 = vld [vmem:[%s1 + $0x19c8] sm:$0xff]
  %v878 = vld [vmem:[%s1 + $0x19d0] sm:$0xff]
  %v879 = vld [vmem:[%s1 + $0x19d8] sm:$0xff]
  %v880 = vld [vmem:[%s1 + $0x19e0] sm:$0xff]
  %v881 = vld [vmem:[%s1 + $0x19e8] sm:$0xff]
  %v882 = vld [vmem:[%s1 + $0x19f0] sm:$0xff]
  %v883 = vld [vmem:[%s1 + $0x19f8] sm:$0xff]
  %v884 = vld [vmem:[%s1 + $0x1a00] sm:$0xff]
  %v885 = vld [vmem:[%s1 + $0x1a08] sm:$0xff]
  %v886 = vld [vmem:[%s1 + $0x1a10] sm:$0xff]
  %v887 = vld [vmem:[%s1 + $0x1a18] sm:$0xff]
  %v888 = vld [vmem:[%s1 + $0x1a20] sm:$0xff]
  %v889 = vld [vmem:[%s1 + $0x1a28] sm:$0xff]
  %v890 = vld [vmem:[%s1 + $0x1a30] sm:$0xff]
  %v891 = vld [vmem:[%s1 + $0x1a38] sm:$0xff]
  %v892 = vld [vmem:[%s1 + $0x1a40] sm:$0xff]
  %v893 = vld [vmem:[%s1 + $0x1a48] sm:$0xff]
  %v894 = vld [vmem:[%s1 + $0x1a50] sm:$0xff]
  %v895 = vld [vmem:[%s1 + $0x1a58] sm:$0xff]
  %v896 = vld [vmem:[%s1 + $0x1a60] sm:$0xff]
  %v897 = vld [vmem:[%s1 + $0x1a68] sm:$0xff]
  %v898 = vld [vmem:[%s1 + $0x1a70] sm:$0xff]
  %v899 = vld [vmem:[%s1 + $0x1a78] sm:$0xff]
  %v900 = vld [vmem:[%s1 + $0x1a80] sm:$0xff]
  %v901 = vld [vmem:[%s1 + $0x1a88] sm:$0xff]
  %v902 = vld [vmem:[%s1 + $0x1a90] sm:$0xff]
  %v903 = vld [vmem:[%s1 + $0x1a98] sm:$0xff]
  %v904 = vld [vmem:[%s1 + $0x1aa0] sm:$0xff]
  %v905 = vld [vmem:[%s1 + $0x1aa8] sm:$0xff]
  %v906 = vld [vmem:[%s1 + $0x1ab0] sm:$0xff]
  %v907 = vld [vmem:[%s1 + $0x1ab8] sm:$0xff]
  %v908 = vld [vmem:[%s1 + $0x1ac0] sm:$0xff]
  %v909 = vld [vmem:[%s1 + $0x1ac8] sm:$0xff]
  %v910 = vld [vmem:[%s1 + $0x1ad0] sm:$0xff]
  %v911 = vld [vmem:[%s1 + $0x1ad8] sm:$0xff]
  %v912 = vld [vmem:[%s1 + $0x1ae0] sm:$0xff]
  %v913 = vld [vmem:[%s1 + $0x1ae8] sm:$0xff]
  %v914 = vld [vmem:[%s1 + $0x1af0] sm:$0xff]
  %v915 = vld [vmem:[%s1 + $0x1af8] sm:$0xff]
  %v916 = vld [vmem:[%s1 + $0x1b00] sm:$0xff]
  %v917 = vld [vmem:[%s1 + $0x1b08] sm:$0xff]
  %v918 = vld [vmem:[%s1 + $0x1b10] sm:$0xff]
  %v919 = vld [vmem:[%s1 + $0x1b18] sm:$0xff]
  %v920 = vld [vmem:[%s1 + $0x1b20] sm:$0xff]
  %v921 = vld [vmem:[%s1 + $0x1b28] sm:$0xff]
  %v922 = vld [vmem:[%s1 + $0x1b30] sm:$0xff]
  %v923 = vld [vmem:[%s1 + $0x1b38] sm:$0xff]
  %v924 = vld [vmem:[%s1 + $0x1b40] sm:$0xff]
  %v925 = vld [vmem:[%s1 + $0x1b48] sm:$0xff]
  %v926 = vld [vmem:[%s1 + $0x1b50] sm:$0xff]
  %v927 = vld [vmem:[%s1 + $0x1b58] sm:$0xff]
  %v928 = vld [vmem:[%s1 + $0x1b60] sm:$0xff]
  %v929 = vld [vmem:[%s1 + $0x1b68] sm:$0xff]
  %v930 = vld [vmem:[%s1 + $0x1b70] sm:$0xff]
  %v931 = vld [vmem:[%s1 + $0x1b78] sm:$0xff]
  %v932 = vld [vmem:[%s1 + $0x1b80] sm:$0xff]
  %v933 = vld [vmem:[%s1 + $0x1b88] sm:$0xff]
  %v934 = vld [vmem:[%s1 + $0x1b90] sm:$0xff]
  %v935 = vld [vmem:[%s1 + $0x1b98] sm:$0xff]
  %v936 = vld [vmem:[%s1 + $0x1ba0] sm:$0xff]
  %v937 = vld [vmem:[%s1 + $0x1ba8] sm:$0xff]
  %v938 = vld [vmem:[%s1 + $0x1bb0] sm:$0xff]
  %v939 = vld [vmem:[%s1 + $0x1bb8] sm:$0xff]
  %v940 = vld [vmem:[%s1 + $0x1bc0] sm:$0xff]
  %v941 = vld [vmem:[%s1 + $0x1bc8] sm:$0xff]
  %v942 = vld [vmem:[%s1 + $0x1bd0] sm:$0xff]
  %v943 = vld [vmem:[%s1 + $0x1bd8] sm:$0xff]
  %v944 = vld [vmem:[%s1 + $0x1be0] sm:$0xff]
  %v945 = vld [vmem:[%s1 + $0x1be8] sm:$0xff]
  %v946 = vld [vmem:[%s1 + $0x1bf0] sm:$0xff]
  %v947 = vld [vmem:[%s1 + $0x1bf8] sm:$0xff]
  %v948 = vld [vmem:[%s1 + $0x1c00] sm:$0xff]
  %v949 = vld [vmem:[%s1 + $0x1c08] sm:$0xff]
  %v950 = vld [vmem:[%s1 + $0x1c10] sm:$0xff]
  %v951 = vld [vmem:[%s1 + $0x1c18] sm:$0xff]
  %v952 = vld [vmem:[%s1 + $0x1c20] sm:$0xff]
  %v953 = vld [vmem:[%s1 + $0x1c28] sm:$0xff]
  %v954 = vld [vmem:[%s1 + $0x1c30] sm:$0xff]
  %v955 = vld [vmem:[%s1 + $0x1c38] sm:$0xff]
  %v956 = vld [vmem:[%s1 + $0x1c40] sm:$0xff]
  %v957 = vld [vmem:[%s1 + $0x1c48] sm:$0xff]
  %v958 = vld [vmem:[%s1 + $0x1c50] sm:$0xff]
  %v959 = vld [vmem:[%s1 + $0x1c58] sm:$0xff]
  %v960 = vld [vmem:[%s1 + $0x1c60] sm:$0xff]
  %v961 = vld [vmem:[%s1 + $0x1c68] sm:$0xff]
  %v962 = vld [vmem:[%s1 + $0x1c70] sm:$0xff]
  %v963 = vld [vmem:[%s1 + $0x1c78] sm:$0xff]
  %v964 = vld [vmem:[%s1 + $0x1c80] sm:$0xff]
  %v965 = vld [vmem:[%s1 + $0x1c88] sm:$0xff]
  %v966 = vld [vmem:[%s1 + $0x1c90] sm:$0xff]
  %v967 = vld [vmem:[%s1 + $0x1c98] sm:$0xff]
  %v968 = vld [vmem:[%s1 + $0x1ca0] sm:$0xff]
  %v969 = vld [vmem:[%s1 + $0x1ca8] sm:$0xff]
  %v970 = vld [vmem:[%s1 + $0x1cb0] sm:$0xff]
  %v971 = vld [vmem:[%s1 + $0x1cb8] sm:$0xff]
  %v972 = vld [vmem:[%s1 + $0x1cc0] sm:$0xff]
  %v973 = vld [vmem:[%s1 + $0x1cc8] sm:$0xff]
  %v974 = vld [vmem:[%s1 + $0x1cd0] sm:$0xff]
  %v975 = vld [vmem:[%s1 + $0x1cd8] sm:$0xff]
  %v976 = vld [vmem:[%s1 + $0x1ce0] sm:$0xff]
  %v977 = vld [vmem:[%s1 + $0x1ce8] sm:$0xff]
  %v978 = vld [vmem:[%s1 + $0x1cf0] sm:$0xff]
  %v979 = vld [vmem:[%s1 + $0x1cf8] sm:$0xff]
  %v980 = vld [vmem:[%s1 + $0x1d00] sm:$0xff]
  %v981 = vld [vmem:[%s1 + $0x1d08] sm:$0xff]
  %v982 = vld [vmem:[%s1 + $0x1d10] sm:$0xff]
  %v983 = vld [vmem:[%s1 + $0x1d18] sm:$0xff]
  %v984 = vld [vmem:[%s1 + $0x1d20] sm:$0xff]
  %v985 = vld [vmem:[%s1 + $0x1d28] sm:$0xff]
  %v986 = vld [vmem:[%s1 + $0x1d30] sm:$0xff]
  %v987 = vld [vmem:[%s1 + $0x1d38] sm:$0xff]
  %v988 = vld [vmem:[%s1 + $0x1d40] sm:$0xff]
  %v989 = vld [vmem:[%s1 + $0x1d48] sm:$0xff]
  %v990 = vld [vmem:[%s1 + $0x1d50] sm:$0xff]
  %v991 = vld [vmem:[%s1 + $0x1d58] sm:$0xff]
  %v992 = vld [vmem:[%s1 + $0x1d60] sm:$0xff]
  %v993 = vld [vmem:[%s1 + $0x1d68] sm:$0xff]
  %v994 = vld [vmem:[%s1 + $0x1d70] sm:$0xff]
  %v995 = vld [vmem:[%s1 + $0x1d78] sm:$0xff]
  %v996 = vld [vmem:[%s1 + $0x1d80] sm:$0xff]
  %v997 = vld [vmem:[%s1 + $0x1d88] sm:$0xff]
  %v998 = vld [vmem:[%s1 + $0x1d90] sm:$0xff]
  %v999 = vld [vmem:[%s1 + $0x1d98] sm:$0xff]
  %v1000 = vld [vmem:[%s1 + $0x1da0] sm:$0xff]
  %v1001 = vld [vmem:[%s1 + $0x1da8] sm:$0xff]
  %v1002 = vld [vmem:[%s1 + $0x1db0] sm:$0xff]
  %v1003 = vld [vmem:[%s1 + $0x1db8] sm:$0xff]
  %v1004 = vld [vmem:[%s1 + $0x1dc0] sm:$0xff]
  %v1005 = vld [vmem:[%s1 + $0x1dc8] sm:$0xff]
  %v1006 = vld [vmem:[%s1 + $0x1dd0] sm:$0xff]
  %v1007 = vld [vmem:[%s1 + $0x1dd8] sm:$0xff]
  %v1008 = vld [vmem:[%s1 + $0x1de0] sm:$0xff]
  %v1009 = vld [vmem:[%s1 + $0x1de8] sm:$0xff]
  %v1010 = vld [vmem:[%s1 + $0x1df0] sm:$0xff]
  %v1011 = vld [vmem:[%s1 + $0x1df8] sm:$0xff]
  %v1012 = vld [vmem:[%s1 + $0x1e00] sm:$0xff]
  %v1013 = vld [vmem:[%s1 + $0x1e08] sm:$0xff]
  %v1014 = vld [vmem:[%s1 + $0x1e10] sm:$0xff]
  %v1015 = vld [vmem:[%s1 + $0x1e18] sm:$0xff]
  %v1016 = vld [vmem:[%s1 + $0x1e20] sm:$0xff]
  %v1017 = vld [vmem:[%s1 + $0x1e28] sm:$0xff]
  %v1018 = vld [vmem:[%s1 + $0x1e30] sm:$0xff]
  %v1019 = vld [vmem:[%s1 + $0x1e38] sm:$0xff]
  %v1020 = vld [vmem:[%s1 + $0x1e40] sm:$0xff]
  %v1021 = vld [vmem:[%s1 + $0x1e48] sm:$0xff]
  %v1022 = vld [vmem:[%s1 + $0x1e50] sm:$0xff]
  %v1023 = vld [vmem:[%s1 + $0x1e58] sm:$0xff]
  %v1024 = vld [vmem:[%s1 + $0x1e60] sm:$0xff]
  %v1025 = vld [vmem:[%s1 + $0x1e68] sm:$0xff]
  %v1026 = vld [vmem:[%s1 + $0x1e70] sm:$0xff]
  %v1027 = vld [vmem:[%s1 + $0x1e78] sm:$0xff]
  %v1028 = vld [vmem:[%s1 + $0x1e80] sm:$0xff]
  %v1029 = vld [vmem:[%s1 + $0x1e88] sm:$0xff]
  %v1030 = vld [vmem:[%s1 + $0x1e90] sm:$0xff]
  %v1031 = vld [vmem:[%s1 + $0x1e98] sm:$0xff]
  %v1032 = vld [vmem:[%s1 + $0x1ea0] sm:$0xff]
  %v1033 = vld [vmem:[%s1 + $0x1ea8] sm:$0xff]
  %v1034 = vld [vmem:[%s1 + $0x1eb0] sm:$0xff]
  %v1035 = vld [vmem:[%s1 + $0x1eb8] sm:$0xff]
  %v1036 = vld [vmem:[%s1 + $0x1ec0] sm:$0xff]
  %v1037 = vld [vmem:[%s1 + $0x1ec8] sm:$0xff]
  %v1038 = vld [vmem:[%s1 + $0x1ed0] sm:$0xff]
  %v1039 = vld [vmem:[%s1 + $0x1ed8] sm:$0xff]
  %v1040 = vld [vmem:[%s1 + $0x1ee0] sm:$0xff]
  %v1041 = vld [vmem:[%s1 + $0x1ee8] sm:$0xff]
  %v1042 = vld [vmem:[%s1 + $0x1ef0] sm:$0xff]
  %v1043 = vld [vmem:[%s1 + $0x1ef8] sm:$0xff]
  %v1044 = vld [vmem:[%s1 + $0x1f00] sm:$0xff]
  %v1045 = vld [vmem:[%s1 + $0x1f08] sm:$0xff]
  %v1046 = vld [vmem:[%s1 + $0x1f10] sm:$0xff]
  %v1047 = vld [vmem:[%s1 + $0x1f18] sm:$0xff]
  %v1048 = vld [vmem:[%s1 + $0x1f20] sm:$0xff]
  %v1049 = vld [vmem:[%s1 + $0x1f28] sm:$0xff]
  %v1050 = vld [vmem:[%s1 + $0x1f30] sm:$0xff]
  %v1051 = vld [vmem:[%s1 + $0x1f38] sm:$0xff]
  %v1052 = vld [vmem:[%s1 + $0x1f40] sm:$0xff]
  %v1053 = vld [vmem:[%s1 + $0x1f48] sm:$0xff]
  %v1054 = vld [vmem:[%s1 + $0x1f50] sm:$0xff]
  %v1055 = vld [vmem:[%s1 + $0x1f58] sm:$0xff]
  %v1056 = vld [vmem:[%s1 + $0x1f60] sm:$0xff]
  %v1057 = vld [vmem:[%s1 + $0x1f68] sm:$0xff]
  %v1058 = vld [vmem:[%s1 + $0x1f70] sm:$0xff]
  %v1059 = vld [vmem:[%s1 + $0x1f78] sm:$0xff]
  %v1060 = vld [vmem:[%s1 + $0x1f80] sm:$0xff]
  %v1061 = vld [vmem:[%s1 + $0x1f88] sm:$0xff]
  %v1062 = vld [vmem:[%s1 + $0x1f90] sm:$0xff]
  %v1063 = vld [vmem:[%s1 + $0x1f98] sm:$0xff]
  %v1064 = vld [vmem:[%s1 + $0x1fa0] sm:$0xff]
  %v1065 = vld [vmem:[%s1 + $0x1fa8] sm:$0xff]
  %v1066 = vld [vmem:[%s1 + $0x1fb0] sm:$0xff]
  %v1067 = vld [vmem:[%s1 + $0x1fb8] sm:$0xff]
  %v1068 = vld [vmem:[%s1 + $0x1fc0] sm:$0xff]
  %v1069 = vld [vmem:[%s1 + $0x1fc8] sm:$0xff]
  %v1070 = vld [vmem:[%s1 + $0x1fd0] sm:$0xff]
  %v1071 = vld [vmem:[%s1 + $0x1fd8] sm:$0xff]
  %v1072 = vld [vmem:[%s1 + $0x1fe0] sm:$0xff]
  %v1073 = vld [vmem:[%s1 + $0x1fe8] sm:$0xff]
  %v1074 = vld [vmem:[%s1 + $0x1ff0] sm:$0xff]
  %v1075 = vld [vmem:[%s1 + $0x1ff8] sm:$0xff]
  %v1076 = vld [vmem:[%s2] sm:$0xf]
  %v1078 = vlaneseq
  %v1079 = vshrl.u32 %v1078, 7
  %v1080 = vsub.s32 0, %v1079
  %v1081 = vrot.slane %v1076, %v1080
  %v1082 = vlaneseq
  %v1083 = vshrl.u32 %v1082, 7
  %v1084 = vsub.s32 1, %v1083
  %v1085 = vrot.slane %v1076, %v1084
  %v1086 = vlaneseq
  %v1087 = vshrl.u32 %v1086, 7
  %v1088 = vsub.s32 2, %v1087
  %v1089 = vrot.slane %v1076, %v1088
  %v1090 = vlaneseq
  %v1091 = vshrl.u32 %v1090, 7
  %v1092 = vsub.s32 3, %v1091
  %v1093 = vrot.slane %v1076, %v1092
  %1098 = vmatprep.subr.mxu0 %v53
  %1099 = vmatpush1.msra.mxu0 %v52
  %1100 = vmatprep.subr.mxu0 %v57
  %1101 = vmatpush1.msra.mxu0 %v56
  %1102 = vmatprep.subr.mxu0 %v61
  %1103 = vmatpush1.msra.mxu0 %v60
  %1104 = vmatprep.subr.mxu0 %v65
  %1105 = vmatpush1.msra.mxu0 %v64
  %1106 = vmatprep.subr.mxu0 %v69
  %1107 = vmatpush1.msra.mxu0 %v68
  %1108 = vmatprep.subr.mxu0 %v73
  %1109 = vmatpush1.msra.mxu0 %v72
  %1110 = vmatprep.subr.mxu0 %v77
  %1111 = vmatpush1.msra.mxu0 %v76
  %1112 = vmatprep.subr.mxu0 %v81
  %1113 = vmatpush1.msra.mxu0 %v80
  %1114 = vmatprep.subr.mxu0 %v85
  %1115 = vmatpush1.msra.mxu0 %v84
  %1116 = vmatprep.subr.mxu0 %v89
  %1117 = vmatpush1.msra.mxu0 %v88
  %1118 = vmatprep.subr.mxu0 %v93
  %1119 = vmatpush1.msra.mxu0 %v92
  %1120 = vmatprep.subr.mxu0 %v97
  %1121 = vmatpush1.msra.mxu0 %v96
  %1122 = vmatprep.subr.mxu0 %v101
  %1123 = vmatpush1.msra.mxu0 %v100
  %1124 = vmatprep.subr.mxu0 %v105
  %1125 = vmatpush1.msra.mxu0 %v104
  %1126 = vmatprep.subr.mxu0 %v109
  %1127 = vmatpush1.msra.mxu0 %v108
  %1128 = vmatprep.subr.mxu0 %v113
  %1129 = vmatpush1.msra.mxu0 %v112
  %1130 = vmatprep.subr.mxu0 %v117
  %1131 = vmatpush1.msra.mxu0 %v116
  %1132 = vmatprep.subr.mxu0 %v121
  %1133 = vmatpush1.msra.mxu0 %v120
  %1134 = vmatprep.subr.mxu0 %v125
  %1135 = vmatpush1.msra.mxu0 %v124
  %1136 = vmatprep.subr.mxu0 %v129
  %1137 = vmatpush1.msra.mxu0 %v128
  %1138 = vmatprep.subr.mxu0 %v133
  %1139 = vmatpush1.msra.mxu0 %v132
  %1140 = vmatprep.subr.mxu0 %v137
  %1141 = vmatpush1.msra.mxu0 %v136
  %1142 = vmatprep.subr.mxu0 %v141
  %1143 = vmatpush1.msra.mxu0 %v140
  %1144 = vmatprep.subr.mxu0 %v145
  %1145 = vmatpush1.msra.mxu0 %v144
  %1146 = vmatprep.subr.mxu0 %v149
  %1147 = vmatpush1.msra.mxu0 %v148
  %1148 = vmatprep.subr.mxu0 %v153
  %1149 = vmatpush1.msra.mxu0 %v152
  %1150 = vmatprep.subr.mxu0 %v157
  %1151 = vmatpush1.msra.mxu0 %v156
  %1152 = vmatprep.subr.mxu0 %v161
  %1153 = vmatpush1.msra.mxu0 %v160
  %1154 = vmatprep.subr.mxu0 %v165
  %1155 = vmatpush1.msra.mxu0 %v164
  %1156 = vmatprep.subr.mxu0 %v169
  %1157 = vmatpush1.msra.mxu0 %v168
  %1158 = vmatprep.subr.mxu0 %v173
  %1159 = vmatpush1.msra.mxu0 %v172
  %1160 = vmatprep.subr.mxu0 %v177
  %1161 = vmatpush1.msra.mxu0 %v176
  %1162 = vmatprep.mubr.f32.mxu0 %v21
  %1163 = vmatmul.mubr.f32.gmra.mrb[0].mxu0 %v20
  %v1164 = vpop.f32.mrb[0].mxu0
  %v1165 = vadd.f32 %v1081, %v1164
  %v1166 = vpop.f32.mrb[0].mxu0
  %v1167 = vadd.f32 %v1085, %v1166
  %1168 = vmatprep.mubr.f32.mxu0 %v37
  %1169 = vmatmul.mubr.f32.gmra.mrb[0].mxu0 %v36
  %v1170 = vpop.f32.mrb[0].mxu0
  %v1171 = vadd.f32 %v1081, %v1170
  %v1172 = vpop.f32.mrb[0].mxu0
  %v1173 = vadd.f32 %v1085, %v1172
  %1174 = vdwg.mxu0
  %1175 = vmatprep.subr.mxu0 %v181
  %1176 = vmatpush1.msra.mxu0 %v180
  %1177 = vmatprep.subr.mxu0 %v185
  %1178 = vmatpush1.msra.mxu0 %v184
  %1179 = vmatprep.subr.mxu0 %v189
  %1180 = vmatpush1.msra.mxu0 %v188
  %1181 = vmatprep.subr.mxu0 %v193
  %1182 = vmatpush1.msra.mxu0 %v192
  %1183 = vmatprep.subr.mxu0 %v197
  %1184 = vmatpush1.msra.mxu0 %v196
  %1185 = vmatprep.subr.mxu0 %v201
  %1186 = vmatpush1.msra.mxu0 %v200
  %1187 = vmatprep.subr.mxu0 %v205
  %1188 = vmatpush1.msra.mxu0 %v204
  %1189 = vmatprep.subr.mxu0 %v209
  %1190 = vmatpush1.msra.mxu0 %v208
  %1191 = vmatprep.subr.mxu0 %v213
  %1192 = vmatpush1.msra.mxu0 %v212
  %1193 = vmatprep.subr.mxu0 %v217
  %1194 = vmatpush1.msra.mxu0 %v216
  %1195 = vmatprep.subr.mxu0 %v221
  %1196 = vmatpush1.msra.mxu0 %v220
  %1197 = vmatprep.subr.mxu0 %v225
  %1198 = vmatpush1.msra.mxu0 %v224
  %1199 = vmatprep.subr.mxu0 %v229
  %1200 = vmatpush1.msra.mxu0 %v228
  %1201 = vmatprep.subr.mxu0 %v233
  %1202 = vmatpush1.msra.mxu0 %v232
  %1203 = vmatprep.subr.mxu0 %v237
  %1204 = vmatpush1.msra.mxu0 %v236
  %1205 = vmatprep.subr.mxu0 %v241
  %1206 = vmatpush1.msra.mxu0 %v240
  %1207 = vmatprep.subr.mxu0 %v245
  %1208 = vmatpush1.msra.mxu0 %v244
  %1209 = vmatprep.subr.mxu0 %v249
  %1210 = vmatpush1.msra.mxu0 %v248
  %1211 = vmatprep.subr.mxu0 %v253
  %1212 = vmatpush1.msra.mxu0 %v252
  %1213 = vmatprep.subr.mxu0 %v257
  %1214 = vmatpush1.msra.mxu0 %v256
  %1215 = vmatprep.subr.mxu0 %v261
  %1216 = vmatpush1.msra.mxu0 %v260
  %1217 = vmatprep.subr.mxu0 %v265
  %1218 = vmatpush1.msra.mxu0 %v264
  %1219 = vmatprep.subr.mxu0 %v269
  %1220 = vmatpush1.msra.mxu0 %v268
  %1221 = vmatprep.subr.mxu0 %v273
  %1222 = vmatpush1.msra.mxu0 %v272
  %1223 = vmatprep.subr.mxu0 %v277
  %1224 = vmatpush1.msra.mxu0 %v276
  %1225 = vmatprep.subr.mxu0 %v281
  %1226 = vmatpush1.msra.mxu0 %v280
  %1227 = vmatprep.subr.mxu0 %v285
  %1228 = vmatpush1.msra.mxu0 %v284
  %1229 = vmatprep.subr.mxu0 %v289
  %1230 = vmatpush1.msra.mxu0 %v288
  %1231 = vmatprep.subr.mxu0 %v293
  %1232 = vmatpush1.msra.mxu0 %v292
  %1233 = vmatprep.subr.mxu0 %v297
  %1234 = vmatpush1.msra.mxu0 %v296
  %1235 = vmatprep.subr.mxu0 %v301
  %1236 = vmatpush1.msra.mxu0 %v300
  %1237 = vmatprep.subr.mxu0 %v305
  %1238 = vmatpush1.msra.mxu0 %v304
  %1239 = vmatprep.mubr.f32.mxu0 %v23
  %1240 = vmatmul.mubr.f32.gmra.mrb[0].mxu0 %v22
  %v1241 = vpop.f32.mrb[0].mxu0
  %v1242 = vadd.f32 %v1165, %v1241
  %v1243 = vpop.f32.mrb[0].mxu0
  %v1244 = vadd.f32 %v1167, %v1243
  %1245 = vmatprep.mubr.f32.mxu0 %v39
  %1246 = vmatmul.mubr.f32.gmra.mrb[0].mxu0 %v38
  %v1247 = vpop.f32.mrb[0].mxu0
  %v1248 = vadd.f32 %v1171, %v1247
  %v1249 = vpop.f32.mrb[0].mxu0
  %v1250 = vadd.f32 %v1173, %v1249
  %1251 = vdwg.mxu0
  %1252 = vmatprep.subr.mxu0 %v309
  %1253 = vmatpush1.msra.mxu0 %v308
  %1254 = vmatprep.subr.mxu0 %v313
  %1255 = vmatpush1.msra.mxu0 %v312
  %1256 = vmatprep.subr.mxu0 %v317
  %1257 = vmatpush1.msra.mxu0 %v316
  %1258 = vmatprep.subr.mxu0 %v321
  %1259 = vmatpush1.msra.mxu0 %v320
  %1260 = vmatprep.subr.mxu0 %v325
  %1261 = vmatpush1.msra.mxu0 %v324
  %1262 = vmatprep.subr.mxu0 %v329
  %1263 = vmatpush1.msra.mxu0 %v328
  %1264 = vmatprep.subr.mxu0 %v333
  %1265 = vmatpush1.msra.mxu0 %v332
  %1266 = vmatprep.subr.mxu0 %v337
  %1267 = vmatpush1.msra.mxu0 %v336
  %1268 = vmatprep.subr.mxu0 %v341
  %1269 = vmatpush1.msra.mxu0 %v340
  %1270 = vmatprep.subr.mxu0 %v345
  %1271 = vmatpush1.msra.mxu0 %v344
  %1272 = vmatprep.subr.mxu0 %v349
  %1273 = vmatpush1.msra.mxu0 %v348
  %1274 = vmatprep.subr.mxu0 %v353
  %1275 = vmatpush1.msra.mxu0 %v352
  %1276 = vmatprep.subr.mxu0 %v357
  %1277 = vmatpush1.msra.mxu0 %v356
  %1278 = vmatprep.subr.mxu0 %v361
  %1279 = vmatpush1.msra.mxu0 %v360
  %1280 = vmatprep.subr.mxu0 %v365
  %1281 = vmatpush1.msra.mxu0 %v364
  %1282 = vmatprep.subr.mxu0 %v369
  %1283 = vmatpush1.msra.mxu0 %v368
  %1284 = vmatprep.subr.mxu0 %v373
  %1285 = vmatpush1.msra.mxu0 %v372
  %1286 = vmatprep.subr.mxu0 %v377
  %1287 = vmatpush1.msra.mxu0 %v376
  %1288 = vmatprep.subr.mxu0 %v381
  %1289 = vmatpush1.msra.mxu0 %v380
  %1290 = vmatprep.subr.mxu0 %v385
  %1291 = vmatpush1.msra.mxu0 %v384
  %1292 = vmatprep.subr.mxu0 %v389
  %1293 = vmatpush1.msra.mxu0 %v388
  %1294 = vmatprep.subr.mxu0 %v393
  %1295 = vmatpush1.msra.mxu0 %v392
  %1296 = vmatprep.subr.mxu0 %v397
  %1297 = vmatpush1.msra.mxu0 %v396
  %1298 = vmatprep.subr.mxu0 %v401
  %1299 = vmatpush1.msra.mxu0 %v400
  %1300 = vmatprep.subr.mxu0 %v405
  %1301 = vmatpush1.msra.mxu0 %v404
  %1302 = vmatprep.subr.mxu0 %v409
  %1303 = vmatpush1.msra.mxu0 %v408
  %1304 = vmatprep.subr.mxu0 %v413
  %1305 = vmatpush1.msra.mxu0 %v412
  %1306 = vmatprep.subr.mxu0 %v417
  %1307 = vmatpush1.msra.mxu0 %v416
  %1308 = vmatprep.subr.mxu0 %v421
  %1309 = vmatpush1.msra.mxu0 %v420
  %1310 = vmatprep.subr.mxu0 %v425
  %1311 = vmatpush1.msra.mxu0 %v424
  %1312 = vmatprep.subr.mxu0 %v429
  %1313 = vmatpush1.msra.mxu0 %v428
  %1314 = vmatprep.subr.mxu0 %v433
  %1315 = vmatpush1.msra.mxu0 %v432
  %1316 = vmatprep.mubr.f32.mxu0 %v25
  %1317 = vmatmul.mubr.f32.gmra.mrb[0].mxu0 %v24
  %v1318 = vpop.f32.mrb[0].mxu0
  %v1319 = vadd.f32 %v1242, %v1318
  %v1320 = vpop.f32.mrb[0].mxu0
  %v1321 = vadd.f32 %v1244, %v1320
  %1322 = vmatprep.mubr.f32.mxu0 %v41
  %1323 = vmatmul.mubr.f32.gmra.mrb[0].mxu0 %v40
  %v1324 = vpop.f32.mrb[0].mxu0
  %v1325 = vadd.f32 %v1248, %v1324
  %v1326 = vpop.f32.mrb[0].mxu0
  %v1327 = vadd.f32 %v1250, %v1326
  %1328 = vdwg.mxu0
  %1329 = vmatprep.subr.mxu0 %v437
  %1330 = vmatpush1.msra.mxu0 %v436
  %1331 = vmatprep.subr.mxu0 %v441
  %1332 = vmatpush1.msra.mxu0 %v440
  %1333 = vmatprep.subr.mxu0 %v445
  %1334 = vmatpush1.msra.mxu0 %v444
  %1335 = vmatprep.subr.mxu0 %v449
  %1336 = vmatpush1.msra.mxu0 %v448
  %1337 = vmatprep.subr.mxu0 %v453
  %1338 = vmatpush1.msra.mxu0 %v452
  %1339 = vmatprep.subr.mxu0 %v457
  %1340 = vmatpush1.msra.mxu0 %v456
  %1341 = vmatprep.subr.mxu0 %v461
  %1342 = vmatpush1.msra.mxu0 %v460
  %1343 = vmatprep.subr.mxu0 %v465
  %1344 = vmatpush1.msra.mxu0 %v464
  %1345 = vmatprep.subr.mxu0 %v469
  %1346 = vmatpush1.msra.mxu0 %v468
  %1347 = vmatprep.subr.mxu0 %v473
  %1348 = vmatpush1.msra.mxu0 %v472
  %1349 = vmatprep.subr.mxu0 %v477
  %1350 = vmatpush1.msra.mxu0 %v476
  %1351 = vmatprep.subr.mxu0 %v481
  %1352 = vmatpush1.msra.mxu0 %v480
  %1353 = vmatprep.subr.mxu0 %v485
  %1354 = vmatpush1.msra.mxu0 %v484
  %1355 = vmatprep.subr.mxu0 %v489
  %1356 = vmatpush1.msra.mxu0 %v488
  %1357 = vmatprep.subr.mxu0 %v493
  %1358 = vmatpush1.msra.mxu0 %v492
  %1359 = vmatprep.subr.mxu0 %v497
  %1360 = vmatpush1.msra.mxu0 %v496
  %1361 = vmatprep.subr.mxu0 %v501
  %1362 = vmatpush1.msra.mxu0 %v500
  %1363 = vmatprep.subr.mxu0 %v505
  %1364 = vmatpush1.msra.mxu0 %v504
  %1365 = vmatprep.subr.mxu0 %v509
  %1366 = vmatpush1.msra.mxu0 %v508
  %1367 = vmatprep.subr.mxu0 %v513
  %1368 = vmatpush1.msra.mxu0 %v512
  %1369 = vmatprep.subr.mxu0 %v517
  %1370 = vmatpush1.msra.mxu0 %v516
  %1371 = vmatprep.subr.mxu0 %v521
  %1372 = vmatpush1.msra.mxu0 %v520
  %1373 = vmatprep.subr.mxu0 %v525
  %1374 = vmatpush1.msra.mxu0 %v524
  %1375 = vmatprep.subr.mxu0 %v529
  %1376 = vmatpush1.msra.mxu0 %v528
  %1377 = vmatprep.subr.mxu0 %v533
  %1378 = vmatpush1.msra.mxu0 %v532
  %1379 = vmatprep.subr.mxu0 %v537
  %1380 = vmatpush1.msra.mxu0 %v536
  %1381 = vmatprep.subr.mxu0 %v541
  %1382 = vmatpush1.msra.mxu0 %v540
  %1383 = vmatprep.subr.mxu0 %v545
  %1384 = vmatpush1.msra.mxu0 %v544
  %1385 = vmatprep.subr.mxu0 %v549
  %1386 = vmatpush1.msra.mxu0 %v548
  %1387 = vmatprep.subr.mxu0 %v553
  %1388 = vmatpush1.msra.mxu0 %v552
  %1389 = vmatprep.subr.mxu0 %v557
  %1390 = vmatpush1.msra.mxu0 %v556
  %1391 = vmatprep.subr.mxu0 %v561
  %1392 = vmatpush1.msra.mxu0 %v560
  %1393 = vmatprep.mubr.f32.mxu0 %v27
  %1394 = vmatmul.mubr.f32.gmra.mrb[0].mxu0 %v26
  %v1395 = vpop.f32.mrb[0].mxu0
  %v1396 = vadd.f32 %v1319, %v1395
  %v1397 = vpop.f32.mrb[0].mxu0
  %v1398 = vadd.f32 %v1321, %v1397
  %1399 = vmatprep.mubr.f32.mxu0 %v43
  %1400 = vmatmul.mubr.f32.gmra.mrb[0].mxu0 %v42
  %v1401 = vpop.f32.mrb[0].mxu0
  %v1402 = vadd.f32 %v1325, %v1401
  %v1403 = vpop.f32.mrb[0].mxu0
  %v1404 = vadd.f32 %v1327, %v1403
  %1405 = vdwg.mxu0
  %1406 = vmatprep.subr.mxu0 %v565
  %1407 = vmatpush1.msra.mxu0 %v564
  %1408 = vmatprep.subr.mxu0 %v569
  %1409 = vmatpush1.msra.mxu0 %v568
  %1410 = vmatprep.subr.mxu0 %v573
  %1411 = vmatpush1.msra.mxu0 %v572
  %1412 = vmatprep.subr.mxu0 %v577
  %1413 = vmatpush1.msra.mxu0 %v576
  %1414 = vmatprep.subr.mxu0 %v581
  %1415 = vmatpush1.msra.mxu0 %v580
  %1416 = vmatprep.subr.mxu0 %v585
  %1417 = vmatpush1.msra.mxu0 %v584
  %1418 = vmatprep.subr.mxu0 %v589
  %1419 = vmatpush1.msra.mxu0 %v588
  %1420 = vmatprep.subr.mxu0 %v593
  %1421 = vmatpush1.msra.mxu0 %v592
  %1422 = vmatprep.subr.mxu0 %v597
  %1423 = vmatpush1.msra.mxu0 %v596
  %1424 = vmatprep.subr.mxu0 %v601
  %1425 = vmatpush1.msra.mxu0 %v600
  %1426 = vmatprep.subr.mxu0 %v605
  %1427 = vmatpush1.msra.mxu0 %v604
  %1428 = vmatprep.subr.mxu0 %v609
  %1429 = vmatpush1.msra.mxu0 %v608
  %1430 = vmatprep.subr.mxu0 %v613
  %1431 = vmatpush1.msra.mxu0 %v612
  %1432 = vmatprep.subr.mxu0 %v617
  %1433 = vmatpush1.msra.mxu0 %v616
  %1434 = vmatprep.subr.mxu0 %v621
  %1435 = vmatpush1.msra.mxu0 %v620
  %1436 = vmatprep.subr.mxu0 %v625
  %1437 = vmatpush1.msra.mxu0 %v624
  %1438 = vmatprep.subr.mxu0 %v629
  %1439 = vmatpush1.msra.mxu0 %v628
  %1440 = vmatprep.subr.mxu0 %v633
  %1441 = vmatpush1.msra.mxu0 %v632
  %1442 = vmatprep.subr.mxu0 %v637
  %1443 = vmatpush1.msra.mxu0 %v636
  %1444 = vmatprep.subr.mxu0 %v641
  %1445 = vmatpush1.msra.mxu0 %v640
  %1446 = vmatprep.subr.mxu0 %v645
  %1447 = vmatpush1.msra.mxu0 %v644
  %1448 = vmatprep.subr.mxu0 %v649
  %1449 = vmatpush1.msra.mxu0 %v648
  %1450 = vmatprep.subr.mxu0 %v653
  %1451 = vmatpush1.msra.mxu0 %v652
  %1452 = vmatprep.subr.mxu0 %v657
  %1453 = vmatpush1.msra.mxu0 %v656
  %1454 = vmatprep.subr.mxu0 %v661
  %1455 = vmatpush1.msra.mxu0 %v660
  %1456 = vmatprep.subr.mxu0 %v665
  %1457 = vmatpush1.msra.mxu0 %v664
  %1458 = vmatprep.subr.mxu0 %v669
  %1459 = vmatpush1.msra.mxu0 %v668
  %1460 = vmatprep.subr.mxu0 %v673
  %1461 = vmatpush1.msra.mxu0 %v672
  %1462 = vmatprep.subr.mxu0 %v677
  %1463 = vmatpush1.msra.mxu0 %v676
  %1464 = vmatprep.subr.mxu0 %v681
  %1465 = vmatpush1.msra.mxu0 %v680
  %1466 = vmatprep.subr.mxu0 %v685
  %1467 = vmatpush1.msra.mxu0 %v684
  %1468 = vmatprep.subr.mxu0 %v689
  %1469 = vmatpush1.msra.mxu0 %v688
  %1470 = vmatprep.mubr.f32.mxu0 %v29
  %1471 = vmatmul.mubr.f32.gmra.mrb[0].mxu0 %v28
  %v1472 = vpop.f32.mrb[0].mxu0
  %v1473 = vadd.f32 %v1396, %v1472
  %v1474 = vpop.f32.mrb[0].mxu0
  %v1475 = vadd.f32 %v1398, %v1474
  %1476 = vmatprep.mubr.f32.mxu0 %v45
  %1477 = vmatmul.mubr.f32.gmra.mrb[0].mxu0 %v44
  %v1478 = vpop.f32.mrb[0].mxu0
  %v1479 = vadd.f32 %v1402, %v1478
  %v1480 = vpop.f32.mrb[0].mxu0
  %v1481 = vadd.f32 %v1404, %v1480
  %1482 = vdwg.mxu0
  %1483 = vmatprep.subr.mxu0 %v693
  %1484 = vmatpush1.msra.mxu0 %v692
  %1485 = vmatprep.subr.mxu0 %v697
  %1486 = vmatpush1.msra.mxu0 %v696
  %1487 = vmatprep.subr.mxu0 %v701
  %1488 = vmatpush1.msra.mxu0 %v700
  %1489 = vmatprep.subr.mxu0 %v705
  %1490 = vmatpush1.msra.mxu0 %v704
  %1491 = vmatprep.subr.mxu0 %v709
  %1492 = vmatpush1.msra.mxu0 %v708
  %1493 = vmatprep.subr.mxu0 %v713
  %1494 = vmatpush1.msra.mxu0 %v712
  %1495 = vmatprep.subr.mxu0 %v717
  %1496 = vmatpush1.msra.mxu0 %v716
  %1497 = vmatprep.subr.mxu0 %v721
  %1498 = vmatpush1.msra.mxu0 %v720
  %1499 = vmatprep.subr.mxu0 %v725
  %1500 = vmatpush1.msra.mxu0 %v724
  %1501 = vmatprep.subr.mxu0 %v729
  %1502 = vmatpush1.msra.mxu0 %v728
  %1503 = vmatprep.subr.mxu0 %v733
  %1504 = vmatpush1.msra.mxu0 %v732
  %1505 = vmatprep.subr.mxu0 %v737
  %1506 = vmatpush1.msra.mxu0 %v736
  %1507 = vmatprep.subr.mxu0 %v741
  %1508 = vmatpush1.msra.mxu0 %v740
  %1509 = vmatprep.subr.mxu0 %v745
  %1510 = vmatpush1.msra.mxu0 %v744
  %1511 = vmatprep.subr.mxu0 %v749
  %1512 = vmatpush1.msra.mxu0 %v748
  %1513 = vmatprep.subr.mxu0 %v753
  %1514 = vmatpush1.msra.mxu0 %v752
  %1515 = vmatprep.subr.mxu0 %v757
  %1516 = vmatpush1.msra.mxu0 %v756
  %1517 = vmatprep.subr.mxu0 %v761
  %1518 = vmatpush1.msra.mxu0 %v760
  %1519 = vmatprep.subr.mxu0 %v765
  %1520 = vmatpush1.msra.mxu0 %v764
  %1521 = vmatprep.subr.mxu0 %v769
  %1522 = vmatpush1.msra.mxu0 %v768
  %1523 = vmatprep.subr.mxu0 %v773
  %1524 = vmatpush1.msra.mxu0 %v772
  %1525 = vmatprep.subr.mxu0 %v777
  %1526 = vmatpush1.msra.mxu0 %v776
  %1527 = vmatprep.subr.mxu0 %v781
  %1528 = vmatpush1.msra.mxu0 %v780
  %1529 = vmatprep.subr.mxu0 %v785
  %1530 = vmatpush1.msra.mxu0 %v784
  %1531 = vmatprep.subr.mxu0 %v789
  %1532 = vmatpush1.msra.mxu0 %v788
  %1533 = vmatprep.subr.mxu0 %v793
  %1534 = vmatpush1.msra.mxu0 %v792
  %1535 = vmatprep.subr.mxu0 %v797
  %1536 = vmatpush1.msra.mxu0 %v796
  %1537 = vmatprep.subr.mxu0 %v801
  %1538 = vmatpush1.msra.mxu0 %v800
  %1539 = vmatprep.subr.mxu0 %v805
  %1540 = vmatpush1.msra.mxu0 %v804
  %1541 = vmatprep.subr.mxu0 %v809
  %1542 = vmatpush1.msra.mxu0 %v808
  %1543 = vmatprep.subr.mxu0 %v813
  %1544 = vmatpush1.msra.mxu0 %v812
  %1545 = vmatprep.subr.mxu0 %v817
  %1546 = vmatpush1.msra.mxu0 %v816
  %1547 = vmatprep.mubr.f32.mxu0 %v31
  %1548 = vmatmul.mubr.f32.gmra.mrb[0].mxu0 %v30
  %v1549 = vpop.f32.mrb[0].mxu0
  %v1550 = vadd.f32 %v1473, %v1549
  %v1551 = vpop.f32.mrb[0].mxu0
  %v1552 = vadd.f32 %v1475, %v1551
  %1553 = vmatprep.mubr.f32.mxu0 %v47
  %1554 = vmatmul.mubr.f32.gmra.mrb[0].mxu0 %v46
  %v1555 = vpop.f32.mrb[0].mxu0
  %v1556 = vadd.f32 %v1479, %v1555
  %v1557 = vpop.f32.mrb[0].mxu0
  %v1558 = vadd.f32 %v1481, %v1557
  %1559 = vdwg.mxu0
  %1560 = vmatprep.subr.mxu0 %v821
  %1561 = vmatpush1.msra.mxu0 %v820
  %1562 = vmatprep.subr.mxu0 %v825
  %1563 = vmatpush1.msra.mxu0 %v824
  %1564 = vmatprep.subr.mxu0 %v829
  %1565 = vmatpush1.msra.mxu0 %v828
  %1566 = vmatprep.subr.mxu0 %v833
  %1567 = vmatpush1.msra.mxu0 %v832
  %1568 = vmatprep.subr.mxu0 %v837
  %1569 = vmatpush1.msra.mxu0 %v836
  %1570 = vmatprep.subr.mxu0 %v841
  %1571 = vmatpush1.msra.mxu0 %v840
  %1572 = vmatprep.subr.mxu0 %v845
  %1573 = vmatpush1.msra.mxu0 %v844
  %1574 = vmatprep.subr.mxu0 %v849
  %1575 = vmatpush1.msra.mxu0 %v848
  %1576 = vmatprep.subr.mxu0 %v853
  %1577 = vmatpush1.msra.mxu0 %v852
  %1578 = vmatprep.subr.mxu0 %v857
  %1579 = vmatpush1.msra.mxu0 %v856
  %1580 = vmatprep.subr.mxu0 %v861
  %1581 = vmatpush1.msra.mxu0 %v860
  %1582 = vmatprep.subr.mxu0 %v865
  %1583 = vmatpush1.msra.mxu0 %v864
  %1584 = vmatprep.subr.mxu0 %v869
  %1585 = vmatpush1.msra.mxu0 %v868
  %1586 = vmatprep.subr.mxu0 %v873
  %1587 = vmatpush1.msra.mxu0 %v872
  %1588 = vmatprep.subr.mxu0 %v877
  %1589 = vmatpush1.msra.mxu0 %v876
  %1590 = vmatprep.subr.mxu0 %v881
  %1591 = vmatpush1.msra.mxu0 %v880
  %1592 = vmatprep.subr.mxu0 %v885
  %1593 = vmatpush1.msra.mxu0 %v884
  %1594 = vmatprep.subr.mxu0 %v889
  %1595 = vmatpush1.msra.mxu0 %v888
  %1596 = vmatprep.subr.mxu0 %v893
  %1597 = vmatpush1.msra.mxu0 %v892
  %1598 = vmatprep.subr.mxu0 %v897
  %1599 = vmatpush1.msra.mxu0 %v896
  %1600 = vmatprep.subr.mxu0 %v901
  %1601 = vmatpush1.msra.mxu0 %v900
  %1602 = vmatprep.subr.mxu0 %v905
  %1603 = vmatpush1.msra.mxu0 %v904
  %1604 = vmatprep.subr.mxu0 %v909
  %1605 = vmatpush1.msra.mxu0 %v908
  %1606 = vmatprep.subr.mxu0 %v913
  %1607 = vmatpush1.msra.mxu0 %v912
  %1608 = vmatprep.subr.mxu0 %v917
  %1609 = vmatpush1.msra.mxu0 %v916
  %1610 = vmatprep.subr.mxu0 %v921
  %1611 = vmatpush1.msra.mxu0 %v920
  %1612 = vmatprep.subr.mxu0 %v925
  %1613 = vmatpush1.msra.mxu0 %v924
  %1614 = vmatprep.subr.mxu0 %v929
  %1615 = vmatpush1.msra.mxu0 %v928
  %1616 = vmatprep.subr.mxu0 %v933
  %1617 = vmatpush1.msra.mxu0 %v932
  %1618 = vmatprep.subr.mxu0 %v937
  %1619 = vmatpush1.msra.mxu0 %v936
  %1620 = vmatprep.subr.mxu0 %v941
  %1621 = vmatpush1.msra.mxu0 %v940
  %1622 = vmatprep.subr.mxu0 %v945
  %1623 = vmatpush1.msra.mxu0 %v944
  %1624 = vmatprep.mubr.f32.mxu0 %v33
  %1625 = vmatmul.mubr.f32.gmra.mrb[0].mxu0 %v32
  %v1626 = vpop.f32.mrb[0].mxu0
  %v1627 = vadd.f32 %v1550, %v1626
  %v1628 = vpop.f32.mrb[0].mxu0
  %v1629 = vadd.f32 %v1552, %v1628
  %1630 = vmatprep.mubr.f32.mxu0 %v49
  %1631 = vmatmul.mubr.f32.gmra.mrb[0].mxu0 %v48
  %v1632 = vpop.f32.mrb[0].mxu0
  %v1633 = vadd.f32 %v1556, %v1632
  %v1634 = vpop.f32.mrb[0].mxu0
  %v1635 = vadd.f32 %v1558, %v1634
  %1636 = vdwg.mxu0
  %1637 = vmatprep.subr.mxu0 %v949
  %1638 = vmatpush1.msra.mxu0 %v948
  %1639 = vmatprep.subr.mxu0 %v953
  %1640 = vmatpush1.msra.mxu0 %v952
  %1641 = vmatprep.subr.mxu0 %v957
  %1642 = vmatpush1.msra.mxu0 %v956
  %1643 = vmatprep.subr.mxu0 %v961
  %1644 = vmatpush1.msra.mxu0 %v960
  %1645 = vmatprep.subr.mxu0 %v965
  %1646 = vmatpush1.msra.mxu0 %v964
  %1647 = vmatprep.subr.mxu0 %v969
  %1648 = vmatpush1.msra.mxu0 %v968
  %1649 = vmatprep.subr.mxu0 %v973
  %1650 = vmatpush1.msra.mxu0 %v972
  %1651 = vmatprep.subr.mxu0 %v977
  %1652 = vmatpush1.msra.mxu0 %v976
  %1653 = vmatprep.subr.mxu0 %v981
  %1654 = vmatpush1.msra.mxu0 %v980
  %1655 = vmatprep.subr.mxu0 %v985
  %1656 = vmatpush1.msra.mxu0 %v984
  %1657 = vmatprep.subr.mxu0 %v989
  %1658 = vmatpush1.msra.mxu0 %v988
  %1659 = vmatprep.subr.mxu0 %v993
  %1660 = vmatpush1.msra.mxu0 %v992
  %1661 = vmatprep.subr.mxu0 %v997
  %1662 = vmatpush1.msra.mxu0 %v996
  %1663 = vmatprep.subr.mxu0 %v1001
  %1664 = vmatpush1.msra.mxu0 %v1000
  %1665 = vmatprep.subr.mxu0 %v1005
  %1666 = vmatpush1.msra.mxu0 %v1004
  %1667 = vmatprep.subr.mxu0 %v1009
  %1668 = vmatpush1.msra.mxu0 %v1008
  %1669 = vmatprep.subr.mxu0 %v1013
  %1670 = vmatpush1.msra.mxu0 %v1012
  %1671 = vmatprep.subr.mxu0 %v1017
  %1672 = vmatpush1.msra.mxu0 %v1016
  %1673 = vmatprep.subr.mxu0 %v1021
  %1674 = vmatpush1.msra.mxu0 %v1020
  %1675 = vmatprep.subr.mxu0 %v1025
  %1676 = vmatpush1.msra.mxu0 %v1024
  %1677 = vmatprep.subr.mxu0 %v1029
  %1678 = vmatpush1.msra.mxu0 %v1028
  %1679 = vmatprep.subr.mxu0 %v1033
  %1680 = vmatpush1.msra.mxu0 %v1032
  %1681 = vmatprep.subr.mxu0 %v1037
  %1682 = vmatpush1.msra.mxu0 %v1036
  %1683 = vmatprep.subr.mxu0 %v1041
  %1684 = vmatpush1.msra.mxu0 %v1040
  %1685 = vmatprep.subr.mxu0 %v1045
  %1686 = vmatpush1.msra.mxu0 %v1044
  %1687 = vmatprep.subr.mxu0 %v1049
  %1688 = vmatpush1.msra.mxu0 %v1048
  %1689 = vmatprep.subr.mxu0 %v1053
  %1690 = vmatpush1.msra.mxu0 %v1052
  %1691 = vmatprep.subr.mxu0 %v1057
  %1692 = vmatpush1.msra.mxu0 %v1056
  %1693 = vmatprep.subr.mxu0 %v1061
  %1694 = vmatpush1.msra.mxu0 %v1060
  %1695 = vmatprep.subr.mxu0 %v1065
  %1696 = vmatpush1.msra.mxu0 %v1064
  %1697 = vmatprep.subr.mxu0 %v1069
  %1698 = vmatpush1.msra.mxu0 %v1068
  %1699 = vmatprep.subr.mxu0 %v1073
  %1700 = vmatpush1.msra.mxu0 %v1072
  %1701 = vmatprep.mubr.f32.mxu0 %v35
  %1702 = vmatmul.mubr.f32.gmra.mrb[0].mxu0 %v34
  %v1703 = vpop.f32.mrb[0].mxu0
  %v1704 = vadd.f32 %v1627, %v1703
  %v1705 = vpop.f32.mrb[0].mxu0
  %v1706 = vadd.f32 %v1629, %v1705
  %1707 = vmatprep.mubr.f32.mxu0 %v51
  %1708 = vmatmul.mubr.f32.gmra.mrb[0].mxu0 %v50
  %v1709 = vpop.f32.mrb[0].mxu0
  %v1710 = vadd.f32 %v1633, %v1709
  %v1711 = vpop.f32.mrb[0].mxu0
  %v1712 = vadd.f32 %v1635, %v1711
  %1713 = vdwg.mxu0
  %1714 = vmatprep.subr.mxu0 %v55
  %1715 = vmatpush1.msra.mxu0 %v54
  %1716 = vmatprep.subr.mxu0 %v59
  %1717 = vmatpush1.msra.mxu0 %v58
  %1718 = vmatprep.subr.mxu0 %v63
  %1719 = vmatpush1.msra.mxu0 %v62
  %1720 = vmatprep.subr.mxu0 %v67
  %1721 = vmatpush1.msra.mxu0 %v66
  %1722 = vmatprep.subr.mxu0 %v71
  %1723 = vmatpush1.msra.mxu0 %v70
  %1724 = vmatprep.subr.mxu0 %v75
  %1725 = vmatpush1.msra.mxu0 %v74
  %1726 = vmatprep.subr.mxu0 %v79
  %1727 = vmatpush1.msra.mxu0 %v78
  %1728 = vmatprep.subr.mxu0 %v83
  %1729 = vmatpush1.msra.mxu0 %v82
  %1730 = vmatprep.subr.mxu0 %v87
  %1731 = vmatpush1.msra.mxu0 %v86
  %1732 = vmatprep.subr.mxu0 %v91
  %1733 = vmatpush1.msra.mxu0 %v90
  %1734 = vmatprep.subr.mxu0 %v95
  %1735 = vmatpush1.msra.mxu0 %v94
  %1736 = vmatprep.subr.mxu0 %v99
  %1737 = vmatpush1.msra.mxu0 %v98
  %1738 = vmatprep.subr.mxu0 %v103
  %1739 = vmatpush1.msra.mxu0 %v102
  %1740 = vmatprep.subr.mxu0 %v107
  %1741 = vmatpush1.msra.mxu0 %v106
  %1742 = vmatprep.subr.mxu0 %v111
  %1743 = vmatpush1.msra.mxu0 %v110
  %1744 = vmatprep.subr.mxu0 %v115
  %1745 = vmatpush1.msra.mxu0 %v114
  %1746 = vmatprep.subr.mxu0 %v119
  %1747 = vmatpush1.msra.mxu0 %v118
  %1748 = vmatprep.subr.mxu0 %v123
  %1749 = vmatpush1.msra.mxu0 %v122
  %1750 = vmatprep.subr.mxu0 %v127
  %1751 = vmatpush1.msra.mxu0 %v126
  %1752 = vmatprep.subr.mxu0 %v131
  %1753 = vmatpush1.msra.mxu0 %v130
  %1754 = vmatprep.subr.mxu0 %v135
  %1755 = vmatpush1.msra.mxu0 %v134
  %1756 = vmatprep.subr.mxu0 %v139
  %1757 = vmatpush1.msra.mxu0 %v138
  %1758 = vmatprep.subr.mxu0 %v143
  %1759 = vmatpush1.msra.mxu0 %v142
  %1760 = vmatprep.subr.mxu0 %v147
  %1761 = vmatpush1.msra.mxu0 %v146
  %1762 = vmatprep.subr.mxu0 %v151
  %1763 = vmatpush1.msra.mxu0 %v150
  %1764 = vmatprep.subr.mxu0 %v155
  %1765 = vmatpush1.msra.mxu0 %v154
  %1766 = vmatprep.subr.mxu0 %v159
  %1767 = vmatpush1.msra.mxu0 %v158
  %1768 = vmatprep.subr.mxu0 %v163
  %1769 = vmatpush1.msra.mxu0 %v162
  %1770 = vmatprep.subr.mxu0 %v167
  %1771 = vmatpush1.msra.mxu0 %v166
  %1772 = vmatprep.subr.mxu0 %v171
  %1773 = vmatpush1.msra.mxu0 %v170
  %1774 = vmatprep.subr.mxu0 %v175
  %1775 = vmatpush1.msra.mxu0 %v174
  %1776 = vmatprep.subr.mxu0 %v179
  %1777 = vmatpush1.msra.mxu0 %v178
  %1778 = vmatprep.mubr.f32.mxu0 %v21
  %1779 = vmatmul.mubr.f32.gmra.mrb[0].mxu0 %v20
  %v1780 = vpop.f32.mrb[0].mxu0
  %v1781 = vadd.f32 %v1089, %v1780
  %v1782 = vpop.f32.mrb[0].mxu0
  %v1783 = vadd.f32 %v1093, %v1782
  %1784 = vmatprep.mubr.f32.mxu0 %v37
  %1785 = vmatmul.mubr.f32.gmra.mrb[0].mxu0 %v36
  %v1786 = vpop.f32.mrb[0].mxu0
  %v1787 = vadd.f32 %v1089, %v1786
  %v1788 = vpop.f32.mrb[0].mxu0
  %v1789 = vadd.f32 %v1093, %v1788
  %1790 = vdwg.mxu0
  %1791 = vmatprep.subr.mxu0 %v183
  %1792 = vmatpush1.msra.mxu0 %v182
  %1793 = vmatprep.subr.mxu0 %v187
  %1794 = vmatpush1.msra.mxu0 %v186
  %1795 = vmatprep.subr.mxu0 %v191
  %1796 = vmatpush1.msra.mxu0 %v190
  %1797 = vmatprep.subr.mxu0 %v195
  %1798 = vmatpush1.msra.mxu0 %v194
  %1799 = vmatprep.subr.mxu0 %v199
  %1800 = vmatpush1.msra.mxu0 %v198
  %1801 = vmatprep.subr.mxu0 %v203
  %1802 = vmatpush1.msra.mxu0 %v202
  %1803 = vmatprep.subr.mxu0 %v207
  %1804 = vmatpush1.msra.mxu0 %v206
  %1805 = vmatprep.subr.mxu0 %v211
  %1806 = vmatpush1.msra.mxu0 %v210
  %1807 = vmatprep.subr.mxu0 %v215
  %1808 = vmatpush1.msra.mxu0 %v214
  %1809 = vmatprep.subr.mxu0 %v219
  %1810 = vmatpush1.msra.mxu0 %v218
  %1811 = vmatprep.subr.mxu0 %v223
  %1812 = vmatpush1.msra.mxu0 %v222
  %1813 = vmatprep.subr.mxu0 %v227
  %1814 = vmatpush1.msra.mxu0 %v226
  %1815 = vmatprep.subr.mxu0 %v231
  %1816 = vmatpush1.msra.mxu0 %v230
  %1817 = vmatprep.subr.mxu0 %v235
  %1818 = vmatpush1.msra.mxu0 %v234
  %1819 = vmatprep.subr.mxu0 %v239
  %1820 = vmatpush1.msra.mxu0 %v238
  %1821 = vmatprep.subr.mxu0 %v243
  %1822 = vmatpush1.msra.mxu0 %v242
  %1823 = vmatprep.subr.mxu0 %v247
  %1824 = vmatpush1.msra.mxu0 %v246
  %1825 = vmatprep.subr.mxu0 %v251
  %1826 = vmatpush1.msra.mxu0 %v250
  %1827 = vmatprep.subr.mxu0 %v255
  %1828 = vmatpush1.msra.mxu0 %v254
  %1829 = vmatprep.subr.mxu0 %v259
  %1830 = vmatpush1.msra.mxu0 %v258
  %1831 = vmatprep.subr.mxu0 %v263
  %1832 = vmatpush1.msra.mxu0 %v262
  %1833 = vmatprep.subr.mxu0 %v267
  %1834 = vmatpush1.msra.mxu0 %v266
  %1835 = vmatprep.subr.mxu0 %v271
  %1836 = vmatpush1.msra.mxu0 %v270
  %1837 = vmatprep.subr.mxu0 %v275
  %1838 = vmatpush1.msra.mxu0 %v274
  %1839 = vmatprep.subr.mxu0 %v279
  %1840 = vmatpush1.msra.mxu0 %v278
  %1841 = vmatprep.subr.mxu0 %v283
  %1842 = vmatpush1.msra.mxu0 %v282
  %1843 = vmatprep.subr.mxu0 %v287
  %1844 = vmatpush1.msra.mxu0 %v286
  %1845 = vmatprep.subr.mxu0 %v291
  %1846 = vmatpush1.msra.mxu0 %v290
  %1847 = vmatprep.subr.mxu0 %v295
  %1848 = vmatpush1.msra.mxu0 %v294
  %1849 = vmatprep.subr.mxu0 %v299
  %1850 = vmatpush1.msra.mxu0 %v298
  %1851 = vmatprep.subr.mxu0 %v303
  %1852 = vmatpush1.msra.mxu0 %v302
  %1853 = vmatprep.subr.mxu0 %v307
  %1854 = vmatpush1.msra.mxu0 %v306
  %1855 = vmatprep.mubr.f32.mxu0 %v23
  %1856 = vmatmul.mubr.f32.gmra.mrb[0].mxu0 %v22
  %v1857 = vpop.f32.mrb[0].mxu0
  %v1858 = vadd.f32 %v1781, %v1857
  %v1859 = vpop.f32.mrb[0].mxu0
  %v1860 = vadd.f32 %v1783, %v1859
  %1861 = vmatprep.mubr.f32.mxu0 %v39
  %1862 = vmatmul.mubr.f32.gmra.mrb[0].mxu0 %v38
  %v1863 = vpop.f32.mrb[0].mxu0
  %v1864 = vadd.f32 %v1787, %v1863
  %v1865 = vpop.f32.mrb[0].mxu0
  %v1866 = vadd.f32 %v1789, %v1865
  %1867 = vdwg.mxu0
  %1868 = vmatprep.subr.mxu0 %v311
  %1869 = vmatpush1.msra.mxu0 %v310
  %1870 = vmatprep.subr.mxu0 %v315
  %1871 = vmatpush1.msra.mxu0 %v314
  %1872 = vmatprep.subr.mxu0 %v319
  %1873 = vmatpush1.msra.mxu0 %v318
  %1874 = vmatprep.subr.mxu0 %v323
  %1875 = vmatpush1.msra.mxu0 %v322
  %1876 = vmatprep.subr.mxu0 %v327
  %1877 = vmatpush1.msra.mxu0 %v326
  %1878 = vmatprep.subr.mxu0 %v331
  %1879 = vmatpush1.msra.mxu0 %v330
  %1880 = vmatprep.subr.mxu0 %v335
  %1881 = vmatpush1.msra.mxu0 %v334
  %1882 = vmatprep.subr.mxu0 %v339
  %1883 = vmatpush1.msra.mxu0 %v338
  %1884 = vmatprep.subr.mxu0 %v343
  %1885 = vmatpush1.msra.mxu0 %v342
  %1886 = vmatprep.subr.mxu0 %v347
  %1887 = vmatpush1.msra.mxu0 %v346
  %1888 = vmatprep.subr.mxu0 %v351
  %1889 = vmatpush1.msra.mxu0 %v350
  %1890 = vmatprep.subr.mxu0 %v355
  %1891 = vmatpush1.msra.mxu0 %v354
  %1892 = vmatprep.subr.mxu0 %v359
  %1893 = vmatpush1.msra.mxu0 %v358
  %1894 = vmatprep.subr.mxu0 %v363
  %1895 = vmatpush1.msra.mxu0 %v362
  %1896 = vmatprep.subr.mxu0 %v367
  %1897 = vmatpush1.msra.mxu0 %v366
  %1898 = vmatprep.subr.mxu0 %v371
  %1899 = vmatpush1.msra.mxu0 %v370
  %1900 = vmatprep.subr.mxu0 %v375
  %1901 = vmatpush1.msra.mxu0 %v374
  %1902 = vmatprep.subr.mxu0 %v379
  %1903 = vmatpush1.msra.mxu0 %v378
  %1904 = vmatprep.subr.mxu0 %v383
  %1905 = vmatpush1.msra.mxu0 %v382
  %1906 = vmatprep.subr.mxu0 %v387
  %1907 = vmatpush1.msra.mxu0 %v386
  %1908 = vmatprep.subr.mxu0 %v391
  %1909 = vmatpush1.msra.mxu0 %v390
  %1910 = vmatprep.subr.mxu0 %v395
  %1911 = vmatpush1.msra.mxu0 %v394
  %1912 = vmatprep.subr.mxu0 %v399
  %1913 = vmatpush1.msra.mxu0 %v398
  %1914 = vmatprep.subr.mxu0 %v403
  %1915 = vmatpush1.msra.mxu0 %v402
  %1916 = vmatprep.subr.mxu0 %v407
  %1917 = vmatpush1.msra.mxu0 %v406
  %1918 = vmatprep.subr.mxu0 %v411
  %1919 = vmatpush1.msra.mxu0 %v410
  %1920 = vmatprep.subr.mxu0 %v415
  %1921 = vmatpush1.msra.mxu0 %v414
  %1922 = vmatprep.subr.mxu0 %v419
  %1923 = vmatpush1.msra.mxu0 %v418
  %1924 = vmatprep.subr.mxu0 %v423
  %1925 = vmatpush1.msra.mxu0 %v422
  %1926 = vmatprep.subr.mxu0 %v427
  %1927 = vmatpush1.msra.mxu0 %v426
  %1928 = vmatprep.subr.mxu0 %v431
  %1929 = vmatpush1.msra.mxu0 %v430
  %1930 = vmatprep.subr.mxu0 %v435
  %1931 = vmatpush1.msra.mxu0 %v434
  %1932 = vmatprep.mubr.f32.mxu0 %v25
  %1933 = vmatmul.mubr.f32.gmra.mrb[0].mxu0 %v24
  %v1934 = vpop.f32.mrb[0].mxu0
  %v1935 = vadd.f32 %v1858, %v1934
  %v1936 = vpop.f32.mrb[0].mxu0
  %v1937 = vadd.f32 %v1860, %v1936
  %1938 = vmatprep.mubr.f32.mxu0 %v41
  %1939 = vmatmul.mubr.f32.gmra.mrb[0].mxu0 %v40
  %v1940 = vpop.f32.mrb[0].mxu0
  %v1941 = vadd.f32 %v1864, %v1940
  %v1942 = vpop.f32.mrb[0].mxu0
  %v1943 = vadd.f32 %v1866, %v1942
  %1944 = vdwg.mxu0
  %1945 = vmatprep.subr.mxu0 %v439
  %1946 = vmatpush1.msra.mxu0 %v438
  %1947 = vmatprep.subr.mxu0 %v443
  %1948 = vmatpush1.msra.mxu0 %v442
  %1949 = vmatprep.subr.mxu0 %v447
  %1950 = vmatpush1.msra.mxu0 %v446
  %1951 = vmatprep.subr.mxu0 %v451
  %1952 = vmatpush1.msra.mxu0 %v450
  %1953 = vmatprep.subr.mxu0 %v455
  %1954 = vmatpush1.msra.mxu0 %v454
  %1955 = vmatprep.subr.mxu0 %v459
  %1956 = vmatpush1.msra.mxu0 %v458
  %1957 = vmatprep.subr.mxu0 %v463
  %1958 = vmatpush1.msra.mxu0 %v462
  %1959 = vmatprep.subr.mxu0 %v467
  %1960 = vmatpush1.msra.mxu0 %v466
  %1961 = vmatprep.subr.mxu0 %v471
  %1962 = vmatpush1.msra.mxu0 %v470
  %1963 = vmatprep.subr.mxu0 %v475
  %1964 = vmatpush1.msra.mxu0 %v474
  %1965 = vmatprep.subr.mxu0 %v479
  %1966 = vmatpush1.msra.mxu0 %v478
  %1967 = vmatprep.subr.mxu0 %v483
  %1968 = vmatpush1.msra.mxu0 %v482
  %1969 = vmatprep.subr.mxu0 %v487
  %1970 = vmatpush1.msra.mxu0 %v486
  %1971 = vmatprep.subr.mxu0 %v491
  %1972 = vmatpush1.msra.mxu0 %v490
  %1973 = vmatprep.subr.mxu0 %v495
  %1974 = vmatpush1.msra.mxu0 %v494
  %1975 = vmatprep.subr.mxu0 %v499
  %1976 = vmatpush1.msra.mxu0 %v498
  %1977 = vmatprep.subr.mxu0 %v503
  %1978 = vmatpush1.msra.mxu0 %v502
  %1979 = vmatprep.subr.mxu0 %v507
  %1980 = vmatpush1.msra.mxu0 %v506
  %1981 = vmatprep.subr.mxu0 %v511
  %1982 = vmatpush1.msra.mxu0 %v510
  %1983 = vmatprep.subr.mxu0 %v515
  %1984 = vmatpush1.msra.mxu0 %v514
  %1985 = vmatprep.subr.mxu0 %v519
  %1986 = vmatpush1.msra.mxu0 %v518
  %1987 = vmatprep.subr.mxu0 %v523
  %1988 = vmatpush1.msra.mxu0 %v522
  %1989 = vmatprep.subr.mxu0 %v527
  %1990 = vmatpush1.msra.mxu0 %v526
  %1991 = vmatprep.subr.mxu0 %v531
  %1992 = vmatpush1.msra.mxu0 %v530
  %1993 = vmatprep.subr.mxu0 %v535
  %1994 = vmatpush1.msra.mxu0 %v534
  %1995 = vmatprep.subr.mxu0 %v539
  %1996 = vmatpush1.msra.mxu0 %v538
  %1997 = vmatprep.subr.mxu0 %v543
  %1998 = vmatpush1.msra.mxu0 %v542
  %1999 = vmatprep.subr.mxu0 %v547
  %2000 = vmatpush1.msra.mxu0 %v546
  %2001 = vmatprep.subr.mxu0 %v551
  %2002 = vmatpush1.msra.mxu0 %v550
  %2003 = vmatprep.subr.mxu0 %v555
  %2004 = vmatpush1.msra.mxu0 %v554
  %2005 = vmatprep.subr.mxu0 %v559
  %2006 = vmatpush1.msra.mxu0 %v558
  %2007 = vmatprep.subr.mxu0 %v563
  %2008 = vmatpush1.msra.mxu0 %v562
  %2009 = vmatprep.mubr.f32.mxu0 %v27
  %2010 = vmatmul.mubr.f32.gmra.mrb[0].mxu0 %v26
  %v2011 = vpop.f32.mrb[0].mxu0
  %v2012 = vadd.f32 %v1935, %v2011
  %v2013 = vpop.f32.mrb[0].mxu0
  %v2014 = vadd.f32 %v1937, %v2013
  %2015 = vmatprep.mubr.f32.mxu0 %v43
  %2016 = vmatmul.mubr.f32.gmra.mrb[0].mxu0 %v42
  %v2017 = vpop.f32.mrb[0].mxu0
  %v2018 = vadd.f32 %v1941, %v2017
  %v2019 = vpop.f32.mrb[0].mxu0
  %v2020 = vadd.f32 %v1943, %v2019
  %2021 = vdwg.mxu0
  %2022 = vmatprep.subr.mxu0 %v567
  %2023 = vmatpush1.msra.mxu0 %v566
  %2024 = vmatprep.subr.mxu0 %v571
  %2025 = vmatpush1.msra.mxu0 %v570
  %2026 = vmatprep.subr.mxu0 %v575
  %2027 = vmatpush1.msra.mxu0 %v574
  %2028 = vmatprep.subr.mxu0 %v579
  %2029 = vmatpush1.msra.mxu0 %v578
  %2030 = vmatprep.subr.mxu0 %v583
  %2031 = vmatpush1.msra.mxu0 %v582
  %2032 = vmatprep.subr.mxu0 %v587
  %2033 = vmatpush1.msra.mxu0 %v586
  %2034 = vmatprep.subr.mxu0 %v591
  %2035 = vmatpush1.msra.mxu0 %v590
  %2036 = vmatprep.subr.mxu0 %v595
  %2037 = vmatpush1.msra.mxu0 %v594
  %2038 = vmatprep.subr.mxu0 %v599
  %2039 = vmatpush1.msra.mxu0 %v598
  %2040 = vmatprep.subr.mxu0 %v603
  %2041 = vmatpush1.msra.mxu0 %v602
  %2042 = vmatprep.subr.mxu0 %v607
  %2043 = vmatpush1.msra.mxu0 %v606
  %2044 = vmatprep.subr.mxu0 %v611
  %2045 = vmatpush1.msra.mxu0 %v610
  %2046 = vmatprep.subr.mxu0 %v615
  %2047 = vmatpush1.msra.mxu0 %v614
  %2048 = vmatprep.subr.mxu0 %v619
  %2049 = vmatpush1.msra.mxu0 %v618
  %2050 = vmatprep.subr.mxu0 %v623
  %2051 = vmatpush1.msra.mxu0 %v622
  %2052 = vmatprep.subr.mxu0 %v627
  %2053 = vmatpush1.msra.mxu0 %v626
  %2054 = vmatprep.subr.mxu0 %v631
  %2055 = vmatpush1.msra.mxu0 %v630
  %2056 = vmatprep.subr.mxu0 %v635
  %2057 = vmatpush1.msra.mxu0 %v634
  %2058 = vmatprep.subr.mxu0 %v639
  %2059 = vmatpush1.msra.mxu0 %v638
  %2060 = vmatprep.subr.mxu0 %v643
  %2061 = vmatpush1.msra.mxu0 %v642
  %2062 = vmatprep.subr.mxu0 %v647
  %2063 = vmatpush1.msra.mxu0 %v646
  %2064 = vmatprep.subr.mxu0 %v651
  %2065 = vmatpush1.msra.mxu0 %v650
  %2066 = vmatprep.subr.mxu0 %v655
  %2067 = vmatpush1.msra.mxu0 %v654
  %2068 = vmatprep.subr.mxu0 %v659
  %2069 = vmatpush1.msra.mxu0 %v658
  %2070 = vmatprep.subr.mxu0 %v663
  %2071 = vmatpush1.msra.mxu0 %v662
  %2072 = vmatprep.subr.mxu0 %v667
  %2073 = vmatpush1.msra.mxu0 %v666
  %2074 = vmatprep.subr.mxu0 %v671
  %2075 = vmatpush1.msra.mxu0 %v670
  %2076 = vmatprep.subr.mxu0 %v675
  %2077 = vmatpush1.msra.mxu0 %v674
  %2078 = vmatprep.subr.mxu0 %v679
  %2079 = vmatpush1.msra.mxu0 %v678
  %2080 = vmatprep.subr.mxu0 %v683
  %2081 = vmatpush1.msra.mxu0 %v682
  %2082 = vmatprep.subr.mxu0 %v687
  %2083 = vmatpush1.msra.mxu0 %v686
  %2084 = vmatprep.subr.mxu0 %v691
  %2085 = vmatpush1.msra.mxu0 %v690
  %2086 = vmatprep.mubr.f32.mxu0 %v29
  %2087 = vmatmul.mubr.f32.gmra.mrb[0].mxu0 %v28
  %v2088 = vpop.f32.mrb[0].mxu0
  %v2089 = vadd.f32 %v2012, %v2088
  %v2090 = vpop.f32.mrb[0].mxu0
  %v2091 = vadd.f32 %v2014, %v2090
  %2092 = vmatprep.mubr.f32.mxu0 %v45
  %2093 = vmatmul.mubr.f32.gmra.mrb[0].mxu0 %v44
  %v2094 = vpop.f32.mrb[0].mxu0
  %v2095 = vadd.f32 %v2018, %v2094
  %v2096 = vpop.f32.mrb[0].mxu0
  %v2097 = vadd.f32 %v2020, %v2096
  %2098 = vdwg.mxu0
  %2099 = vmatprep.subr.mxu0 %v695
  %2100 = vmatpush1.msra.mxu0 %v694
  %2101 = vmatprep.subr.mxu0 %v699
  %2102 = vmatpush1.msra.mxu0 %v698
  %2103 = vmatprep.subr.mxu0 %v703
  %2104 = vmatpush1.msra.mxu0 %v702
  %2105 = vmatprep.subr.mxu0 %v707
  %2106 = vmatpush1.msra.mxu0 %v706
  %2107 = vmatprep.subr.mxu0 %v711
  %2108 = vmatpush1.msra.mxu0 %v710
  %2109 = vmatprep.subr.mxu0 %v715
  %2110 = vmatpush1.msra.mxu0 %v714
  %2111 = vmatprep.subr.mxu0 %v719
  %2112 = vmatpush1.msra.mxu0 %v718
  %2113 = vmatprep.subr.mxu0 %v723
  %2114 = vmatpush1.msra.mxu0 %v722
  %2115 = vmatprep.subr.mxu0 %v727
  %2116 = vmatpush1.msra.mxu0 %v726
  %2117 = vmatprep.subr.mxu0 %v731
  %2118 = vmatpush1.msra.mxu0 %v730
  %2119 = vmatprep.subr.mxu0 %v735
  %2120 = vmatpush1.msra.mxu0 %v734
  %2121 = vmatprep.subr.mxu0 %v739
  %2122 = vmatpush1.msra.mxu0 %v738
  %2123 = vmatprep.subr.mxu0 %v743
  %2124 = vmatpush1.msra.mxu0 %v742
  %2125 = vmatprep.subr.mxu0 %v747
  %2126 = vmatpush1.msra.mxu0 %v746
  %2127 = vmatprep.subr.mxu0 %v751
  %2128 = vmatpush1.msra.mxu0 %v750
  %2129 = vmatprep.subr.mxu0 %v755
  %2130 = vmatpush1.msra.mxu0 %v754
  %2131 = vmatprep.subr.mxu0 %v759
  %2132 = vmatpush1.msra.mxu0 %v758
  %2133 = vmatprep.subr.mxu0 %v763
  %2134 = vmatpush1.msra.mxu0 %v762
  %2135 = vmatprep.subr.mxu0 %v767
  %2136 = vmatpush1.msra.mxu0 %v766
  %2137 = vmatprep.subr.mxu0 %v771
  %2138 = vmatpush1.msra.mxu0 %v770
  %2139 = vmatprep.subr.mxu0 %v775
  %2140 = vmatpush1.msra.mxu0 %v774
  %2141 = vmatprep.subr.mxu0 %v779
  %2142 = vmatpush1.msra.mxu0 %v778
  %2143 = vmatprep.subr.mxu0 %v783
  %2144 = vmatpush1.msra.mxu0 %v782
  %2145 = vmatprep.subr.mxu0 %v787
  %2146 = vmatpush1.msra.mxu0 %v786
  %2147 = vmatprep.subr.mxu0 %v791
  %2148 = vmatpush1.msra.mxu0 %v790
  %2149 = vmatprep.subr.mxu0 %v795
  %2150 = vmatpush1.msra.mxu0 %v794
  %2151 = vmatprep.subr.mxu0 %v799
  %2152 = vmatpush1.msra.mxu0 %v798
  %2153 = vmatprep.subr.mxu0 %v803
  %2154 = vmatpush1.msra.mxu0 %v802
  %2155 = vmatprep.subr.mxu0 %v807
  %2156 = vmatpush1.msra.mxu0 %v806
  %2157 = vmatprep.subr.mxu0 %v811
  %2158 = vmatpush1.msra.mxu0 %v810
  %2159 = vmatprep.subr.mxu0 %v815
  %2160 = vmatpush1.msra.mxu0 %v814
  %2161 = vmatprep.subr.mxu0 %v819
  %2162 = vmatpush1.msra.mxu0 %v818
  %2163 = vmatprep.mubr.f32.mxu0 %v31
  %2164 = vmatmul.mubr.f32.gmra.mrb[0].mxu0 %v30
  %v2165 = vpop.f32.mrb[0].mxu0
  %v2166 = vadd.f32 %v2089, %v2165
  %v2167 = vpop.f32.mrb[0].mxu0
  %v2168 = vadd.f32 %v2091, %v2167
  %2169 = vmatprep.mubr.f32.mxu0 %v47
  %2170 = vmatmul.mubr.f32.gmra.mrb[0].mxu0 %v46
  %v2171 = vpop.f32.mrb[0].mxu0
  %v2172 = vadd.f32 %v2095, %v2171
  %v2173 = vpop.f32.mrb[0].mxu0
  %v2174 = vadd.f32 %v2097, %v2173
  %2175 = vdwg.mxu0
  %2176 = vmatprep.subr.mxu0 %v823
  %2177 = vmatpush1.msra.mxu0 %v822
  %2178 = vmatprep.subr.mxu0 %v827
  %2179 = vmatpush1.msra.mxu0 %v826
  %2180 = vmatprep.subr.mxu0 %v831
  %2181 = vmatpush1.msra.mxu0 %v830
  %2182 = vmatprep.subr.mxu0 %v835
  %2183 = vmatpush1.msra.mxu0 %v834
  %2184 = vmatprep.subr.mxu0 %v839
  %2185 = vmatpush1.msra.mxu0 %v838
  %2186 = vmatprep.subr.mxu0 %v843
  %2187 = vmatpush1.msra.mxu0 %v842
  %2188 = vmatprep.subr.mxu0 %v847
  %2189 = vmatpush1.msra.mxu0 %v846
  %2190 = vmatprep.subr.mxu0 %v851
  %2191 = vmatpush1.msra.mxu0 %v850
  %2192 = vmatprep.subr.mxu0 %v855
  %2193 = vmatpush1.msra.mxu0 %v854
  %2194 = vmatprep.subr.mxu0 %v859
  %2195 = vmatpush1.msra.mxu0 %v858
  %2196 = vmatprep.subr.mxu0 %v863
  %2197 = vmatpush1.msra.mxu0 %v862
  %2198 = vmatprep.subr.mxu0 %v867
  %2199 = vmatpush1.msra.mxu0 %v866
  %2200 = vmatprep.subr.mxu0 %v871
  %2201 = vmatpush1.msra.mxu0 %v870
  %2202 = vmatprep.subr.mxu0 %v875
  %2203 = vmatpush1.msra.mxu0 %v874
  %2204 = vmatprep.subr.mxu0 %v879
  %2205 = vmatpush1.msra.mxu0 %v878
  %2206 = vmatprep.subr.mxu0 %v883
  %2207 = vmatpush1.msra.mxu0 %v882
  %2208 = vmatprep.subr.mxu0 %v887
  %2209 = vmatpush1.msra.mxu0 %v886
  %2210 = vmatprep.subr.mxu0 %v891
  %2211 = vmatpush1.msra.mxu0 %v890
  %2212 = vmatprep.subr.mxu0 %v895
  %2213 = vmatpush1.msra.mxu0 %v894
  %2214 = vmatprep.subr.mxu0 %v899
  %2215 = vmatpush1.msra.mxu0 %v898
  %2216 = vmatprep.subr.mxu0 %v903
  %2217 = vmatpush1.msra.mxu0 %v902
  %2218 = vmatprep.subr.mxu0 %v907
  %2219 = vmatpush1.msra.mxu0 %v906
  %2220 = vmatprep.subr.mxu0 %v911
  %2221 = vmatpush1.msra.mxu0 %v910
  %2222 = vmatprep.subr.mxu0 %v915
  %2223 = vmatpush1.msra.mxu0 %v914
  %2224 = vmatprep.subr.mxu0 %v919
  %2225 = vmatpush1.msra.mxu0 %v918
  %2226 = vmatprep.subr.mxu0 %v923
  %2227 = vmatpush1.msra.mxu0 %v922
  %2228 = vmatprep.subr.mxu0 %v927
  %2229 = vmatpush1.msra.mxu0 %v926
  %2230 = vmatprep.subr.mxu0 %v931
  %2231 = vmatpush1.msra.mxu0 %v930
  %2232 = vmatprep.subr.mxu0 %v935
  %2233 = vmatpush1.msra.mxu0 %v934
  %2234 = vmatprep.subr.mxu0 %v939
  %2235 = vmatpush1.msra.mxu0 %v938
  %2236 = vmatprep.subr.mxu0 %v943
  %2237 = vmatpush1.msra.mxu0 %v942
  %2238 = vmatprep.subr.mxu0 %v947
  %2239 = vmatpush1.msra.mxu0 %v946
  %2240 = vmatprep.mubr.f32.mxu0 %v33
  %2241 = vmatmul.mubr.f32.gmra.mrb[0].mxu0 %v32
  %v2242 = vpop.f32.mrb[0].mxu0
  %v2243 = vadd.f32 %v2166, %v2242
  %v2244 = vpop.f32.mrb[0].mxu0
  %v2245 = vadd.f32 %v2168, %v2244
  %2246 = vmatprep.mubr.f32.mxu0 %v49
  %2247 = vmatmul.mubr.f32.gmra.mrb[0].mxu0 %v48
  %v2248 = vpop.f32.mrb[0].mxu0
  %v2249 = vadd.f32 %v2172, %v2248
  %v2250 = vpop.f32.mrb[0].mxu0
  %v2251 = vadd.f32 %v2174, %v2250
  %2252 = vdwg.mxu0
  %2253 = vmatprep.subr.mxu0 %v951
  %2254 = vmatpush1.msra.mxu0 %v950
  %2255 = vmatprep.subr.mxu0 %v955
  %2256 = vmatpush1.msra.mxu0 %v954
  %2257 = vmatprep.subr.mxu0 %v959
  %2258 = vmatpush1.msra.mxu0 %v958
  %2259 = vmatprep.subr.mxu0 %v963
  %2260 = vmatpush1.msra.mxu0 %v962
  %2261 = vmatprep.subr.mxu0 %v967
  %2262 = vmatpush1.msra.mxu0 %v966
  %2263 = vmatprep.subr.mxu0 %v971
  %2264 = vmatpush1.msra.mxu0 %v970
  %2265 = vmatprep.subr.mxu0 %v975
  %2266 = vmatpush1.msra.mxu0 %v974
  %2267 = vmatprep.subr.mxu0 %v979
  %2268 = vmatpush1.msra.mxu0 %v978
  %2269 = vmatprep.subr.mxu0 %v983
  %2270 = vmatpush1.msra.mxu0 %v982
  %2271 = vmatprep.subr.mxu0 %v987
  %2272 = vmatpush1.msra.mxu0 %v986
  %2273 = vmatprep.subr.mxu0 %v991
  %2274 = vmatpush1.msra.mxu0 %v990
  %2275 = vmatprep.subr.mxu0 %v995
  %2276 = vmatpush1.msra.mxu0 %v994
  %2277 = vmatprep.subr.mxu0 %v999
  %2278 = vmatpush1.msra.mxu0 %v998
  %2279 = vmatprep.subr.mxu0 %v1003
  %2280 = vmatpush1.msra.mxu0 %v1002
  %2281 = vmatprep.subr.mxu0 %v1007
  %2282 = vmatpush1.msra.mxu0 %v1006
  %2283 = vmatprep.subr.mxu0 %v1011
  %2284 = vmatpush1.msra.mxu0 %v1010
  %2285 = vmatprep.subr.mxu0 %v1015
  %2286 = vmatpush1.msra.mxu0 %v1014
  %2287 = vmatprep.subr.mxu0 %v1019
  %2288 = vmatpush1.msra.mxu0 %v1018
  %2289 = vmatprep.subr.mxu0 %v1023
  %2290 = vmatpush1.msra.mxu0 %v1022
  %2291 = vmatprep.subr.mxu0 %v1027
  %2292 = vmatpush1.msra.mxu0 %v1026
  %2293 = vmatprep.subr.mxu0 %v1031
  %2294 = vmatpush1.msra.mxu0 %v1030
  %2295 = vmatprep.subr.mxu0 %v1035
  %2296 = vmatpush1.msra.mxu0 %v1034
  %2297 = vmatprep.subr.mxu0 %v1039
  %2298 = vmatpush1.msra.mxu0 %v1038
  %2299 = vmatprep.subr.mxu0 %v1043
  %2300 = vmatpush1.msra.mxu0 %v1042
  %2301 = vmatprep.subr.mxu0 %v1047
  %2302 = vmatpush1.msra.mxu0 %v1046
  %2303 = vmatprep.subr.mxu0 %v1051
  %2304 = vmatpush1.msra.mxu0 %v1050
  %2305 = vmatprep.subr.mxu0 %v1055
  %2306 = vmatpush1.msra.mxu0 %v1054
  %2307 = vmatprep.subr.mxu0 %v1059
  %2308 = vmatpush1.msra.mxu0 %v1058
  %2309 = vmatprep.subr.mxu0 %v1063
  %2310 = vmatpush1.msra.mxu0 %v1062
  %2311 = vmatprep.subr.mxu0 %v1067
  %2312 = vmatpush1.msra.mxu0 %v1066
  %2313 = vmatprep.subr.mxu0 %v1071
  %2314 = vmatpush1.msra.mxu0 %v1070
  %2315 = vmatprep.subr.mxu0 %v1075
  %2316 = vmatpush1.msra.mxu0 %v1074
  %2317 = vmatprep.mubr.f32.mxu0 %v35
  %2318 = vmatmul.mubr.f32.gmra.mrb[0].mxu0 %v34
  %v2319 = vpop.f32.mrb[0].mxu0
  %v2320 = vadd.f32 %v2243, %v2319
  %v2321 = vpop.f32.mrb[0].mxu0
  %v2322 = vadd.f32 %v2245, %v2321
  %2323 = vmatprep.mubr.f32.mxu0 %v51
  %2324 = vmatmul.mubr.f32.gmra.mrb[0].mxu0 %v50
  %v2325 = vpop.f32.mrb[0].mxu0
  %v2326 = vadd.f32 %v2249, %v2325
  %v2327 = vpop.f32.mrb[0].mxu0
  %v2328 = vadd.f32 %v2251, %v2327
  %2329 = vdwg.mxu0
  %v2330 = vmax.f32 %v1704, 0.0
  %v2331 = vmax.f32 %v1706, 0.0
  %v2332 = vmax.f32 %v2320, 0.0
  %v2333 = vmax.f32 %v2322, 0.0
  %v2334 = vmax.f32 %v1710, 0.0
  %v2335 = vmax.f32 %v1712, 0.0
  %v2336 = vmax.f32 %v2326, 0.0
  %v2337 = vmax.f32 %v2328, 0.0
  %v2338 = vld [vmem:[%s3] sm:$0xff]
  %v2339 = vld [vmem:[%s3 + $0x8] sm:$0xff]
  %v2340 = vld [vmem:[%s3 + $0x10] sm:$0xff]
  %v2341 = vld [vmem:[%s3 + $0x18] sm:$0xff]
  %v2342 = vld [vmem:[%s3 + $0x20] sm:$0xff]
  %v2343 = vld [vmem:[%s3 + $0x28] sm:$0xff]
  %v2344 = vld [vmem:[%s3 + $0x30] sm:$0xff]
  %v2345 = vld [vmem:[%s3 + $0x38] sm:$0xff]
  %v2346 = vld [vmem:[%s3 + $0x40] sm:$0xff]
  %v2347 = vld [vmem:[%s3 + $0x48] sm:$0xff]
  %v2348 = vld [vmem:[%s3 + $0x50] sm:$0xff]
  %v2349 = vld [vmem:[%s3 + $0x58] sm:$0xff]
  %v2350 = vld [vmem:[%s3 + $0x60] sm:$0xff]
  %v2351 = vld [vmem:[%s3 + $0x68] sm:$0xff]
  %v2352 = vld [vmem:[%s3 + $0x70] sm:$0xff]
  %v2353 = vld [vmem:[%s3 + $0x78] sm:$0xff]
  %v2354 = vld [vmem:[%s3 + $0x80] sm:$0xff]
  %v2355 = vld [vmem:[%s3 + $0x88] sm:$0xff]
  %v2356 = vld [vmem:[%s3 + $0x90] sm:$0xff]
  %v2357 = vld [vmem:[%s3 + $0x98] sm:$0xff]
  %v2358 = vld [vmem:[%s3 + $0xa0] sm:$0xff]
  %v2359 = vld [vmem:[%s3 + $0xa8] sm:$0xff]
  %v2360 = vld [vmem:[%s3 + $0xb0] sm:$0xff]
  %v2361 = vld [vmem:[%s3 + $0xb8] sm:$0xff]
  %v2362 = vld [vmem:[%s3 + $0xc0] sm:$0xff]
  %v2363 = vld [vmem:[%s3 + $0xc8] sm:$0xff]
  %v2364 = vld [vmem:[%s3 + $0xd0] sm:$0xff]
  %v2365 = vld [vmem:[%s3 + $0xd8] sm:$0xff]
  %v2366 = vld [vmem:[%s3 + $0xe0] sm:$0xff]
  %v2367 = vld [vmem:[%s3 + $0xe8] sm:$0xff]
  %v2368 = vld [vmem:[%s3 + $0xf0] sm:$0xff]
  %v2369 = vld [vmem:[%s3 + $0xf8] sm:$0xff]
  %v2370 = vld [vmem:[%s3 + $0x100] sm:$0xff]
  %v2371 = vld [vmem:[%s3 + $0x108] sm:$0xff]
  %v2372 = vld [vmem:[%s3 + $0x110] sm:$0xff]
  %v2373 = vld [vmem:[%s3 + $0x118] sm:$0xff]
  %v2374 = vld [vmem:[%s3 + $0x120] sm:$0xff]
  %v2375 = vld [vmem:[%s3 + $0x128] sm:$0xff]
  %v2376 = vld [vmem:[%s3 + $0x130] sm:$0xff]
  %v2377 = vld [vmem:[%s3 + $0x138] sm:$0xff]
  %v2378 = vld [vmem:[%s3 + $0x140] sm:$0xff]
  %v2379 = vld [vmem:[%s3 + $0x148] sm:$0xff]
  %v2380 = vld [vmem:[%s3 + $0x150] sm:$0xff]
  %v2381 = vld [vmem:[%s3 + $0x158] sm:$0xff]
  %v2382 = vld [vmem:[%s3 + $0x160] sm:$0xff]
  %v2383 = vld [vmem:[%s3 + $0x168] sm:$0xff]
  %v2384 = vld [vmem:[%s3 + $0x170] sm:$0xff]
  %v2385 = vld [vmem:[%s3 + $0x178] sm:$0xff]
  %v2386 = vld [vmem:[%s3 + $0x180] sm:$0xff]
  %v2387 = vld [vmem:[%s3 + $0x188] sm:$0xff]
  %v2388 = vld [vmem:[%s3 + $0x190] sm:$0xff]
  %v2389 = vld [vmem:[%s3 + $0x198] sm:$0xff]
  %v2390 = vld [vmem:[%s3 + $0x1a0] sm:$0xff]
  %v2391 = vld [vmem:[%s3 + $0x1a8] sm:$0xff]
  %v2392 = vld [vmem:[%s3 + $0x1b0] sm:$0xff]
  %v2393 = vld [vmem:[%s3 + $0x1b8] sm:$0xff]
  %v2394 = vld [vmem:[%s3 + $0x1c0] sm:$0xff]
  %v2395 = vld [vmem:[%s3 + $0x1c8] sm:$0xff]
  %v2396 = vld [vmem:[%s3 + $0x1d0] sm:$0xff]
  %v2397 = vld [vmem:[%s3 + $0x1d8] sm:$0xff]
  %v2398 = vld [vmem:[%s3 + $0x1e0] sm:$0xff]
  %v2399 = vld [vmem:[%s3 + $0x1e8] sm:$0xff]
  %v2400 = vld [vmem:[%s3 + $0x1f0] sm:$0xff]
  %v2401 = vld [vmem:[%s3 + $0x1f8] sm:$0xff]
  %v2402 = vld [vmem:[%s4] sm:$0x1]
  %v2404 = vlaneseq
  %v2405 = vshrl.u32 %v2404, 7
  %v2406 = vsub.s32 0, %v2405
  %v2407 = vrot.slane %v2402, %v2406
  %2409 = vmatprep.subr.mxu0 0.0
  %2410 = vmatpush1.msra.mxu0 %v2338
  %2411 = vmatprep.subr.mxu0 0.0
  %2412 = vmatpush1.msra.mxu0 %v2339
  %2413 = vmatprep.subr.mxu0 0.0
  %2414 = vmatpush1.msra.mxu0 %v2340
  %2415 = vmatprep.subr.mxu0 0.0
  %2416 = vmatpush1.msra.mxu0 %v2341
  %2417 = vmatprep.subr.mxu0 0.0
  %2418 = vmatpush1.msra.mxu0 %v2342
  %2419 = vmatprep.subr.mxu0 0.0
  %2420 = vmatpush1.msra.mxu0 %v2343
  %2421 = vmatprep.subr.mxu0 0.0
  %2422 = vmatpush1.msra.mxu0 %v2344
  %2423 = vmatprep.subr.mxu0 0.0
  %2424 = vmatpush1.msra.mxu0 %v2345
  %2425 = vmatprep.subr.mxu0 0.0
  %2426 = vmatpush1.msra.mxu0 %v2346
  %2427 = vmatprep.subr.mxu0 0.0
  %2428 = vmatpush1.msra.mxu0 %v2347
  %2429 = vmatprep.subr.mxu0 0.0
  %2430 = vmatpush1.msra.mxu0 %v2348
  %2431 = vmatprep.subr.mxu0 0.0
  %2432 = vmatpush1.msra.mxu0 %v2349
  %2433 = vmatprep.subr.mxu0 0.0
  %2434 = vmatpush1.msra.mxu0 %v2350
  %2435 = vmatprep.subr.mxu0 0.0
  %2436 = vmatpush1.msra.mxu0 %v2351
  %2437 = vmatprep.subr.mxu0 0.0
  %2438 = vmatpush1.msra.mxu0 %v2352
  %2439 = vmatprep.subr.mxu0 0.0
  %2440 = vmatpush1.msra.mxu0 %v2353
  %2441 = vmatprep.subr.mxu0 0.0
  %2442 = vmatpush1.msra.mxu0 %v2354
  %2443 = vmatprep.subr.mxu0 0.0
  %2444 = vmatpush1.msra.mxu0 %v2355
  %2445 = vmatprep.subr.mxu0 0.0
  %2446 = vmatpush1.msra.mxu0 %v2356
  %2447 = vmatprep.subr.mxu0 0.0
  %2448 = vmatpush1.msra.mxu0 %v2357
  %2449 = vmatprep.subr.mxu0 0.0
  %2450 = vmatpush1.msra.mxu0 %v2358
  %2451 = vmatprep.subr.mxu0 0.0
  %2452 = vmatpush1.msra.mxu0 %v2359
  %2453 = vmatprep.subr.mxu0 0.0
  %2454 = vmatpush1.msra.mxu0 %v2360
  %2455 = vmatprep.subr.mxu0 0.0
  %2456 = vmatpush1.msra.mxu0 %v2361
  %2457 = vmatprep.subr.mxu0 0.0
  %2458 = vmatpush1.msra.mxu0 %v2362
  %2459 = vmatprep.subr.mxu0 0.0
  %2460 = vmatpush1.msra.mxu0 %v2363
  %2461 = vmatprep.subr.mxu0 0.0
  %2462 = vmatpush1.msra.mxu0 %v2364
  %2463 = vmatprep.subr.mxu0 0.0
  %2464 = vmatpush1.msra.mxu0 %v2365
  %2465 = vmatprep.subr.mxu0 0.0
  %2466 = vmatpush1.msra.mxu0 %v2366
  %2467 = vmatprep.subr.mxu0 0.0
  %2468 = vmatpush1.msra.mxu0 %v2367
  %2469 = vmatprep.subr.mxu0 0.0
  %2470 = vmatpush1.msra.mxu0 %v2368
  %2471 = vmatprep.subr.mxu0 0.0
  %2472 = vmatpush1.msra.mxu0 %v2369
  %2473 = vmatprep.mubr.f32.mxu0 %v2331
  %2474 = vmatmul.mubr.f32.gmra.mrb[0].mxu0 %v2330
  %v2475 = vpop.f32.mrb[0].mxu0
  %v2476 = vadd.f32 %v2407, %v2475
  %v2477 = vpop.f32.mrb[0].mxu0
  %2478 = vmatprep.mubr.f32.mxu0 %v2335
  %2479 = vmatmul.mubr.f32.gmra.mrb[0].mxu0 %v2334
  %v2480 = vpop.f32.mrb[0].mxu0
  %v2481 = vadd.f32 %v2407, %v2480
  %v2482 = vpop.f32.mrb[0].mxu0
  %2483 = vdwg.mxu0
  %2484 = vmatprep.subr.mxu0 0.0
  %2485 = vmatpush1.msra.mxu0 %v2370
  %2486 = vmatprep.subr.mxu0 0.0
  %2487 = vmatpush1.msra.mxu0 %v2371
  %2488 = vmatprep.subr.mxu0 0.0
  %2489 = vmatpush1.msra.mxu0 %v2372
  %2490 = vmatprep.subr.mxu0 0.0
  %2491 = vmatpush1.msra.mxu0 %v2373
  %2492 = vmatprep.subr.mxu0 0.0
  %2493 = vmatpush1.msra.mxu0 %v2374
  %2494 = vmatprep.subr.mxu0 0.0
  %2495 = vmatpush1.msra.mxu0 %v2375
  %2496 = vmatprep.subr.mxu0 0.0
  %2497 = vmatpush1.msra.mxu0 %v2376
  %2498 = vmatprep.subr.mxu0 0.0
  %2499 = vmatpush1.msra.mxu0 %v2377
  %2500 = vmatprep.subr.mxu0 0.0
  %2501 = vmatpush1.msra.mxu0 %v2378
  %2502 = vmatprep.subr.mxu0 0.0
  %2503 = vmatpush1.msra.mxu0 %v2379
  %2504 = vmatprep.subr.mxu0 0.0
  %2505 = vmatpush1.msra.mxu0 %v2380
  %2506 = vmatprep.subr.mxu0 0.0
  %2507 = vmatpush1.msra.mxu0 %v2381
  %2508 = vmatprep.subr.mxu0 0.0
  %2509 = vmatpush1.msra.mxu0 %v2382
  %2510 = vmatprep.subr.mxu0 0.0
  %2511 = vmatpush1.msra.mxu0 %v2383
  %2512 = vmatprep.subr.mxu0 0.0
  %2513 = vmatpush1.msra.mxu0 %v2384
  %2514 = vmatprep.subr.mxu0 0.0
  %2515 = vmatpush1.msra.mxu0 %v2385
  %2516 = vmatprep.subr.mxu0 0.0
  %2517 = vmatpush1.msra.mxu0 %v2386
  %2518 = vmatprep.subr.mxu0 0.0
  %2519 = vmatpush1.msra.mxu0 %v2387
  %2520 = vmatprep.subr.mxu0 0.0
  %2521 = vmatpush1.msra.mxu0 %v2388
  %2522 = vmatprep.subr.mxu0 0.0
  %2523 = vmatpush1.msra.mxu0 %v2389
  %2524 = vmatprep.subr.mxu0 0.0
  %2525 = vmatpush1.msra.mxu0 %v2390
  %2526 = vmatprep.subr.mxu0 0.0
  %2527 = vmatpush1.msra.mxu0 %v2391
  %2528 = vmatprep.subr.mxu0 0.0
  %2529 = vmatpush1.msra.mxu0 %v2392
  %2530 = vmatprep.subr.mxu0 0.0
  %2531 = vmatpush1.msra.mxu0 %v2393
  %2532 = vmatprep.subr.mxu0 0.0
  %2533 = vmatpush1.msra.mxu0 %v2394
  %2534 = vmatprep.subr.mxu0 0.0
  %2535 = vmatpush1.msra.mxu0 %v2395
  %2536 = vmatprep.subr.mxu0 0.0
  %2537 = vmatpush1.msra.mxu0 %v2396
  %2538 = vmatprep.subr.mxu0 0.0
  %2539 = vmatpush1.msra.mxu0 %v2397
  %2540 = vmatprep.subr.mxu0 0.0
  %2541 = vmatpush1.msra.mxu0 %v2398
  %2542 = vmatprep.subr.mxu0 0.0
  %2543 = vmatpush1.msra.mxu0 %v2399
  %2544 = vmatprep.subr.mxu0 0.0
  %2545 = vmatpush1.msra.mxu0 %v2400
  %2546 = vmatprep.subr.mxu0 0.0
  %2547 = vmatpush1.msra.mxu0 %v2401
  %2548 = vmatprep.mubr.f32.mxu0 %v2333
  %2549 = vmatmul.mubr.f32.gmra.mrb[0].mxu0 %v2332
  %v2550 = vpop.f32.mrb[0].mxu0
  %v2551 = vadd.f32 %v2476, %v2550
  %v2552 = vpop.f32.mrb[0].mxu0
  %2553 = vmatprep.mubr.f32.mxu0 %v2337
  %2554 = vmatmul.mubr.f32.gmra.mrb[0].mxu0 %v2336
  %v2555 = vpop.f32.mrb[0].mxu0
  %v2556 = vadd.f32 %v2481, %v2555
  %v2557 = vpop.f32.mrb[0].mxu0
  %2558 = vdwg.mxu0
  %2559 = vmax.xlane.f32.xlu0 %v2551
  %v2560 = vpop.xlane.xlu0 %2559
  %2561 = vmax.xlane.f32.xlu0 %v2556
  %v2562 = vpop.xlane.xlu0 %2561
  %v2563 = vsub.f32 %v2551, %v2560
  %v2564 = vsub.f32 %v2556, %v2562
  %v2565 = vmul.f32 %v2563, 1.442695
  %v2566 = vpow.pop %v2565
  %v2567 = vmul.f32 %v2564, 1.442695
  %v2568 = vpow.pop %v2567
  %2569 = vadd.xlane.f32.xlu0 %v2566
  %v2570 = vpop.xlane.xlu0 %2569
  %2571 = vadd.xlane.f32.xlu0 %v2568
  %v2572 = vpop.xlane.xlu0 %2571
  %v2573 = vlog2.pop %v2570
  %v2574 = vmul.f32 %v2573, 0.6931472
  %v2575 = vlog2.pop %v2572
  %v2576 = vmul.f32 %v2575, 0.6931472
  %v2577 = vsub.f32 %v2563, %v2574
  %v2578 = vsub.f32 %v2564, %v2576
  %2579 = vst [vmem:[%s5] sm:$0xff] %v2577
  %2580 = vst [vmem:[%s5 + $0x8] sm:$0xff] %v2578
  // Predicated region
  $region22: #{forward_pallas.5} parent=0 // pred_check
    _
  $region23: #{forward_pallas.5} parent=0 // pred_check_branch
    %2582 = sbr.rel (0) target = $region25
  $region24: #{forward_pallas.5} parent=0 // pred_region
    _
  $region25: #{forward_pallas.5} parent=0 // pred_fallthru
    _
  // Predicated region
  $region26: #{forward_pallas.5} parent=0 // pred_check
    _
  $region27: #{forward_pallas.5} parent=0 // pred_check_branch
    %2584 = sbr.rel (0) target = $region29
  $region28: #{forward_pallas.5} parent=0 // pred_region
    _
  $region29: #{forward_pallas.5} parent=0 // pred_fallthru
    _

</llo_original>
